<compile_context>
chip_gen: v7x
topology: tpu7x:2x2x1
jax: 0.10.0
libtpu: 0.0.40
codegen_flags: <defaults>
</compile_context>

<pallas_src>
import functools

import jax
import jax.numpy as jnp
from jax.experimental import pallas as pl
from jax.experimental.pallas import tpu as pltpu


def _round_up(x, m):
    return (x + m - 1) // m * m


# ----------------------------------------------------------------------------
# Pallas kernels
# ----------------------------------------------------------------------------
def _matmul_bias_kernel(x_ref, w_ref, b_ref, o_ref, acc_ref, *, apply_relu):
    """Tiled o = act(x @ w + b); accumulates over the K grid axis in f32 scratch."""

    @pl.when(pl.program_id(2) == 0)
    def _init():
        acc_ref[...] = jnp.zeros_like(acc_ref)

    acc_ref[...] += jnp.dot(
        x_ref[...], w_ref[...], preferred_element_type=jnp.float32
    )

    @pl.when(pl.program_id(2) == pl.num_programs(2) - 1)
    def _finalize():
        acc = acc_ref[...] + b_ref[...]          # bias / ReLU epilogue in f32
        if apply_relu:
            acc = jnp.maximum(acc, 0.0)
        o_ref[...] = acc.astype(o_ref.dtype)


def _maxpool_kernel(x_ref, o_ref):
    """2x2 / stride-2 max pool; input rows laid out as (rows, 2, Wo, 2*C)."""
    c = o_ref.shape[-1]
    v = x_ref[...]
    top = jnp.maximum(v[:, 0, :, :c], v[:, 0, :, c:])
    bot = jnp.maximum(v[:, 1, :, :c], v[:, 1, :, c:])
    o_ref[...] = jnp.maximum(top, bot)


# ----------------------------------------------------------------------------
# Pallas wrappers
# ----------------------------------------------------------------------------
def matmul_bias_act(x, w, b, *, apply_relu, out_dtype):
    """x: (M, K); w: (Kp, Np) bf16 (pre-padded); b: (1, Np) f32 -> (M, Np)."""
    M, K = x.shape
    Kp, Np = w.shape
    assert Kp == _round_up(K, 128) and Np % 128 == 0

    tm = min(256, _round_up(M, 8))
    Mp = _round_up(M, tm)
    tn = 256 if Np % 256 == 0 else 128
    tk = next(t for t in (512, 384, 256, 128) if Kp % t == 0)

    xp = x.astype(jnp.bfloat16)
    if (Mp, Kp) != (M, K):
        xp = jnp.pad(xp, ((0, Mp - M), (0, Kp - K)))

    grid = (Mp // tm, Np // tn, Kp // tk)
    out = pl.pallas_call(
        functools.partial(_matmul_bias_kernel, apply_relu=apply_relu),
        out_shape=jax.ShapeDtypeStruct((Mp, Np), out_dtype),
        grid=grid,
        in_specs=[
            pl.BlockSpec((tm, tk), lambda i, j, k: (i, k)),
            pl.BlockSpec((tk, tn), lambda i, j, k: (k, j)),
            pl.BlockSpec((1, tn), lambda i, j, k: (0, j)),
        ],
        out_specs=pl.BlockSpec((tm, tn), lambda i, j, k: (i, j)),
        scratch_shapes=[pltpu.VMEM((tm, tn), jnp.float32)],
        compiler_params=pltpu.CompilerParams(
            dimension_semantics=("parallel", "parallel", "arbitrary"),
        ),
        cost_estimate=pl.CostEstimate(
            flops=2 * Mp * Np * Kp,
            transcendentals=0,
            bytes_accessed=2 * (Mp * Kp + Kp * Np)
            + 4 * Np
            + Mp * Np * jnp.dtype(out_dtype).itemsize,
        ),
    )(xp, w, b)
    return out[:M] if Mp != M else out


def maxpool2x2(x):
    """2x2 / stride-2 max pool on NHWC input with lane-dense (128-multiple) C."""
    N, H, W, C = x.shape
    Ho, Wo = H // 2, W // 2
    # Free reshape: (N, 2*Ho, 2*Wo, C) -> (N*Ho, 2, Wo, 2*C).
    xr = x.reshape(N * Ho, 2, Wo, 2 * C)
    R = N * Ho
    tr = min(256, R)
    Rp = _round_up(R, tr)
    if Rp != R:
        xr = jnp.pad(xr, ((0, Rp - R), (0, 0), (0, 0), (0, 0)))

    out = pl.pallas_call(
        _maxpool_kernel,
        out_shape=jax.ShapeDtypeStruct((Rp, Wo, C), x.dtype),
        grid=(Rp // tr,),
        in_specs=[pl.BlockSpec((tr, 2, Wo, 2 * C), lambda i: (i, 0, 0, 0))],
        out_specs=pl.BlockSpec((tr, Wo, C), lambda i: (i, 0, 0)),
        compiler_params=pltpu.CompilerParams(dimension_semantics=("parallel",)),
    )(xr)
    if Rp != R:
        out = out[:R]
    return out.reshape(N, Ho, Wo, C)


def conv2d_relu(x, layer, *, kh, kw, stride, pad):
    """Conv2d(+bias,+ReLU): im2col (JAX glue) + tiled Pallas matmul (hot path)."""
    N, H, W, Cin = x.shape
    Ho = (H + 2 * pad - kh) // stride + 1
    Wo = (W + 2 * pad - kw) // stride + 1

    xp = jnp.pad(x, ((0, 0), (pad, pad), (pad, pad), (0, 0)))
    patches = []
    for i in range(kh):
        for j in range(kw):
            patches.append(
                jax.lax.slice(
                    xp,
                    (0, i, j, 0),
                    (N, i + (Ho - 1) * stride + 1, j + (Wo - 1) * stride + 1, Cin),
                    (1, stride, stride, 1),
                )
            )
    pat = jnp.stack(patches, axis=3)                 # (N, Ho, Wo, kh*kw, Cin)
    xm = pat.reshape(N * Ho * Wo, kh * kw * Cin)     # im2col matrix (bf16)

    out = matmul_bias_act(
        xm, layer["w"], layer["b"], apply_relu=True, out_dtype=jnp.bfloat16
    )
    return out.reshape(N, Ho, Wo, layer["w"].shape[1])


# ----------------------------------------------------------------------------
# Parameters (all kernel-side preprocessing hoisted here, done once)
# ----------------------------------------------------------------------------
def _prep_conv(w_oihw, b, cin_p, cout_p):
    cout, cin, kh, kw = w_oihw.shape
    wt = jnp.transpose(w_oihw, (2, 3, 1, 0))                       # (kh,kw,cin,cout)
    wt = jnp.pad(wt, ((0, 0), (0, 0), (0, cin_p - cin), (0, cout_p - cout)))
    wm = wt.reshape(kh * kw * cin_p, cout_p)
    kp = _round_up(wm.shape[0], 128)
    wm = jnp.pad(wm, ((0, kp - wm.shape[0]), (0, 0))).astype(jnp.bfloat16)
    bm = jnp.pad(b, (0, cout_p - cout)).reshape(1, cout_p).astype(jnp.float32)
    return {"w": wm, "b": bm}


def init_params(key, num_classes=10, inputs=3):
    conv_defs = [  # (name, cout, kernel)
        ("conv1", 64, 11),
        ("conv2", 192, 5),
        ("conv3", 384, 3),
        ("conv4", 256, 3),
        ("conv5", 256, 3),
    ]
    params = {}
    cin, cin_p = inputs, inputs
    for name, cout, k in conv_defs:
        key, kw_ = jax.random.split(key)
        fan_in = cin * k * k
        w = jax.random.normal(kw_, (cout, cin, k, k), jnp.float32) * (2.0 / fan_in) ** 0.5
        b = jnp.zeros((cout,), jnp.float32)
        cout_p = _round_up(cout, 128)
        params[name] = _prep_conv(w, b, cin_p, cout_p)
        cin, cin_p = cout, cout_p

    key, k1, k2 = jax.random.split(key, 3)
    fc_w = jax.random.normal(k1, (num_classes, 256), jnp.float32) * (1.0 / 256) ** 0.5
    fc_b = jax.random.normal(k2, (num_classes,), jnp.float32) * 0.01
    nc_p = _round_up(num_classes, 128)
    params["fc"] = {
        "w": jnp.pad(fc_w.T, ((0, 0), (0, nc_p - num_classes))).astype(jnp.bfloat16),
        "b": jnp.pad(fc_b, (0, nc_p - num_classes)).reshape(1, nc_p).astype(jnp.float32),
    }
    return params


# ----------------------------------------------------------------------------
# Forward
# ----------------------------------------------------------------------------
_CONV_ARCH = (  # (name, kernel, stride, pad)
    ("conv1", 11, 4, 5),
    ("conv2", 5, 1, 2),
    ("conv3", 3, 1, 1),
    ("conv4", 3, 1, 1),
    ("conv5", 3, 1, 1),
)
_POOL_AFTER = frozenset({"conv1", "conv2", "conv5"})


def alexnet_forward(params, x_nchw, *, num_classes):
    # x_nchw is (N, C, H, W) as in PyTorch; transpose once to NHWC for compute.
    x = jnp.transpose(x_nchw, (0, 2, 3, 1)).astype(jnp.bfloat16)
    for name, k, stride, pad in _CONV_ARCH:
        x = conv2d_relu(x, params[name], kh=k, kw=k, stride=stride, pad=pad)
        if name in _POOL_AFTER:
            x = maxpool2x2(x)

    # After the feature stack the spatial dims are 1x1 and channels == 256
    # (unpadded), so NHWC flatten == PyTorch's NCHW x.view(x.size(0), -1).
    n = x.shape[0]
    xf = x.reshape(n, -1)
    logits = matmul_bias_act(
        xf, params["fc"]["w"], params["fc"]["b"], apply_relu=False,
        out_dtype=jnp.float32,
    )
    return logits[:, :num_classes]


# ----------------------------------------------------------------------------
if __name__ == "__main__":
    num_classes = 10
    key = jax.random.PRNGKey(0)
    key_params, key_x = jax.random.split(key)

    params = init_params(key_params, num_classes=num_classes, inputs=3)
    # Input: batch=2, 3 channels, 32x32 (smallest size for which the classifier's
    # Linear(256, num_classes) matches the flattened features).
    x = jax.random.normal(key_x, (2, 3, 32, 32), jnp.float32)

    fwd = jax.jit(functools.partial(alexnet_forward, num_classes=num_classes))
    logits = fwd(params, x)
    jax.block_until_ready(logits)
    assert logits.shape == (2, num_classes)
    print("KERNEL_OK")
</pallas_src>

<mosaic_0001>
module attributes {stable_mosaic.version = 11 : i64} {
  func.func @_matmul_bias_kernel(%arg0: i32, %arg1: i32, %arg2: i32, %arg3: memref<128x384xbf16, #tpu.memory_space<vmem>>, %arg4: memref<384x128xbf16, #tpu.memory_space<vmem>>, %arg5: memref<1x128xf32, #tpu.memory_space<vmem>>, %arg6: memref<128x128xbf16, #tpu.memory_space<vmem>>, %arg7: memref<128x128xf32, #tpu.memory_space<vmem>>) attributes {dimension_semantics = [#tpu.dimension_semantics<parallel>, #tpu.dimension_semantics<parallel>, #tpu.dimension_semantics<arbitrary>], iteration_bounds = array<i64: 1, 1, 1>, scalar_prefetch = 0 : i64, scratch_operands = 1 : i64, tpu.core_type = #tpu.core_type<tc>, window_params = [{transform_indices = @transform_0, window_bounds = array<i64: 128, 384>}, {transform_indices = @transform_1, window_bounds = array<i64: 384, 128>}, {transform_indices = @transform_2, window_bounds = array<i64: 1, 128>}, {transform_indices = @transform_3, window_bounds = array<i64: 128, 128>}]} {
    %c0_i32 = arith.constant 0 : i32
    %0 = arith.cmpi eq, %arg2, %c0_i32 : i32
    %1 = arith.extui %0 : i1 to i32
    %c0_i32_0 = arith.constant 0 : i32
    %2 = arith.cmpi ne, %1, %c0_i32_0 : i32
    scf.if %2 {
      %cst_10 = arith.constant 0.000000e+00 : f32
      %12 = vector.broadcast %cst_10 : f32 to vector<128x128xf32>
      %c0_11 = arith.constant 0 : index
      %c0_12 = arith.constant 0 : index
      %13 = vector.load %arg7[%c0_11, %c0_12] : memref<128x128xf32, #tpu.memory_space<vmem>>, vector<128x128xf32>
      tpu.vector_store %arg7[%c0_11, %c0_12], %12 {strides = array<i32>} : memref<128x128xf32, #tpu.memory_space<vmem>>, vector<128x128xf32>,
    } else {
    }
    %c0 = arith.constant 0 : index
    %c0_1 = arith.constant 0 : index
    %3 = vector.load %arg7[%c0, %c0_1] : memref<128x128xf32, #tpu.memory_space<vmem>>, vector<128x128xf32>
    %c0_2 = arith.constant 0 : index
    %c0_3 = arith.constant 0 : index
    %4 = vector.load %arg3[%c0_2, %c0_3] : memref<128x384xbf16, #tpu.memory_space<vmem>>, vector<128x384xbf16>
    %c0_4 = arith.constant 0 : index
    %c0_5 = arith.constant 0 : index
    %5 = vector.load %arg4[%c0_4, %c0_5] : memref<384x128xbf16, #tpu.memory_space<vmem>>, vector<384x128xbf16>
    %cst = arith.constant dense<0.000000e+00> : vector<128x128xf32>
    %6 = tpu.matmul %4, %5, %cst {dimension_numbers = #tpu.dot_dimension_numbers<[1], [0], [0], [1], [0, 0, 1, 1], [], []>} : vector<128x384xbf16>, vector<384x128xbf16>, vector<128x128xf32> -> vector<128x128xf32>
    %7 = arith.addf %3, %6 : vector<128x128xf32>
    %c0_6 = arith.constant 0 : index
    %c0_7 = arith.constant 0 : index
    %8 = vector.load %arg7[%c0_6, %c0_7] : memref<128x128xf32, #tpu.memory_space<vmem>>, vector<128x128xf32>
    tpu.vector_store %arg7[%c0_6, %c0_7], %7 {strides = array<i32>} : memref<128x128xf32, #tpu.memory_space<vmem>>, vector<128x128xf32>,
    %c0_i32_8 = arith.constant 0 : i32
    %9 = arith.cmpi eq, %arg2, %c0_i32_8 : i32
    %10 = arith.extui %9 : i1 to i32
    %c0_i32_9 = arith.constant 0 : i32
    %11 = arith.cmpi ne, %10, %c0_i32_9 : i32
    scf.if %11 {
      %c0_10 = arith.constant 0 : index
      %c0_11 = arith.constant 0 : index
      %12 = vector.load %arg7[%c0_10, %c0_11] : memref<128x128xf32, #tpu.memory_space<vmem>>, vector<128x128xf32>
      %c0_12 = arith.constant 0 : index
      %c0_13 = arith.constant 0 : index
      %13 = vector.load %arg5[%c0_12, %c0_13] : memref<1x128xf32, #tpu.memory_space<vmem>>, vector<1x128xf32>
      %14 = vector.broadcast %13 : vector<1x128xf32> to vector<128x128xf32>
      %15 = arith.addf %12, %14 : vector<128x128xf32>
      %cst_14 = arith.constant 0.000000e+00 : f32
      %16 = vector.broadcast %cst_14 : f32 to vector<128x128xf32>
      %17 = arith.maximumf %15, %16 : vector<128x128xf32>
      %18 = arith.truncf %17 : vector<128x128xf32> to vector<128x128xbf16>
      %c0_15 = arith.constant 0 : index
      %c0_16 = arith.constant 0 : index
      %19 = vector.load %arg6[%c0_15, %c0_16] : memref<128x128xbf16, #tpu.memory_space<vmem>>, vector<128x128xbf16>
      tpu.vector_store %arg6[%c0_15, %c0_16], %18 {strides = array<i32>} : memref<128x128xbf16, #tpu.memory_space<vmem>>, vector<128x128xbf16>,
    } else {
    }
    return
  }
  func.func @transform_0(%arg0: i32, %arg1: i32, %arg2: i32) -> (i32, i32) {
    %c0_i32 = arith.constant 0 : i32
    return %arg0, %arg2 : i32, i32
  }
  func.func @transform_1(%arg0: i32, %arg1: i32, %arg2: i32) -> (i32, i32) {
    %c0_i32 = arith.constant 0 : i32
    return %arg2, %arg1 : i32, i32
  }
  func.func @transform_2(%arg0: i32, %arg1: i32, %arg2: i32) -> (i32, i32) {
    %c0_i32 = arith.constant 0 : i32
    %c0_i32_0 = arith.constant 0 : i32
    return %c0_i32, %arg1 : i32, i32
  }
  func.func @transform_3(%arg0: i32, %arg1: i32, %arg2: i32) -> (i32, i32) {
    %c0_i32 = arith.constant 0 : i32
    return %arg0, %arg1 : i32, i32
  }
}

module attributes {stable_mosaic.version = 11 : i64} {
  func.func @_maxpool_kernel(%arg0: i32, %arg1: memref<8x2x4x256xbf16, #tpu.memory_space<vmem>>, %arg2: memref<8x4x128xbf16, #tpu.memory_space<vmem>>) attributes {dimension_semantics = [#tpu.dimension_semantics<parallel>], iteration_bounds = array<i64: 1>, scalar_prefetch = 0 : i64, scratch_operands = 0 : i64, tpu.core_type = #tpu.core_type<tc>, window_params = [{transform_indices = @transform_0, window_bounds = array<i64: 8, 2, 4, 256>}, {transform_indices = @transform_1, window_bounds = array<i64: 8, 4, 128>}]} {
    %c0 = arith.constant 0 : index
    %c0_0 = arith.constant 0 : index
    %c0_1 = arith.constant 0 : index
    %c0_2 = arith.constant 0 : index
    %0 = vector.load %arg1[%c0, %c0_0, %c0_1, %c0_2] : memref<8x2x4x256xbf16, #tpu.memory_space<vmem>>, vector<8x2x4x256xbf16>
    %1 = vector.extract_strided_slice %0 {offsets = [0, 0, 0, 0], sizes = [8, 1, 4, 128], strides = [1, 1, 1, 1]} : vector<8x2x4x256xbf16> to vector<8x1x4x128xbf16>
    %2 = vector.shape_cast %1 : vector<8x1x4x128xbf16> to vector<8x4x128xbf16>
    %3 = vector.extract_strided_slice %0 {offsets = [0, 0, 0, 128], sizes = [8, 1, 4, 128], strides = [1, 1, 1, 1]} : vector<8x2x4x256xbf16> to vector<8x1x4x128xbf16>
    %4 = vector.shape_cast %3 : vector<8x1x4x128xbf16> to vector<8x4x128xbf16>
    %5 = arith.maximumf %2, %4 : vector<8x4x128xbf16>
    %6 = vector.extract_strided_slice %0 {offsets = [0, 1, 0, 0], sizes = [8, 1, 4, 128], strides = [1, 1, 1, 1]} : vector<8x2x4x256xbf16> to vector<8x1x4x128xbf16>
    %7 = vector.shape_cast %6 : vector<8x1x4x128xbf16> to vector<8x4x128xbf16>
    %8 = vector.extract_strided_slice %0 {offsets = [0, 1, 0, 128], sizes = [8, 1, 4, 128], strides = [1, 1, 1, 1]} : vector<8x2x4x256xbf16> to vector<8x1x4x128xbf16>
    %9 = vector.shape_cast %8 : vector<8x1x4x128xbf16> to vector<8x4x128xbf16>
    %10 = arith.maximumf %7, %9 : vector<8x4x128xbf16>
    %11 = arith.maximumf %5, %10 : vector<8x4x128xbf16>
    %c0_3 = arith.constant 0 : index
    %c0_4 = arith.constant 0 : index
    %c0_5 = arith.constant 0 : index
    %12 = vector.load %arg2[%c0_3, %c0_4, %c0_5] : memref<8x4x128xbf16, #tpu.memory_space<vmem>>, vector<8x4x128xbf16>
    tpu.vector_store %arg2[%c0_3, %c0_4, %c0_5], %11 {strides = array<i32>} : memref<8x4x128xbf16, #tpu.memory_space<vmem>>, vector<8x4x128xbf16>,
    return
  }
  func.func @transform_0(%arg0: i32) -> (i32, i32, i32, i32) {
    %c0_i32 = arith.constant 0 : i32
    %c0_i32_0 = arith.constant 0 : i32
    %c0_i32_1 = arith.constant 0 : i32
    %c0_i32_2 = arith.constant 0 : i32
    return %arg0, %c0_i32, %c0_i32_0, %c0_i32_1 : i32, i32, i32, i32
  }
  func.func @transform_1(%arg0: i32) -> (i32, i32, i32) {
    %c0_i32 = arith.constant 0 : i32
    %c0_i32_0 = arith.constant 0 : i32
    %c0_i32_1 = arith.constant 0 : i32
    return %arg0, %c0_i32, %c0_i32_0 : i32, i32, i32
  }
}

module attributes {stable_mosaic.version = 11 : i64} {
  func.func @_matmul_bias_kernel(%arg0: i32, %arg1: i32, %arg2: i32, %arg3: memref<32x128xbf16, #tpu.memory_space<vmem>>, %arg4: memref<128x256xbf16, #tpu.memory_space<vmem>>, %arg5: memref<1x256xf32, #tpu.memory_space<vmem>>, %arg6: memref<32x256xbf16, #tpu.memory_space<vmem>>, %arg7: memref<32x256xf32, #tpu.memory_space<vmem>>) attributes {dimension_semantics = [#tpu.dimension_semantics<parallel>, #tpu.dimension_semantics<parallel>, #tpu.dimension_semantics<arbitrary>], iteration_bounds = array<i64: 1, 1, 25>, scalar_prefetch = 0 : i64, scratch_operands = 1 : i64, tpu.core_type = #tpu.core_type<tc>, window_params = [{transform_indices = @transform_0, window_bounds = array<i64: 32, 128>}, {transform_indices = @transform_1, window_bounds = array<i64: 128, 256>}, {transform_indices = @transform_2, window_bounds = array<i64: 1, 256>}, {transform_indices = @transform_3, window_bounds = array<i64: 32, 256>}]} {
    %c0_i32 = arith.constant 0 : i32
    %0 = arith.cmpi eq, %arg2, %c0_i32 : i32
    %1 = arith.extui %0 : i1 to i32
    %c0_i32_0 = arith.constant 0 : i32
    %2 = arith.cmpi ne, %1, %c0_i32_0 : i32
    scf.if %2 {
      %cst_9 = arith.constant 0.000000e+00 : f32
      %12 = vector.broadcast %cst_9 : f32 to vector<32x256xf32>
      %c0_10 = arith.constant 0 : index
      %c0_11 = arith.constant 0 : index
      %13 = vector.load %arg7[%c0_10, %c0_11] : memref<32x256xf32, #tpu.memory_space<vmem>>, vector<32x256xf32>
      tpu.vector_store %arg7[%c0_10, %c0_11], %12 {strides = array<i32>} : memref<32x256xf32, #tpu.memory_space<vmem>>, vector<32x256xf32>,
    } else {
    }
    %c0 = arith.constant 0 : index
    %c0_1 = arith.constant 0 : index
    %3 = vector.load %arg7[%c0, %c0_1] : memref<32x256xf32, #tpu.memory_space<vmem>>, vector<32x256xf32>
    %c0_2 = arith.constant 0 : index
    %c0_3 = arith.constant 0 : index
    %4 = vector.load %arg3[%c0_2, %c0_3] : memref<32x128xbf16, #tpu.memory_space<vmem>>, vector<32x128xbf16>
    %c0_4 = arith.constant 0 : index
    %c0_5 = arith.constant 0 : index
    %5 = vector.load %arg4[%c0_4, %c0_5] : memref<128x256xbf16, #tpu.memory_space<vmem>>, vector<128x256xbf16>
    %cst = arith.constant dense<0.000000e+00> : vector<32x256xf32>
    %6 = tpu.matmul %4, %5, %cst {dimension_numbers = #tpu.dot_dimension_numbers<[1], [0], [0], [1], [0, 0, 1, 1], [], []>} : vector<32x128xbf16>, vector<128x256xbf16>, vector<32x256xf32> -> vector<32x256xf32>
    %7 = arith.addf %3, %6 : vector<32x256xf32>
    %c0_6 = arith.constant 0 : index
    %c0_7 = arith.constant 0 : index
    %8 = vector.load %arg7[%c0_6, %c0_7] : memref<32x256xf32, #tpu.memory_space<vmem>>, vector<32x256xf32>
    tpu.vector_store %arg7[%c0_6, %c0_7], %7 {strides = array<i32>} : memref<32x256xf32, #tpu.memory_space<vmem>>, vector<32x256xf32>,
    %c24_i32 = arith.constant 24 : i32
    %9 = arith.cmpi eq, %arg2, %c24_i32 : i32
    %10 = arith.extui %9 : i1 to i32
    %c0_i32_8 = arith.constant 0 : i32
    %11 = arith.cmpi ne, %10, %c0_i32_8 : i32
    scf.if %11 {
      %c0_9 = arith.constant 0 : index
      %c0_10 = arith.constant 0 : index
      %12 = vector.load %arg7[%c0_9, %c0_10] : memref<32x256xf32, #tpu.memory_space<vmem>>, vector<32x256xf32>
      %c0_11 = arith.constant 0 : index
      %c0_12 = arith.constant 0 : index
      %13 = vector.load %arg5[%c0_11, %c0_12] : memref<1x256xf32, #tpu.memory_space<vmem>>, vector<1x256xf32>
      %14 = vector.broadcast %13 : vector<1x256xf32> to vector<32x256xf32>
      %15 = arith.addf %12, %14 : vector<32x256xf32>
      %cst_13 = arith.constant 0.000000e+00 : f32
      %16 = vector.broadcast %cst_13 : f32 to vector<32x256xf32>
      %17 = arith.maximumf %15, %16 : vector<32x256xf32>
      %18 = arith.truncf %17 : vector<32x256xf32> to vector<32x256xbf16>
      %c0_14 = arith.constant 0 : index
      %c0_15 = arith.constant 0 : index
      %19 = vector.load %arg6[%c0_14, %c0_15] : memref<32x256xbf16, #tpu.memory_space<vmem>>, vector<32x256xbf16>
      tpu.vector_store %arg6[%c0_14, %c0_15], %18 {strides = array<i32>} : memref<32x256xbf16, #tpu.memory_space<vmem>>, vector<32x256xbf16>,
    } else {
    }
    return
  }
  func.func @transform_0(%arg0: i32, %arg1: i32, %arg2: i32) -> (i32, i32) {
    %c0_i32 = arith.constant 0 : i32
    return %arg0, %arg2 : i32, i32
  }
  func.func @transform_1(%arg0: i32, %arg1: i32, %arg2: i32) -> (i32, i32) {
    %c0_i32 = arith.constant 0 : i32
    return %arg2, %arg1 : i32, i32
  }
  func.func @transform_2(%arg0: i32, %arg1: i32, %arg2: i32) -> (i32, i32) {
    %c0_i32 = arith.constant 0 : i32
    %c0_i32_0 = arith.constant 0 : i32
    return %c0_i32, %arg1 : i32, i32
  }
  func.func @transform_3(%arg0: i32, %arg1: i32, %arg2: i32) -> (i32, i32) {
    %c0_i32 = arith.constant 0 : i32
    return %arg0, %arg1 : i32, i32
  }
}

module attributes {stable_mosaic.version = 11 : i64} {
  func.func @_maxpool_kernel(%arg0: i32, %arg1: memref<4x2x2x512xbf16, #tpu.memory_space<vmem>>, %arg2: memref<4x2x256xbf16, #tpu.memory_space<vmem>>) attributes {dimension_semantics = [#tpu.dimension_semantics<parallel>], iteration_bounds = array<i64: 1>, scalar_prefetch = 0 : i64, scratch_operands = 0 : i64, tpu.core_type = #tpu.core_type<tc>, window_params = [{transform_indices = @transform_0, window_bounds = array<i64: 4, 2, 2, 512>}, {transform_indices = @transform_1, window_bounds = array<i64: 4, 2, 256>}]} {
    %c0 = arith.constant 0 : index
    %c0_0 = arith.constant 0 : index
    %c0_1 = arith.constant 0 : index
    %c0_2 = arith.constant 0 : index
    %0 = vector.load %arg1[%c0, %c0_0, %c0_1, %c0_2] : memref<4x2x2x512xbf16, #tpu.memory_space<vmem>>, vector<4x2x2x512xbf16>
    %1 = vector.extract_strided_slice %0 {offsets = [0, 0, 0, 0], sizes = [4, 1, 2, 256], strides = [1, 1, 1, 1]} : vector<4x2x2x512xbf16> to vector<4x1x2x256xbf16>
    %2 = vector.shape_cast %1 : vector<4x1x2x256xbf16> to vector<4x2x256xbf16>
    %3 = vector.extract_strided_slice %0 {offsets = [0, 0, 0, 256], sizes = [4, 1, 2, 256], strides = [1, 1, 1, 1]} : vector<4x2x2x512xbf16> to vector<4x1x2x256xbf16>
    %4 = vector.shape_cast %3 : vector<4x1x2x256xbf16> to vector<4x2x256xbf16>
    %5 = arith.maximumf %2, %4 : vector<4x2x256xbf16>
    %6 = vector.extract_strided_slice %0 {offsets = [0, 1, 0, 0], sizes = [4, 1, 2, 256], strides = [1, 1, 1, 1]} : vector<4x2x2x512xbf16> to vector<4x1x2x256xbf16>
    %7 = vector.shape_cast %6 : vector<4x1x2x256xbf16> to vector<4x2x256xbf16>
    %8 = vector.extract_strided_slice %0 {offsets = [0, 1, 0, 256], sizes = [4, 1, 2, 256], strides = [1, 1, 1, 1]} : vector<4x2x2x512xbf16> to vector<4x1x2x256xbf16>
    %9 = vector.shape_cast %8 : vector<4x1x2x256xbf16> to vector<4x2x256xbf16>
    %10 = arith.maximumf %7, %9 : vector<4x2x256xbf16>
    %11 = arith.maximumf %5, %10 : vector<4x2x256xbf16>
    %c0_3 = arith.constant 0 : index
    %c0_4 = arith.constant 0 : index
    %c0_5 = arith.constant 0 : index
    %12 = vector.load %arg2[%c0_3, %c0_4, %c0_5] : memref<4x2x256xbf16, #tpu.memory_space<vmem>>, vector<4x2x256xbf16>
    tpu.vector_store %arg2[%c0_3, %c0_4, %c0_5], %11 {strides = array<i32>} : memref<4x2x256xbf16, #tpu.memory_space<vmem>>, vector<4x2x256xbf16>,
    return
  }
  func.func @transform_0(%arg0: i32) -> (i32, i32, i32, i32) {
    %c0_i32 = arith.constant 0 : i32
    %c0_i32_0 = arith.constant 0 : i32
    %c0_i32_1 = arith.constant 0 : i32
    %c0_i32_2 = arith.constant 0 : i32
    return %arg0, %c0_i32, %c0_i32_0, %c0_i32_1 : i32, i32, i32, i32
  }
  func.func @transform_1(%arg0: i32) -> (i32, i32, i32) {
    %c0_i32 = arith.constant 0 : i32
    %c0_i32_0 = arith.constant 0 : i32
    %c0_i32_1 = arith.constant 0 : i32
    return %arg0, %c0_i32, %c0_i32_0 : i32, i32, i32
  }
}

module attributes {stable_mosaic.version = 11 : i64} {
  func.func @_matmul_bias_kernel(%arg0: i32, %arg1: i32, %arg2: i32, %arg3: memref<8x384xbf16, #tpu.memory_space<vmem>>, %arg4: memref<384x128xbf16, #tpu.memory_space<vmem>>, %arg5: memref<1x128xf32, #tpu.memory_space<vmem>>, %arg6: memref<8x128xbf16, #tpu.memory_space<vmem>>, %arg7: memref<8x128xf32, #tpu.memory_space<vmem>>) attributes {dimension_semantics = [#tpu.dimension_semantics<parallel>, #tpu.dimension_semantics<parallel>, #tpu.dimension_semantics<arbitrary>], iteration_bounds = array<i64: 1, 3, 6>, scalar_prefetch = 0 : i64, scratch_operands = 1 : i64, tpu.core_type = #tpu.core_type<tc>, window_params = [{transform_indices = @transform_0, window_bounds = array<i64: 8, 384>}, {transform_indices = @transform_1, window_bounds = array<i64: 384, 128>}, {transform_indices = @transform_2, window_bounds = array<i64: 1, 128>}, {transform_indices = @transform_3, window_bounds = array<i64: 8, 128>}]} {
    %c0_i32 = arith.constant 0 : i32
    %0 = arith.cmpi eq, %arg2, %c0_i32 : i32
    %1 = arith.extui %0 : i1 to i32
    %c0_i32_0 = arith.constant 0 : i32
    %2 = arith.cmpi ne, %1, %c0_i32_0 : i32
    scf.if %2 {
      %cst_9 = arith.constant 0.000000e+00 : f32
      %12 = vector.broadcast %cst_9 : f32 to vector<8x128xf32>
      %c0_10 = arith.constant 0 : index
      %c0_11 = arith.constant 0 : index
      %13 = vector.load %arg7[%c0_10, %c0_11] : memref<8x128xf32, #tpu.memory_space<vmem>>, vector<8x128xf32>
      tpu.vector_store %arg7[%c0_10, %c0_11], %12 {strides = array<i32>} : memref<8x128xf32, #tpu.memory_space<vmem>>, vector<8x128xf32>,
    } else {
    }
    %c0 = arith.constant 0 : index
    %c0_1 = arith.constant 0 : index
    %3 = vector.load %arg7[%c0, %c0_1] : memref<8x128xf32, #tpu.memory_space<vmem>>, vector<8x128xf32>
    %c0_2 = arith.constant 0 : index
    %c0_3 = arith.constant 0 : index
    %4 = vector.load %arg3[%c0_2, %c0_3] : memref<8x384xbf16, #tpu.memory_space<vmem>>, vector<8x384xbf16>
    %c0_4 = arith.constant 0 : index
    %c0_5 = arith.constant 0 : index
    %5 = vector.load %arg4[%c0_4, %c0_5] : memref<384x128xbf16, #tpu.memory_space<vmem>>, vector<384x128xbf16>
    %cst = arith.constant dense<0.000000e+00> : vector<8x128xf32>
    %6 = tpu.matmul %4, %5, %cst {dimension_numbers = #tpu.dot_dimension_numbers<[1], [0], [0], [1], [0, 0, 1, 1], [], []>} : vector<8x384xbf16>, vector<384x128xbf16>, vector<8x128xf32> -> vector<8x128xf32>
    %7 = arith.addf %3, %6 : vector<8x128xf32>
    %c0_6 = arith.constant 0 : index
    %c0_7 = arith.constant 0 : index
    %8 = vector.load %arg7[%c0_6, %c0_7] : memref<8x128xf32, #tpu.memory_space<vmem>>, vector<8x128xf32>
    tpu.vector_store %arg7[%c0_6, %c0_7], %7 {strides = array<i32>} : memref<8x128xf32, #tpu.memory_space<vmem>>, vector<8x128xf32>,
    %c5_i32 = arith.constant 5 : i32
    %9 = arith.cmpi eq, %arg2, %c5_i32 : i32
    %10 = arith.extui %9 : i1 to i32
    %c0_i32_8 = arith.constant 0 : i32
    %11 = arith.cmpi ne, %10, %c0_i32_8 : i32
    scf.if %11 {
      %c0_9 = arith.constant 0 : index
      %c0_10 = arith.constant 0 : index
      %12 = vector.load %arg7[%c0_9, %c0_10] : memref<8x128xf32, #tpu.memory_space<vmem>>, vector<8x128xf32>
      %c0_11 = arith.constant 0 : index
      %c0_12 = arith.constant 0 : index
      %13 = vector.load %arg5[%c0_11, %c0_12] : memref<1x128xf32, #tpu.memory_space<vmem>>, vector<1x128xf32>
      %14 = vector.broadcast %13 : vector<1x128xf32> to vector<8x128xf32>
      %15 = arith.addf %12, %14 : vector<8x128xf32>
      %cst_13 = arith.constant 0.000000e+00 : f32
      %16 = vector.broadcast %cst_13 : f32 to vector<8x128xf32>
      %17 = arith.maximumf %15, %16 : vector<8x128xf32>
      %18 = arith.truncf %17 : vector<8x128xf32> to vector<8x128xbf16>
      %c0_14 = arith.constant 0 : index
      %c0_15 = arith.constant 0 : index
      %19 = vector.load %arg6[%c0_14, %c0_15] : memref<8x128xbf16, #tpu.memory_space<vmem>>, vector<8x128xbf16>
      tpu.vector_store %arg6[%c0_14, %c0_15], %18 {strides = array<i32>} : memref<8x128xbf16, #tpu.memory_space<vmem>>, vector<8x128xbf16>,
    } else {
    }
    return
  }
  func.func @transform_0(%arg0: i32, %arg1: i32, %arg2: i32) -> (i32, i32) {
    %c0_i32 = arith.constant 0 : i32
    return %arg0, %arg2 : i32, i32
  }
  func.func @transform_1(%arg0: i32, %arg1: i32, %arg2: i32) -> (i32, i32) {
    %c0_i32 = arith.constant 0 : i32
    return %arg2, %arg1 : i32, i32
  }
  func.func @transform_2(%arg0: i32, %arg1: i32, %arg2: i32) -> (i32, i32) {
    %c0_i32 = arith.constant 0 : i32
    %c0_i32_0 = arith.constant 0 : i32
    return %c0_i32, %arg1 : i32, i32
  }
  func.func @transform_3(%arg0: i32, %arg1: i32, %arg2: i32) -> (i32, i32) {
    %c0_i32 = arith.constant 0 : i32
    return %arg0, %arg1 : i32, i32
  }
}

module attributes {stable_mosaic.version = 11 : i64} {
  func.func @_matmul_bias_kernel(%arg0: i32, %arg1: i32, %arg2: i32, %arg3: memref<8x384xbf16, #tpu.memory_space<vmem>>, %arg4: memref<384x256xbf16, #tpu.memory_space<vmem>>, %arg5: memref<1x256xf32, #tpu.memory_space<vmem>>, %arg6: memref<8x256xbf16, #tpu.memory_space<vmem>>, %arg7: memref<8x256xf32, #tpu.memory_space<vmem>>) attributes {dimension_semantics = [#tpu.dimension_semantics<parallel>, #tpu.dimension_semantics<parallel>, #tpu.dimension_semantics<arbitrary>], iteration_bounds = array<i64: 1, 1, 9>, scalar_prefetch = 0 : i64, scratch_operands = 1 : i64, tpu.core_type = #tpu.core_type<tc>, window_params = [{transform_indices = @transform_0, window_bounds = array<i64: 8, 384>}, {transform_indices = @transform_1, window_bounds = array<i64: 384, 256>}, {transform_indices = @transform_2, window_bounds = array<i64: 1, 256>}, {transform_indices = @transform_3, window_bounds = array<i64: 8, 256>}]} {
    %c0_i32 = arith.constant 0 : i32
    %0 = arith.cmpi eq, %arg2, %c0_i32 : i32
    %1 = arith.extui %0 : i1 to i32
    %c0_i32_0 = arith.constant 0 : i32
    %2 = arith.cmpi ne, %1, %c0_i32_0 : i32
    scf.if %2 {
      %cst_9 = arith.constant 0.000000e+00 : f32
      %12 = vector.broadcast %cst_9 : f32 to vector<8x256xf32>
      %c0_10 = arith.constant 0 : index
      %c0_11 = arith.constant 0 : index
      %13 = vector.load %arg7[%c0_10, %c0_11] : memref<8x256xf32, #tpu.memory_space<vmem>>, vector<8x256xf32>
      tpu.vector_store %arg7[%c0_10, %c0_11], %12 {strides = array<i32>} : memref<8x256xf32, #tpu.memory_space<vmem>>, vector<8x256xf32>,
    } else {
    }
    %c0 = arith.constant 0 : index
    %c0_1 = arith.constant 0 : index
    %3 = vector.load %arg7[%c0, %c0_1] : memref<8x256xf32, #tpu.memory_space<vmem>>, vector<8x256xf32>
    %c0_2 = arith.constant 0 : index
    %c0_3 = arith.constant 0 : index
    %4 = vector.load %arg3[%c0_2, %c0_3] : memref<8x384xbf16, #tpu.memory_space<vmem>>, vector<8x384xbf16>
    %c0_4 = arith.constant 0 : index
    %c0_5 = arith.constant 0 : index
    %5 = vector.load %arg4[%c0_4, %c0_5] : memref<384x256xbf16, #tpu.memory_space<vmem>>, vector<384x256xbf16>
    %cst = arith.constant dense<0.000000e+00> : vector<8x256xf32>
    %6 = tpu.matmul %4, %5, %cst {dimension_numbers = #tpu.dot_dimension_numbers<[1], [0], [0], [1], [0, 0, 1, 1], [], []>} : vector<8x384xbf16>, vector<384x256xbf16>, vector<8x256xf32> -> vector<8x256xf32>
    %7 = arith.addf %3, %6 : vector<8x256xf32>
    %c0_6 = arith.constant 0 : index
    %c0_7 = arith.constant 0 : index
    %8 = vector.load %arg7[%c0_6, %c0_7] : memref<8x256xf32, #tpu.memory_space<vmem>>, vector<8x256xf32>
    tpu.vector_store %arg7[%c0_6, %c0_7], %7 {strides = array<i32>} : memref<8x256xf32, #tpu.memory_space<vmem>>, vector<8x256xf32>,
    %c8_i32 = arith.constant 8 : i32
    %9 = arith.cmpi eq, %arg2, %c8_i32 : i32
    %10 = arith.extui %9 : i1 to i32
    %c0_i32_8 = arith.constant 0 : i32
    %11 = arith.cmpi ne, %10, %c0_i32_8 : i32
    scf.if %11 {
      %c0_9 = arith.constant 0 : index
      %c0_10 = arith.constant 0 : index
      %12 = vector.load %arg7[%c0_9, %c0_10] : memref<8x256xf32, #tpu.memory_space<vmem>>, vector<8x256xf32>
      %c0_11 = arith.constant 0 : index
      %c0_12 = arith.constant 0 : index
      %13 = vector.load %arg5[%c0_11, %c0_12] : memref<1x256xf32, #tpu.memory_space<vmem>>, vector<1x256xf32>
      %14 = vector.broadcast %13 : vector<1x256xf32> to vector<8x256xf32>
      %15 = arith.addf %12, %14 : vector<8x256xf32>
      %cst_13 = arith.constant 0.000000e+00 : f32
      %16 = vector.broadcast %cst_13 : f32 to vector<8x256xf32>
      %17 = arith.maximumf %15, %16 : vector<8x256xf32>
      %18 = arith.truncf %17 : vector<8x256xf32> to vector<8x256xbf16>
      %c0_14 = arith.constant 0 : index
      %c0_15 = arith.constant 0 : index
      %19 = vector.load %arg6[%c0_14, %c0_15] : memref<8x256xbf16, #tpu.memory_space<vmem>>, vector<8x256xbf16>
      tpu.vector_store %arg6[%c0_14, %c0_15], %18 {strides = array<i32>} : memref<8x256xbf16, #tpu.memory_space<vmem>>, vector<8x256xbf16>,
    } else {
    }
    return
  }
  func.func @transform_0(%arg0: i32, %arg1: i32, %arg2: i32) -> (i32, i32) {
    %c0_i32 = arith.constant 0 : i32
    return %arg0, %arg2 : i32, i32
  }
  func.func @transform_1(%arg0: i32, %arg1: i32, %arg2: i32) -> (i32, i32) {
    %c0_i32 = arith.constant 0 : i32
    return %arg2, %arg1 : i32, i32
  }
  func.func @transform_2(%arg0: i32, %arg1: i32, %arg2: i32) -> (i32, i32) {
    %c0_i32 = arith.constant 0 : i32
    %c0_i32_0 = arith.constant 0 : i32
    return %c0_i32, %arg1 : i32, i32
  }
  func.func @transform_3(%arg0: i32, %arg1: i32, %arg2: i32) -> (i32, i32) {
    %c0_i32 = arith.constant 0 : i32
    return %arg0, %arg1 : i32, i32
  }
}

module attributes {stable_mosaic.version = 11 : i64} {
  func.func @_matmul_bias_kernel(%arg0: i32, %arg1: i32, %arg2: i32, %arg3: memref<8x384xbf16, #tpu.memory_space<vmem>>, %arg4: memref<384x256xbf16, #tpu.memory_space<vmem>>, %arg5: memref<1x256xf32, #tpu.memory_space<vmem>>, %arg6: memref<8x256xbf16, #tpu.memory_space<vmem>>, %arg7: memref<8x256xf32, #tpu.memory_space<vmem>>) attributes {dimension_semantics = [#tpu.dimension_semantics<parallel>, #tpu.dimension_semantics<parallel>, #tpu.dimension_semantics<arbitrary>], iteration_bounds = array<i64: 1, 1, 6>, scalar_prefetch = 0 : i64, scratch_operands = 1 : i64, tpu.core_type = #tpu.core_type<tc>, window_params = [{transform_indices = @transform_0, window_bounds = array<i64: 8, 384>}, {transform_indices = @transform_1, window_bounds = array<i64: 384, 256>}, {transform_indices = @transform_2, window_bounds = array<i64: 1, 256>}, {transform_indices = @transform_3, window_bounds = array<i64: 8, 256>}]} {
    %c0_i32 = arith.constant 0 : i32
    %0 = arith.cmpi eq, %arg2, %c0_i32 : i32
    %1 = arith.extui %0 : i1 to i32
    %c0_i32_0 = arith.constant 0 : i32
    %2 = arith.cmpi ne, %1, %c0_i32_0 : i32
    scf.if %2 {
      %cst_9 = arith.constant 0.000000e+00 : f32
      %12 = vector.broadcast %cst_9 : f32 to vector<8x256xf32>
      %c0_10 = arith.constant 0 : index
      %c0_11 = arith.constant 0 : index
      %13 = vector.load %arg7[%c0_10, %c0_11] : memref<8x256xf32, #tpu.memory_space<vmem>>, vector<8x256xf32>
      tpu.vector_store %arg7[%c0_10, %c0_11], %12 {strides = array<i32>} : memref<8x256xf32, #tpu.memory_space<vmem>>, vector<8x256xf32>,
    } else {
    }
    %c0 = arith.constant 0 : index
    %c0_1 = arith.constant 0 : index
    %3 = vector.load %arg7[%c0, %c0_1] : memref<8x256xf32, #tpu.memory_space<vmem>>, vector<8x256xf32>
    %c0_2 = arith.constant 0 : index
    %c0_3 = arith.constant 0 : index
    %4 = vector.load %arg3[%c0_2, %c0_3] : memref<8x384xbf16, #tpu.memory_space<vmem>>, vector<8x384xbf16>
    %c0_4 = arith.constant 0 : index
    %c0_5 = arith.constant 0 : index
    %5 = vector.load %arg4[%c0_4, %c0_5] : memref<384x256xbf16, #tpu.memory_space<vmem>>, vector<384x256xbf16>
    %cst = arith.constant dense<0.000000e+00> : vector<8x256xf32>
    %6 = tpu.matmul %4, %5, %cst {dimension_numbers = #tpu.dot_dimension_numbers<[1], [0], [0], [1], [0, 0, 1, 1], [], []>} : vector<8x384xbf16>, vector<384x256xbf16>, vector<8x256xf32> -> vector<8x256xf32>
    %7 = arith.addf %3, %6 : vector<8x256xf32>
    %c0_6 = arith.constant 0 : index
    %c0_7 = arith.constant 0 : index
    %8 = vector.load %arg7[%c0_6, %c0_7] : memref<8x256xf32, #tpu.memory_space<vmem>>, vector<8x256xf32>
    tpu.vector_store %arg7[%c0_6, %c0_7], %7 {strides = array<i32>} : memref<8x256xf32, #tpu.memory_space<vmem>>, vector<8x256xf32>,
    %c5_i32 = arith.constant 5 : i32
    %9 = arith.cmpi eq, %arg2, %c5_i32 : i32
    %10 = arith.extui %9 : i1 to i32
    %c0_i32_8 = arith.constant 0 : i32
    %11 = arith.cmpi ne, %10, %c0_i32_8 : i32
    scf.if %11 {
      %c0_9 = arith.constant 0 : index
      %c0_10 = arith.constant 0 : index
      %12 = vector.load %arg7[%c0_9, %c0_10] : memref<8x256xf32, #tpu.memory_space<vmem>>, vector<8x256xf32>
      %c0_11 = arith.constant 0 : index
      %c0_12 = arith.constant 0 : index
      %13 = vector.load %arg5[%c0_11, %c0_12] : memref<1x256xf32, #tpu.memory_space<vmem>>, vector<1x256xf32>
      %14 = vector.broadcast %13 : vector<1x256xf32> to vector<8x256xf32>
      %15 = arith.addf %12, %14 : vector<8x256xf32>
      %cst_13 = arith.constant 0.000000e+00 : f32
      %16 = vector.broadcast %cst_13 : f32 to vector<8x256xf32>
      %17 = arith.maximumf %15, %16 : vector<8x256xf32>
      %18 = arith.truncf %17 : vector<8x256xf32> to vector<8x256xbf16>
      %c0_14 = arith.constant 0 : index
      %c0_15 = arith.constant 0 : index
      %19 = vector.load %arg6[%c0_14, %c0_15] : memref<8x256xbf16, #tpu.memory_space<vmem>>, vector<8x256xbf16>
      tpu.vector_store %arg6[%c0_14, %c0_15], %18 {strides = array<i32>} : memref<8x256xbf16, #tpu.memory_space<vmem>>, vector<8x256xbf16>,
    } else {
    }
    return
  }
  func.func @transform_0(%arg0: i32, %arg1: i32, %arg2: i32) -> (i32, i32) {
    %c0_i32 = arith.constant 0 : i32
    return %arg0, %arg2 : i32, i32
  }
  func.func @transform_1(%arg0: i32, %arg1: i32, %arg2: i32) -> (i32, i32) {
    %c0_i32 = arith.constant 0 : i32
    return %arg2, %arg1 : i32, i32
  }
  func.func @transform_2(%arg0: i32, %arg1: i32, %arg2: i32) -> (i32, i32) {
    %c0_i32 = arith.constant 0 : i32
    %c0_i32_0 = arith.constant 0 : i32
    return %c0_i32, %arg1 : i32, i32
  }
  func.func @transform_3(%arg0: i32, %arg1: i32, %arg2: i32) -> (i32, i32) {
    %c0_i32 = arith.constant 0 : i32
    return %arg0, %arg1 : i32, i32
  }
}

module attributes {stable_mosaic.version = 11 : i64} {
  func.func @_maxpool_kernel(%arg0: i32, %arg1: memref<2x2x1x512xbf16, #tpu.memory_space<vmem>>, %arg2: memref<2x1x256xbf16, #tpu.memory_space<vmem>>) attributes {dimension_semantics = [#tpu.dimension_semantics<parallel>], iteration_bounds = array<i64: 1>, scalar_prefetch = 0 : i64, scratch_operands = 0 : i64, tpu.core_type = #tpu.core_type<tc>, window_params = [{transform_indices = @transform_0, window_bounds = array<i64: 2, 2, 1, 512>}, {transform_indices = @transform_1, window_bounds = array<i64: 2, 1, 256>}]} {
    %c0 = arith.constant 0 : index
    %c0_0 = arith.constant 0 : index
    %c0_1 = arith.constant 0 : index
    %c0_2 = arith.constant 0 : index
    %0 = vector.load %arg1[%c0, %c0_0, %c0_1, %c0_2] : memref<2x2x1x512xbf16, #tpu.memory_space<vmem>>, vector<2x2x1x512xbf16>
    %1 = vector.extract_strided_slice %0 {offsets = [0, 0, 0, 0], sizes = [2, 1, 1, 256], strides = [1, 1, 1, 1]} : vector<2x2x1x512xbf16> to vector<2x1x1x256xbf16>
    %2 = vector.shape_cast %1 : vector<2x1x1x256xbf16> to vector<2x1x256xbf16>
    %3 = vector.extract_strided_slice %0 {offsets = [0, 0, 0, 256], sizes = [2, 1, 1, 256], strides = [1, 1, 1, 1]} : vector<2x2x1x512xbf16> to vector<2x1x1x256xbf16>
    %4 = vector.shape_cast %3 : vector<2x1x1x256xbf16> to vector<2x1x256xbf16>
    %5 = arith.maximumf %2, %4 : vector<2x1x256xbf16>
    %6 = vector.extract_strided_slice %0 {offsets = [0, 1, 0, 0], sizes = [2, 1, 1, 256], strides = [1, 1, 1, 1]} : vector<2x2x1x512xbf16> to vector<2x1x1x256xbf16>
    %7 = vector.shape_cast %6 : vector<2x1x1x256xbf16> to vector<2x1x256xbf16>
    %8 = vector.extract_strided_slice %0 {offsets = [0, 1, 0, 256], sizes = [2, 1, 1, 256], strides = [1, 1, 1, 1]} : vector<2x2x1x512xbf16> to vector<2x1x1x256xbf16>
    %9 = vector.shape_cast %8 : vector<2x1x1x256xbf16> to vector<2x1x256xbf16>
    %10 = arith.maximumf %7, %9 : vector<2x1x256xbf16>
    %11 = arith.maximumf %5, %10 : vector<2x1x256xbf16>
    %c0_3 = arith.constant 0 : index
    %c0_4 = arith.constant 0 : index
    %c0_5 = arith.constant 0 : index
    %12 = vector.load %arg2[%c0_3, %c0_4, %c0_5] : memref<2x1x256xbf16, #tpu.memory_space<vmem>>, vector<2x1x256xbf16>
    tpu.vector_store %arg2[%c0_3, %c0_4, %c0_5], %11 {strides = array<i32>} : memref<2x1x256xbf16, #tpu.memory_space<vmem>>, vector<2x1x256xbf16>,
    return
  }
  func.func @transform_0(%arg0: i32) -> (i32, i32, i32, i32) {
    %c0_i32 = arith.constant 0 : i32
    %c0_i32_0 = arith.constant 0 : i32
    %c0_i32_1 = arith.constant 0 : i32
    %c0_i32_2 = arith.constant 0 : i32
    return %arg0, %c0_i32, %c0_i32_0, %c0_i32_1 : i32, i32, i32, i32
  }
  func.func @transform_1(%arg0: i32) -> (i32, i32, i32) {
    %c0_i32 = arith.constant 0 : i32
    %c0_i32_0 = arith.constant 0 : i32
    %c0_i32_1 = arith.constant 0 : i32
    return %arg0, %c0_i32, %c0_i32_0 : i32, i32, i32
  }
}

module attributes {stable_mosaic.version = 11 : i64} {
  func.func @_matmul_bias_kernel(%arg0: i32, %arg1: i32, %arg2: i32, %arg3: memref<8x256xbf16, #tpu.memory_space<vmem>>, %arg4: memref<256x128xbf16, #tpu.memory_space<vmem>>, %arg5: memref<1x128xf32, #tpu.memory_space<vmem>>, %arg6: memref<8x128xf32, #tpu.memory_space<vmem>>, %arg7: memref<8x128xf32, #tpu.memory_space<vmem>>) attributes {dimension_semantics = [#tpu.dimension_semantics<parallel>, #tpu.dimension_semantics<parallel>, #tpu.dimension_semantics<arbitrary>], iteration_bounds = array<i64: 1, 1, 1>, scalar_prefetch = 0 : i64, scratch_operands = 1 : i64, tpu.core_type = #tpu.core_type<tc>, window_params = [{transform_indices = @transform_0, window_bounds = array<i64: 8, 256>}, {transform_indices = @transform_1, window_bounds = array<i64: 256, 128>}, {transform_indices = @transform_2, window_bounds = array<i64: 1, 128>}, {transform_indices = @transform_3, window_bounds = array<i64: 8, 128>}]} {
    %c0_i32 = arith.constant 0 : i32
    %0 = arith.cmpi eq, %arg2, %c0_i32 : i32
    %1 = arith.extui %0 : i1 to i32
    %c0_i32_0 = arith.constant 0 : i32
    %2 = arith.cmpi ne, %1, %c0_i32_0 : i32
    scf.if %2 {
      %cst_10 = arith.constant 0.000000e+00 : f32
      %12 = vector.broadcast %cst_10 : f32 to vector<8x128xf32>
      %c0_11 = arith.constant 0 : index
      %c0_12 = arith.constant 0 : index
      %13 = vector.load %arg7[%c0_11, %c0_12] : memref<8x128xf32, #tpu.memory_space<vmem>>, vector<8x128xf32>
      tpu.vector_store %arg7[%c0_11, %c0_12], %12 {strides = array<i32>} : memref<8x128xf32, #tpu.memory_space<vmem>>, vector<8x128xf32>,
    } else {
    }
    %c0 = arith.constant 0 : index
    %c0_1 = arith.constant 0 : index
    %3 = vector.load %arg7[%c0, %c0_1] : memref<8x128xf32, #tpu.memory_space<vmem>>, vector<8x128xf32>
    %c0_2 = arith.constant 0 : index
    %c0_3 = arith.constant 0 : index
    %4 = vector.load %arg3[%c0_2, %c0_3] : memref<8x256xbf16, #tpu.memory_space<vmem>>, vector<8x256xbf16>
    %c0_4 = arith.constant 0 : index
    %c0_5 = arith.constant 0 : index
    %5 = vector.load %arg4[%c0_4, %c0_5] : memref<256x128xbf16, #tpu.memory_space<vmem>>, vector<256x128xbf16>
    %cst = arith.constant dense<0.000000e+00> : vector<8x128xf32>
    %6 = tpu.matmul %4, %5, %cst {dimension_numbers = #tpu.dot_dimension_numbers<[1], [0], [0], [1], [0, 0, 1, 1], [], []>} : vector<8x256xbf16>, vector<256x128xbf16>, vector<8x128xf32> -> vector<8x128xf32>
    %7 = arith.addf %3, %6 : vector<8x128xf32>
    %c0_6 = arith.constant 0 : index
    %c0_7 = arith.constant 0 : index
    %8 = vector.load %arg7[%c0_6, %c0_7] : memref<8x128xf32, #tpu.memory_space<vmem>>, vector<8x128xf32>
    tpu.vector_store %arg7[%c0_6, %c0_7], %7 {strides = array<i32>} : memref<8x128xf32, #tpu.memory_space<vmem>>, vector<8x128xf32>,
    %c0_i32_8 = arith.constant 0 : i32
    %9 = arith.cmpi eq, %arg2, %c0_i32_8 : i32
    %10 = arith.extui %9 : i1 to i32
    %c0_i32_9 = arith.constant 0 : i32
    %11 = arith.cmpi ne, %10, %c0_i32_9 : i32
    scf.if %11 {
      %c0_10 = arith.constant 0 : index
      %c0_11 = arith.constant 0 : index
      %12 = vector.load %arg7[%c0_10, %c0_11] : memref<8x128xf32, #tpu.memory_space<vmem>>, vector<8x128xf32>
      %c0_12 = arith.constant 0 : index
      %c0_13 = arith.constant 0 : index
      %13 = vector.load %arg5[%c0_12, %c0_13] : memref<1x128xf32, #tpu.memory_space<vmem>>, vector<1x128xf32>
      %14 = vector.broadcast %13 : vector<1x128xf32> to vector<8x128xf32>
      %15 = arith.addf %12, %14 : vector<8x128xf32>
      %c0_14 = arith.constant 0 : index
      %c0_15 = arith.constant 0 : index
      %16 = vector.load %arg6[%c0_14, %c0_15] : memref<8x128xf32, #tpu.memory_space<vmem>>, vector<8x128xf32>
      tpu.vector_store %arg6[%c0_14, %c0_15], %15 {strides = array<i32>} : memref<8x128xf32, #tpu.memory_space<vmem>>, vector<8x128xf32>,
    } else {
    }
    return
  }
  func.func @transform_0(%arg0: i32, %arg1: i32, %arg2: i32) -> (i32, i32) {
    %c0_i32 = arith.constant 0 : i32
    return %arg0, %arg2 : i32, i32
  }
  func.func @transform_1(%arg0: i32, %arg1: i32, %arg2: i32) -> (i32, i32) {
    %c0_i32 = arith.constant 0 : i32
    return %arg2, %arg1 : i32, i32
  }
  func.func @transform_2(%arg0: i32, %arg1: i32, %arg2: i32) -> (i32, i32) {
    %c0_i32 = arith.constant 0 : i32
    %c0_i32_0 = arith.constant 0 : i32
    return %c0_i32, %arg1 : i32, i32
  }
  func.func @transform_3(%arg0: i32, %arg1: i32, %arg2: i32) -> (i32, i32) {
    %c0_i32 = arith.constant 0 : i32
    return %arg0, %arg1 : i32, i32
  }
}

</mosaic_0001>

<llo_original>
// kernel: alexnet_forward.10
$region0: #{alexnet_forward.10}
  #allocation0 [shape = 'u32[]', space=smem, size = 0x4, offset = 0x4, fixed_abs, tag = 'smem constant byte address 0x4 - core index']
  #allocation1 [shape = 'u32[144,128]{1,0:T(1,128)}', space=vmem, size = 0x12000, scoped, tag = 'internal scratch']
  %s0 = inlined_call_operand.vmem [shape: bf16[8,2,4,256], index: 0, kind: input, shape index: {}]
  %s1 = inlined_call_operand.vmem [shape: bf16[8,4,128], index: 1, kind: output, shape index: {}]
  %s2 = sld [smem:[#allocation0]]
  $region14: #{alexnet_forward.10} parent=0
    _
  %s4 = ssub.s32 1, %s2
  %s5 = scalar_select 0, %s4, %s2
  // Predicated region
  $region2: #{alexnet_forward.10} parent=0 // pred_check
    _
  $region3: #{alexnet_forward.10} parent=0 // pred_check_branch
    %7 = sbr.rel (0) target = $region5
  $region4: #{alexnet_forward.10} parent=0 // pred_region
    _
  $region5: #{alexnet_forward.10} parent=0 // pred_fallthru
    _
  %v8 = vld [vmem:[%s0] sm:$0xf]
  %v9 = vld [vmem:[%s0 + $0x4] sm:$0xf]
  %v10 = vld [vmem:[%s0 + $0x8] sm:$0xf]
  %v11 = vld [vmem:[%s0 + $0xc] sm:$0xf]
  %v12 = vld [vmem:[%s0 + $0x10] sm:$0xf]
  %v13 = vld [vmem:[%s0 + $0x14] sm:$0xf]
  %v14 = vld [vmem:[%s0 + $0x18] sm:$0xf]
  %v15 = vld [vmem:[%s0 + $0x1c] sm:$0xf]
  %v16 = vld [vmem:[%s0 + $0x20] sm:$0xf]
  %v17 = vld [vmem:[%s0 + $0x24] sm:$0xf]
  %v18 = vld [vmem:[%s0 + $0x28] sm:$0xf]
  %v19 = vld [vmem:[%s0 + $0x2c] sm:$0xf]
  %v20 = vld [vmem:[%s0 + $0x30] sm:$0xf]
  %v21 = vld [vmem:[%s0 + $0x34] sm:$0xf]
  %v22 = vld [vmem:[%s0 + $0x38] sm:$0xf]
  %v23 = vld [vmem:[%s0 + $0x3c] sm:$0xf]
  %v32 = vrot.slane %v8, 2
  %v33 = vrot.slane %v10, 2
  %v34 = vrot.slane %v12, 2
  %v35 = vrot.slane %v14, 2
  %v36 = vrot.slane %v16, 2
  %v37 = vrot.slane %v18, 2
  %v38 = vrot.slane %v20, 2
  %v39 = vrot.slane %v22, 2
  %v48 = vmax.bf16 %v8, %v32
  %v49 = vmax.bf16 %v10, %v33
  %v50 = vmax.bf16 %v12, %v34
  %v51 = vmax.bf16 %v14, %v35
  %v52 = vmax.bf16 %v16, %v36
  %v53 = vmax.bf16 %v18, %v37
  %v54 = vmax.bf16 %v20, %v38
  %v55 = vmax.bf16 %v22, %v39
  %v64 = vrot.slane %v9, 2
  %v65 = vrot.slane %v11, 2
  %v66 = vrot.slane %v13, 2
  %v67 = vrot.slane %v15, 2
  %v68 = vrot.slane %v17, 2
  %v69 = vrot.slane %v19, 2
  %v70 = vrot.slane %v21, 2
  %v71 = vrot.slane %v23, 2
  %v80 = vmax.bf16 %v9, %v64
  %v81 = vmax.bf16 %v11, %v65
  %v82 = vmax.bf16 %v13, %v66
  %v83 = vmax.bf16 %v15, %v67
  %v84 = vmax.bf16 %v17, %v68
  %v85 = vmax.bf16 %v19, %v69
  %v86 = vmax.bf16 %v21, %v70
  %v87 = vmax.bf16 %v23, %v71
  %v88 = vmax.bf16 %v48, %v80
  %v89 = vmax.bf16 %v49, %v81
  %v90 = vmax.bf16 %v50, %v82
  %v91 = vmax.bf16 %v51, %v83
  %v92 = vmax.bf16 %v52, %v84
  %v93 = vmax.bf16 %v53, %v85
  %v94 = vmax.bf16 %v54, %v86
  %v95 = vmax.bf16 %v55, %v87
  %96 = vst [vmem:[%s1] sm:$0x3] %v88
  %97 = vst [vmem:[%s1 + $0x2] sm:$0x3] %v89
  %98 = vst [vmem:[%s1 + $0x4] sm:$0x3] %v90
  %99 = vst [vmem:[%s1 + $0x6] sm:$0x3] %v91
  %100 = vst [vmem:[%s1 + $0x8] sm:$0x3] %v92
  %101 = vst [vmem:[%s1 + $0xa] sm:$0x3] %v93
  %102 = vst [vmem:[%s1 + $0xc] sm:$0x3] %v94
  %103 = vst [vmem:[%s1 + $0xe] sm:$0x3] %v95
  // Predicated region
  $region6: #{alexnet_forward.10} parent=0 // pred_check
    _
  $region7: #{alexnet_forward.10} parent=0 // pred_check_branch
    %105 = sbr.rel (0) target = $region9
  $region8: #{alexnet_forward.10} parent=0 // pred_region
    _
  $region9: #{alexnet_forward.10} parent=0 // pred_fallthru
    _
  // Predicated region
  $region10: #{alexnet_forward.10} parent=0 // pred_check
    _
  $region11: #{alexnet_forward.10} parent=0 // pred_check_branch
    %107 = sbr.rel (0) target = $region13
  $region12: #{alexnet_forward.10} parent=0 // pred_region
    _
  $region13: #{alexnet_forward.10} parent=0 // pred_fallthru
    _

// kernel: alexnet_forward.9
$region0: #{alexnet_forward.9}
  #allocation0 [shape = 'u32[]', space=smem, size = 0x4, offset = 0x4, fixed_abs, tag = 'smem constant byte address 0x4 - core index']
  #allocation1 [shape = 'u32[144,128]{1,0:T(1,128)}', space=vmem, size = 0x12000, scoped, tag = 'internal scratch']
  #allocation2 [shape = 'f32[128,128]{1,0:T(8,128)}', space=vmem, size = 0x10000, scoped, tag = 'scratch operand']
  %s0 = inlined_call_operand.vmem [shape: bf16[128,384], index: 0, kind: input, shape index: {}]
  %s1 = inlined_call_operand.vmem [shape: bf16[384,128], index: 1, kind: input, shape index: {}]
  %s2 = inlined_call_operand.vmem [shape: f32[1,128], index: 2, kind: input, shape index: {}]
  %s3 = inlined_call_operand.vmem [shape: bf16[128,128], index: 3, kind: output, shape index: {}]
  %s4 = sld [smem:[#allocation0]]
  $region30: #{alexnet_forward.9} parent=0
    _
  %s6 = ssub.s32 1, %s4
  %s7 = scalar_select 0, %s6, %s4
  // Predicated region
  $region2: #{alexnet_forward.9} parent=0 // pred_check
    _
  $region3: #{alexnet_forward.9} parent=0 // pred_check_branch
    %9 = sbr.rel (0) target = $region5
  $region4: #{alexnet_forward.9} parent=0 // pred_region
    _
  $region5: #{alexnet_forward.9} parent=0 // pred_fallthru
    _
  // Predicated region
  $region6: #{alexnet_forward.9} parent=0 // pred_check
    _
  $region7: #{alexnet_forward.9} parent=0 // pred_check_branch
    %11 = sbr.rel (0) target = $region9
  $region8: #{alexnet_forward.9} parent=0 // pred_region
    _
  $region9: #{alexnet_forward.9} parent=0 // pred_fallthru
    _
  // Predicated region
  $region10: #{alexnet_forward.9} parent=0 // pred_check
    _
  $region11: #{alexnet_forward.9} parent=0 // pred_check_branch
    %13 = sbr.rel (0) target = $region13
  $region12: #{alexnet_forward.9} parent=0 // pred_region
    _
  $region13: #{alexnet_forward.9} parent=0 // pred_fallthru
    _
  %p15 = scmp.eq.s32.totalorder 0, 0
  // Predicated region
  $region14: #{alexnet_forward.9} parent=0 // pred_check
    %p16 = pneg %p15
  $region15: #{alexnet_forward.9} parent=0 // pred_check_branch
    %18 = sbr.rel (%p16) target = $region17
  $region16: #{alexnet_forward.9} parent=0 // pred_region
    %19 = vst [vmem:[#allocation2] sm:$0xff] 0.0
    %20 = vst [vmem:[#allocation2 + $0x8] sm:$0xff] 0.0
    %21 = vst [vmem:[#allocation2 + $0x10] sm:$0xff] 0.0
    %22 = vst [vmem:[#allocation2 + $0x18] sm:$0xff] 0.0
    %23 = vst [vmem:[#allocation2 + $0x20] sm:$0xff] 0.0
    %24 = vst [vmem:[#allocation2 + $0x28] sm:$0xff] 0.0
    %25 = vst [vmem:[#allocation2 + $0x30] sm:$0xff] 0.0
    %26 = vst [vmem:[#allocation2 + $0x38] sm:$0xff] 0.0
    %27 = vst [vmem:[#allocation2 + $0x40] sm:$0xff] 0.0
    %28 = vst [vmem:[#allocation2 + $0x48] sm:$0xff] 0.0
    %29 = vst [vmem:[#allocation2 + $0x50] sm:$0xff] 0.0
    %30 = vst [vmem:[#allocation2 + $0x58] sm:$0xff] 0.0
    %31 = vst [vmem:[#allocation2 + $0x60] sm:$0xff] 0.0
    %32 = vst [vmem:[#allocation2 + $0x68] sm:$0xff] 0.0
    %33 = vst [vmem:[#allocation2 + $0x70] sm:$0xff] 0.0
    %34 = vst [vmem:[#allocation2 + $0x78] sm:$0xff] 0.0
  $region17: #{alexnet_forward.9} parent=0 // pred_fallthru
    _
  %v35 = vld [vmem:[#allocation2] sm:$0xff]
  %v36 = vld [vmem:[#allocation2 + $0x8] sm:$0xff]
  %v37 = vld [vmem:[#allocation2 + $0x10] sm:$0xff]
  %v38 = vld [vmem:[#allocation2 + $0x18] sm:$0xff]
  %v39 = vld [vmem:[#allocation2 + $0x20] sm:$0xff]
  %v40 = vld [vmem:[#allocation2 + $0x28] sm:$0xff]
  %v41 = vld [vmem:[#allocation2 + $0x30] sm:$0xff]
  %v42 = vld [vmem:[#allocation2 + $0x38] sm:$0xff]
  %v43 = vld [vmem:[#allocation2 + $0x40] sm:$0xff]
  %v44 = vld [vmem:[#allocation2 + $0x48] sm:$0xff]
  %v45 = vld [vmem:[#allocation2 + $0x50] sm:$0xff]
  %v46 = vld [vmem:[#allocation2 + $0x58] sm:$0xff]
  %v47 = vld [vmem:[#allocation2 + $0x60] sm:$0xff]
  %v48 = vld [vmem:[#allocation2 + $0x68] sm:$0xff]
  %v49 = vld [vmem:[#allocation2 + $0x70] sm:$0xff]
  %v50 = vld [vmem:[#allocation2 + $0x78] sm:$0xff]
  %v51 = vld [vmem:[%s0] sm:$0xff]
  %v52 = vld [vmem:[%s0 + $0x8] sm:$0xf]
  %v53 = vld [vmem:[%s0 + $0xc] sm:$0xff]
  %v54 = vld [vmem:[%s0 + $0x14] sm:$0xf]
  %v55 = vld [vmem:[%s0 + $0x18] sm:$0xff]
  %v56 = vld [vmem:[%s0 + $0x20] sm:$0xf]
  %v57 = vld [vmem:[%s0 + $0x24] sm:$0xff]
  %v58 = vld [vmem:[%s0 + $0x2c] sm:$0xf]
  %v59 = vld [vmem:[%s0 + $0x30] sm:$0xff]
  %v60 = vld [vmem:[%s0 + $0x38] sm:$0xf]
  %v61 = vld [vmem:[%s0 + $0x3c] sm:$0xff]
  %v62 = vld [vmem:[%s0 + $0x44] sm:$0xf]
  %v63 = vld [vmem:[%s0 + $0x48] sm:$0xff]
  %v64 = vld [vmem:[%s0 + $0x50] sm:$0xf]
  %v65 = vld [vmem:[%s0 + $0x54] sm:$0xff]
  %v66 = vld [vmem:[%s0 + $0x5c] sm:$0xf]
  %v67 = vld [vmem:[%s0 + $0x60] sm:$0xff]
  %v68 = vld [vmem:[%s0 + $0x68] sm:$0xf]
  %v69 = vld [vmem:[%s0 + $0x6c] sm:$0xff]
  %v70 = vld [vmem:[%s0 + $0x74] sm:$0xf]
  %v71 = vld [vmem:[%s0 + $0x78] sm:$0xff]
  %v72 = vld [vmem:[%s0 + $0x80] sm:$0xf]
  %v73 = vld [vmem:[%s0 + $0x84] sm:$0xff]
  %v74 = vld [vmem:[%s0 + $0x8c] sm:$0xf]
  %v75 = vld [vmem:[%s0 + $0x90] sm:$0xff]
  %v76 = vld [vmem:[%s0 + $0x98] sm:$0xf]
  %v77 = vld [vmem:[%s0 + $0x9c] sm:$0xff]
  %v78 = vld [vmem:[%s0 + $0xa4] sm:$0xf]
  %v79 = vld [vmem:[%s0 + $0xa8] sm:$0xff]
  %v80 = vld [vmem:[%s0 + $0xb0] sm:$0xf]
  %v81 = vld [vmem:[%s0 + $0xb4] sm:$0xff]
  %v82 = vld [vmem:[%s0 + $0xbc] sm:$0xf]
  %v83 = vld [vmem:[%s1] sm:$0xf]
  %v84 = vld [vmem:[%s1 + $0x4] sm:$0xf]
  %v85 = vld [vmem:[%s1 + $0x8] sm:$0xf]
  %v86 = vld [vmem:[%s1 + $0xc] sm:$0xf]
  %v87 = vld [vmem:[%s1 + $0x10] sm:$0xf]
  %v88 = vld [vmem:[%s1 + $0x14] sm:$0xf]
  %v89 = vld [vmem:[%s1 + $0x18] sm:$0xf]
  %v90 = vld [vmem:[%s1 + $0x1c] sm:$0xf]
  %v91 = vld [vmem:[%s1 + $0x20] sm:$0xf]
  %v92 = vld [vmem:[%s1 + $0x24] sm:$0xf]
  %v93 = vld [vmem:[%s1 + $0x28] sm:$0xf]
  %v94 = vld [vmem:[%s1 + $0x2c] sm:$0xf]
  %v95 = vld [vmem:[%s1 + $0x30] sm:$0xf]
  %v96 = vld [vmem:[%s1 + $0x34] sm:$0xf]
  %v97 = vld [vmem:[%s1 + $0x38] sm:$0xf]
  %v98 = vld [vmem:[%s1 + $0x3c] sm:$0xf]
  %v99 = vld [vmem:[%s1 + $0x40] sm:$0xf]
  %v100 = vld [vmem:[%s1 + $0x44] sm:$0xf]
  %v101 = vld [vmem:[%s1 + $0x48] sm:$0xf]
  %v102 = vld [vmem:[%s1 + $0x4c] sm:$0xf]
  %v103 = vld [vmem:[%s1 + $0x50] sm:$0xf]
  %v104 = vld [vmem:[%s1 + $0x54] sm:$0xf]
  %v105 = vld [vmem:[%s1 + $0x58] sm:$0xf]
  %v106 = vld [vmem:[%s1 + $0x5c] sm:$0xf]
  %v107 = vld [vmem:[%s1 + $0x60] sm:$0xf]
  %v108 = vld [vmem:[%s1 + $0x64] sm:$0xf]
  %v109 = vld [vmem:[%s1 + $0x68] sm:$0xf]
  %v110 = vld [vmem:[%s1 + $0x6c] sm:$0xf]
  %v111 = vld [vmem:[%s1 + $0x70] sm:$0xf]
  %v112 = vld [vmem:[%s1 + $0x74] sm:$0xf]
  %v113 = vld [vmem:[%s1 + $0x78] sm:$0xf]
  %v114 = vld [vmem:[%s1 + $0x7c] sm:$0xf]
  %v115 = vld [vmem:[%s1 + $0x80] sm:$0xf]
  %v116 = vld [vmem:[%s1 + $0x84] sm:$0xf]
  %v117 = vld [vmem:[%s1 + $0x88] sm:$0xf]
  %v118 = vld [vmem:[%s1 + $0x8c] sm:$0xf]
  %v119 = vld [vmem:[%s1 + $0x90] sm:$0xf]
  %v120 = vld [vmem:[%s1 + $0x94] sm:$0xf]
  %v121 = vld [vmem:[%s1 + $0x98] sm:$0xf]
  %v122 = vld [vmem:[%s1 + $0x9c] sm:$0xf]
  %v123 = vld [vmem:[%s1 + $0xa0] sm:$0xf]
  %v124 = vld [vmem:[%s1 + $0xa4] sm:$0xf]
  %v125 = vld [vmem:[%s1 + $0xa8] sm:$0xf]
  %v126 = vld [vmem:[%s1 + $0xac] sm:$0xf]
  %v127 = vld [vmem:[%s1 + $0xb0] sm:$0xf]
  %v128 = vld [vmem:[%s1 + $0xb4] sm:$0xf]
  %v129 = vld [vmem:[%s1 + $0xb8] sm:$0xf]
  %v130 = vld [vmem:[%s1 + $0xbc] sm:$0xf]
  %v163 = vunpack.c.l.b16 %v51
  %v164 = vunpack.c.h.b16 %v51
  %v165 = vunpack.c.l.b16 %v52
  %v166 = vunpack.c.l.b16 %v53
  %v167 = vunpack.c.h.b16 %v53
  %v168 = vunpack.c.l.b16 %v54
  %v169 = vunpack.c.l.b16 %v55
  %v170 = vunpack.c.h.b16 %v55
  %v171 = vunpack.c.l.b16 %v56
  %v172 = vunpack.c.l.b16 %v57
  %v173 = vunpack.c.h.b16 %v57
  %v174 = vunpack.c.l.b16 %v58
  %v175 = vunpack.c.l.b16 %v59
  %v176 = vunpack.c.h.b16 %v59
  %v177 = vunpack.c.l.b16 %v60
  %v178 = vunpack.c.l.b16 %v61
  %v179 = vunpack.c.h.b16 %v61
  %v180 = vunpack.c.l.b16 %v62
  %v181 = vunpack.c.l.b16 %v63
  %v182 = vunpack.c.h.b16 %v63
  %v183 = vunpack.c.l.b16 %v64
  %v184 = vunpack.c.l.b16 %v65
  %v185 = vunpack.c.h.b16 %v65
  %v186 = vunpack.c.l.b16 %v66
  %v187 = vunpack.c.l.b16 %v67
  %v188 = vunpack.c.h.b16 %v67
  %v189 = vunpack.c.l.b16 %v68
  %v190 = vunpack.c.l.b16 %v69
  %v191 = vunpack.c.h.b16 %v69
  %v192 = vunpack.c.l.b16 %v70
  %v193 = vunpack.c.l.b16 %v71
  %v194 = vunpack.c.h.b16 %v71
  %v195 = vunpack.c.l.b16 %v72
  %v196 = vunpack.c.l.b16 %v73
  %v197 = vunpack.c.h.b16 %v73
  %v198 = vunpack.c.l.b16 %v74
  %v199 = vunpack.c.l.b16 %v75
  %v200 = vunpack.c.h.b16 %v75
  %v201 = vunpack.c.l.b16 %v76
  %v202 = vunpack.c.l.b16 %v77
  %v203 = vunpack.c.h.b16 %v77
  %v204 = vunpack.c.l.b16 %v78
  %v205 = vunpack.c.l.b16 %v79
  %v206 = vunpack.c.h.b16 %v79
  %v207 = vunpack.c.l.b16 %v80
  %v208 = vunpack.c.l.b16 %v81
  %v209 = vunpack.c.h.b16 %v81
  %v210 = vunpack.c.l.b16 %v82
  %v211 = vpack.c.b16 %v166, %v163
  %v212 = vpack.c.b16 %v167, %v164
  %v213 = vpack.c.b16 %v168, %v165
  %v214 = vpack.c.b16 %v172, %v169
  %v215 = vpack.c.b16 %v173, %v170
  %v216 = vpack.c.b16 %v174, %v171
  %v217 = vpack.c.b16 %v178, %v175
  %v218 = vpack.c.b16 %v179, %v176
  %v219 = vpack.c.b16 %v180, %v177
  %v220 = vpack.c.b16 %v184, %v181
  %v221 = vpack.c.b16 %v185, %v182
  %v222 = vpack.c.b16 %v186, %v183
  %v223 = vpack.c.b16 %v190, %v187
  %v224 = vpack.c.b16 %v191, %v188
  %v225 = vpack.c.b16 %v192, %v189
  %v226 = vpack.c.b16 %v196, %v193
  %v227 = vpack.c.b16 %v197, %v194
  %v228 = vpack.c.b16 %v198, %v195
  %v229 = vpack.c.b16 %v202, %v199
  %v230 = vpack.c.b16 %v203, %v200
  %v231 = vpack.c.b16 %v204, %v201
  %v232 = vpack.c.b16 %v208, %v205
  %v233 = vpack.c.b16 %v209, %v206
  %v234 = vpack.c.b16 %v210, %v207
  %v307 = vunpack.c.l.b16 %v83
  %v308 = vunpack.c.l.b16 %v84
  %v309 = vunpack.c.l.b16 %v85
  %v310 = vunpack.c.l.b16 %v86
  %v311 = vunpack.c.l.b16 %v87
  %v312 = vunpack.c.l.b16 %v88
  %v313 = vunpack.c.l.b16 %v89
  %v314 = vunpack.c.l.b16 %v90
  %v315 = vunpack.c.l.b16 %v91
  %v316 = vunpack.c.l.b16 %v92
  %v317 = vunpack.c.l.b16 %v93
  %v318 = vunpack.c.l.b16 %v94
  %v319 = vunpack.c.l.b16 %v95
  %v320 = vunpack.c.l.b16 %v96
  %v321 = vunpack.c.l.b16 %v97
  %v322 = vunpack.c.l.b16 %v98
  %v323 = vunpack.c.l.b16 %v99
  %v324 = vunpack.c.l.b16 %v100
  %v325 = vunpack.c.l.b16 %v101
  %v326 = vunpack.c.l.b16 %v102
  %v327 = vunpack.c.l.b16 %v103
  %v328 = vunpack.c.l.b16 %v104
  %v329 = vunpack.c.l.b16 %v105
  %v330 = vunpack.c.l.b16 %v106
  %v331 = vunpack.c.l.b16 %v107
  %v332 = vunpack.c.l.b16 %v108
  %v333 = vunpack.c.l.b16 %v109
  %v334 = vunpack.c.l.b16 %v110
  %v335 = vunpack.c.l.b16 %v111
  %v336 = vunpack.c.l.b16 %v112
  %v337 = vunpack.c.l.b16 %v113
  %v338 = vunpack.c.l.b16 %v114
  %v339 = vunpack.c.l.b16 %v115
  %v340 = vunpack.c.l.b16 %v116
  %v341 = vunpack.c.l.b16 %v117
  %v342 = vunpack.c.l.b16 %v118
  %v343 = vunpack.c.l.b16 %v119
  %v344 = vunpack.c.l.b16 %v120
  %v345 = vunpack.c.l.b16 %v121
  %v346 = vunpack.c.l.b16 %v122
  %v347 = vunpack.c.l.b16 %v123
  %v348 = vunpack.c.l.b16 %v124
  %v349 = vunpack.c.l.b16 %v125
  %v350 = vunpack.c.l.b16 %v126
  %v351 = vunpack.c.l.b16 %v127
  %v352 = vunpack.c.l.b16 %v128
  %v353 = vunpack.c.l.b16 %v129
  %v354 = vunpack.c.l.b16 %v130
  %v355 = vpack.c.b16 %v308, %v307
  %v356 = vpack.c.b16 %v310, %v309
  %v357 = vpack.c.b16 %v312, %v311
  %v358 = vpack.c.b16 %v314, %v313
  %v359 = vpack.c.b16 %v316, %v315
  %v360 = vpack.c.b16 %v318, %v317
  %v361 = vpack.c.b16 %v320, %v319
  %v362 = vpack.c.b16 %v322, %v321
  %v363 = vpack.c.b16 %v324, %v323
  %v364 = vpack.c.b16 %v326, %v325
  %v365 = vpack.c.b16 %v328, %v327
  %v366 = vpack.c.b16 %v330, %v329
  %v367 = vpack.c.b16 %v332, %v331
  %v368 = vpack.c.b16 %v334, %v333
  %v369 = vpack.c.b16 %v336, %v335
  %v370 = vpack.c.b16 %v338, %v337
  %v371 = vpack.c.b16 %v340, %v339
  %v372 = vpack.c.b16 %v342, %v341
  %v373 = vpack.c.b16 %v344, %v343
  %v374 = vpack.c.b16 %v346, %v345
  %v375 = vpack.c.b16 %v348, %v347
  %v376 = vpack.c.b16 %v350, %v349
  %v377 = vpack.c.b16 %v352, %v351
  %v378 = vpack.c.b16 %v354, %v353
  %403 = vmatprep.subr.bf16.mxu0 0
  %404 = vmatpush1.bf16.msra.mxu0 %v355
  %405 = vmatprep.subr.bf16.mxu0 0
  %406 = vmatpush1.bf16.msra.mxu0 %v356
  %407 = vmatprep.subr.bf16.mxu0 0
  %408 = vmatpush1.bf16.msra.mxu0 %v357
  %409 = vmatprep.subr.bf16.mxu0 0
  %410 = vmatpush1.bf16.msra.mxu0 %v358
  %411 = vmatprep.subr.bf16.mxu0 0
  %412 = vmatpush1.bf16.msra.mxu0 %v359
  %413 = vmatprep.subr.bf16.mxu0 0
  %414 = vmatpush1.bf16.msra.mxu0 %v360
  %415 = vmatprep.subr.bf16.mxu0 0
  %416 = vmatpush1.bf16.msra.mxu0 %v361
  %417 = vmatprep.subr.bf16.mxu0 0
  %418 = vmatpush1.bf16.msra.mxu0 %v362
  %419 = vmatprep.subr.bf16.mxu0 0
  %420 = vmatpush1.bf16.msra.mxu0 %v363
  %421 = vmatprep.subr.bf16.mxu0 0
  %422 = vmatpush1.bf16.msra.mxu0 %v364
  %423 = vmatprep.subr.bf16.mxu0 0
  %424 = vmatpush1.bf16.msra.mxu0 %v365
  %425 = vmatprep.subr.bf16.mxu0 0
  %426 = vmatpush1.bf16.msra.mxu0 %v366
  %427 = vmatprep.subr.bf16.mxu0 0
  %428 = vmatpush1.bf16.msra.mxu0 %v367
  %429 = vmatprep.subr.bf16.mxu0 0
  %430 = vmatpush1.bf16.msra.mxu0 %v368
  %431 = vmatprep.subr.bf16.mxu0 0
  %432 = vmatpush1.bf16.msra.mxu0 %v369
  %433 = vmatprep.subr.bf16.mxu0 0
  %434 = vmatpush1.bf16.msra.mxu0 %v370
  %435 = vmatprep.mubr.bf16.mxu0 %v212
  %436 = vmatmul.mubr.bf16.gmra.mrb[0].mxu0 %v211
  %v437 = vpop.f32.mrb[0].mxu0
  %v438 = vadd.f32 0.0, %v437
  %v439 = vpop.f32.mrb[0].mxu0
  %v440 = vpop.f32.mrb[0].mxu0
  %v441 = vadd.f32 0.0, %v440
  %v442 = vpop.f32.mrb[0].mxu0
  %443 = vmatprep.mubr.bf16.mxu0 %v215
  %444 = vmatmul.mubr.bf16.gmra.mrb[0].mxu0 %v214
  %v445 = vpop.f32.mrb[0].mxu0
  %v446 = vadd.f32 0.0, %v445
  %v447 = vpop.f32.mrb[0].mxu0
  %v448 = vpop.f32.mrb[0].mxu0
  %v449 = vadd.f32 0.0, %v448
  %v450 = vpop.f32.mrb[0].mxu0
  %451 = vmatprep.mubr.bf16.mxu0 %v218
  %452 = vmatmul.mubr.bf16.gmra.mrb[0].mxu0 %v217
  %v453 = vpop.f32.mrb[0].mxu0
  %v454 = vadd.f32 0.0, %v453
  %v455 = vpop.f32.mrb[0].mxu0
  %v456 = vpop.f32.mrb[0].mxu0
  %v457 = vadd.f32 0.0, %v456
  %v458 = vpop.f32.mrb[0].mxu0
  %459 = vmatprep.mubr.bf16.mxu0 %v221
  %460 = vmatmul.mubr.bf16.gmra.mrb[0].mxu0 %v220
  %v461 = vpop.f32.mrb[0].mxu0
  %v462 = vadd.f32 0.0, %v461
  %v463 = vpop.f32.mrb[0].mxu0
  %v464 = vpop.f32.mrb[0].mxu0
  %v465 = vadd.f32 0.0, %v464
  %v466 = vpop.f32.mrb[0].mxu0
  %467 = vmatprep.mubr.bf16.mxu0 %v224
  %468 = vmatmul.mubr.bf16.gmra.mrb[0].mxu0 %v223
  %v469 = vpop.f32.mrb[0].mxu0
  %v470 = vadd.f32 0.0, %v469
  %v471 = vpop.f32.mrb[0].mxu0
  %v472 = vpop.f32.mrb[0].mxu0
  %v473 = vadd.f32 0.0, %v472
  %v474 = vpop.f32.mrb[0].mxu0
  %475 = vmatprep.mubr.bf16.mxu0 %v227
  %476 = vmatmul.mubr.bf16.gmra.mrb[0].mxu0 %v226
  %v477 = vpop.f32.mrb[0].mxu0
  %v478 = vadd.f32 0.0, %v477
  %v479 = vpop.f32.mrb[0].mxu0
  %v480 = vpop.f32.mrb[0].mxu0
  %v481 = vadd.f32 0.0, %v480
  %v482 = vpop.f32.mrb[0].mxu0
  %483 = vmatprep.mubr.bf16.mxu0 %v230
  %484 = vmatmul.mubr.bf16.gmra.mrb[0].mxu0 %v229
  %v485 = vpop.f32.mrb[0].mxu0
  %v486 = vadd.f32 0.0, %v485
  %v487 = vpop.f32.mrb[0].mxu0
  %v488 = vpop.f32.mrb[0].mxu0
  %v489 = vadd.f32 0.0, %v488
  %v490 = vpop.f32.mrb[0].mxu0
  %491 = vmatprep.mubr.bf16.mxu0 %v233
  %492 = vmatmul.mubr.bf16.gmra.mrb[0].mxu0 %v232
  %v493 = vpop.f32.mrb[0].mxu0
  %v494 = vadd.f32 0.0, %v493
  %v495 = vpop.f32.mrb[0].mxu0
  %v496 = vpop.f32.mrb[0].mxu0
  %v497 = vadd.f32 0.0, %v496
  %v498 = vpop.f32.mrb[0].mxu0
  %499 = vdwg.mxu0
  %500 = vmatprep.subr.bf16.mxu0 0
  %501 = vmatpush1.bf16.msra.mxu0 %v371
  %502 = vmatprep.subr.bf16.mxu0 0
  %503 = vmatpush1.bf16.msra.mxu0 %v372
  %504 = vmatprep.subr.bf16.mxu0 0
  %505 = vmatpush1.bf16.msra.mxu0 %v373
  %506 = vmatprep.subr.bf16.mxu0 0
  %507 = vmatpush1.bf16.msra.mxu0 %v374
  %508 = vmatprep.subr.bf16.mxu0 0
  %509 = vmatpush1.bf16.msra.mxu0 %v375
  %510 = vmatprep.subr.bf16.mxu0 0
  %511 = vmatpush1.bf16.msra.mxu0 %v376
  %512 = vmatprep.subr.bf16.mxu0 0
  %513 = vmatpush1.bf16.msra.mxu0 %v377
  %514 = vmatprep.subr.bf16.mxu0 0
  %515 = vmatpush1.bf16.msra.mxu0 %v378
  %516 = vmatprep.subr.bf16.mxu0 0
  %517 = vmatpush1.bf16.msra.mxu0 0
  %518 = vmatprep.subr.bf16.mxu0 0
  %519 = vmatpush1.bf16.msra.mxu0 0
  %520 = vmatprep.subr.bf16.mxu0 0
  %521 = vmatpush1.bf16.msra.mxu0 0
  %522 = vmatprep.subr.bf16.mxu0 0
  %523 = vmatpush1.bf16.msra.mxu0 0
  %524 = vmatprep.subr.bf16.mxu0 0
  %525 = vmatpush1.bf16.msra.mxu0 0
  %526 = vmatprep.subr.bf16.mxu0 0
  %527 = vmatpush1.bf16.msra.mxu0 0
  %528 = vmatprep.subr.bf16.mxu0 0
  %529 = vmatpush1.bf16.msra.mxu0 0
  %530 = vmatprep.subr.bf16.mxu0 0
  %531 = vmatpush1.bf16.msra.mxu0 0
  %532 = vmatprep.mubr.bf16.mxu0 0
  %533 = vmatmul.mubr.bf16.gmra.mrb[0].mxu0 %v213
  %v534 = vpop.f32.mrb[0].mxu0
  %v535 = vadd.f32 %v438, %v534
  %v536 = vpop.f32.mrb[0].mxu0
  %v537 = vpop.f32.mrb[0].mxu0
  %v538 = vadd.f32 %v441, %v537
  %v539 = vpop.f32.mrb[0].mxu0
  %540 = vmatprep.mubr.bf16.mxu0 0
  %541 = vmatmul.mubr.bf16.gmra.mrb[0].mxu0 %v216
  %v542 = vpop.f32.mrb[0].mxu0
  %v543 = vadd.f32 %v446, %v542
  %v544 = vpop.f32.mrb[0].mxu0
  %v545 = vpop.f32.mrb[0].mxu0
  %v546 = vadd.f32 %v449, %v545
  %v547 = vpop.f32.mrb[0].mxu0
  %548 = vmatprep.mubr.bf16.mxu0 0
  %549 = vmatmul.mubr.bf16.gmra.mrb[0].mxu0 %v219
  %v550 = vpop.f32.mrb[0].mxu0
  %v551 = vadd.f32 %v454, %v550
  %v552 = vpop.f32.mrb[0].mxu0
  %v553 = vpop.f32.mrb[0].mxu0
  %v554 = vadd.f32 %v457, %v553
  %v555 = vpop.f32.mrb[0].mxu0
  %556 = vmatprep.mubr.bf16.mxu0 0
  %557 = vmatmul.mubr.bf16.gmra.mrb[0].mxu0 %v222
  %v558 = vpop.f32.mrb[0].mxu0
  %v559 = vadd.f32 %v462, %v558
  %v560 = vpop.f32.mrb[0].mxu0
  %v561 = vpop.f32.mrb[0].mxu0
  %v562 = vadd.f32 %v465, %v561
  %v563 = vpop.f32.mrb[0].mxu0
  %564 = vmatprep.mubr.bf16.mxu0 0
  %565 = vmatmul.mubr.bf16.gmra.mrb[0].mxu0 %v225
  %v566 = vpop.f32.mrb[0].mxu0
  %v567 = vadd.f32 %v470, %v566
  %v568 = vpop.f32.mrb[0].mxu0
  %v569 = vpop.f32.mrb[0].mxu0
  %v570 = vadd.f32 %v473, %v569
  %v571 = vpop.f32.mrb[0].mxu0
  %572 = vmatprep.mubr.bf16.mxu0 0
  %573 = vmatmul.mubr.bf16.gmra.mrb[0].mxu0 %v228
  %v574 = vpop.f32.mrb[0].mxu0
  %v575 = vadd.f32 %v478, %v574
  %v576 = vpop.f32.mrb[0].mxu0
  %v577 = vpop.f32.mrb[0].mxu0
  %v578 = vadd.f32 %v481, %v577
  %v579 = vpop.f32.mrb[0].mxu0
  %580 = vmatprep.mubr.bf16.mxu0 0
  %581 = vmatmul.mubr.bf16.gmra.mrb[0].mxu0 %v231
  %v582 = vpop.f32.mrb[0].mxu0
  %v583 = vadd.f32 %v486, %v582
  %v584 = vpop.f32.mrb[0].mxu0
  %v585 = vpop.f32.mrb[0].mxu0
  %v586 = vadd.f32 %v489, %v585
  %v587 = vpop.f32.mrb[0].mxu0
  %588 = vmatprep.mubr.bf16.mxu0 0
  %589 = vmatmul.mubr.bf16.gmra.mrb[0].mxu0 %v234
  %v590 = vpop.f32.mrb[0].mxu0
  %v591 = vadd.f32 %v494, %v590
  %v592 = vpop.f32.mrb[0].mxu0
  %v593 = vpop.f32.mrb[0].mxu0
  %v594 = vadd.f32 %v497, %v593
  %v595 = vpop.f32.mrb[0].mxu0
  %596 = vdwg.mxu0
  %v597 = vadd.f32 %v35, %v535
  %v598 = vadd.f32 %v36, %v538
  %v599 = vadd.f32 %v37, %v543
  %v600 = vadd.f32 %v38, %v546
  %v601 = vadd.f32 %v39, %v551
  %v602 = vadd.f32 %v40, %v554
  %v603 = vadd.f32 %v41, %v559
  %v604 = vadd.f32 %v42, %v562
  %v605 = vadd.f32 %v43, %v567
  %v606 = vadd.f32 %v44, %v570
  %v607 = vadd.f32 %v45, %v575
  %v608 = vadd.f32 %v46, %v578
  %v609 = vadd.f32 %v47, %v583
  %v610 = vadd.f32 %v48, %v586
  %v611 = vadd.f32 %v49, %v591
  %v612 = vadd.f32 %v50, %v594
  %613 = vst [vmem:[#allocation2] sm:$0xff] %v597
  %614 = vst [vmem:[#allocation2 + $0x8] sm:$0xff] %v598
  %615 = vst [vmem:[#allocation2 + $0x10] sm:$0xff] %v599
  %616 = vst [vmem:[#allocation2 + $0x18] sm:$0xff] %v600
  %617 = vst [vmem:[#allocation2 + $0x20] sm:$0xff] %v601
  %618 = vst [vmem:[#allocation2 + $0x28] sm:$0xff] %v602
  %619 = vst [vmem:[#allocation2 + $0x30] sm:$0xff] %v603
  %620 = vst [vmem:[#allocation2 + $0x38] sm:$0xff] %v604
  %621 = vst [vmem:[#allocation2 + $0x40] sm:$0xff] %v605
  %622 = vst [vmem:[#allocation2 + $0x48] sm:$0xff] %v606
  %623 = vst [vmem:[#allocation2 + $0x50] sm:$0xff] %v607
  %624 = vst [vmem:[#allocation2 + $0x58] sm:$0xff] %v608
  %625 = vst [vmem:[#allocation2 + $0x60] sm:$0xff] %v609
  %626 = vst [vmem:[#allocation2 + $0x68] sm:$0xff] %v610
  %627 = vst [vmem:[#allocation2 + $0x70] sm:$0xff] %v611
  %628 = vst [vmem:[#allocation2 + $0x78] sm:$0xff] %v612
  // Predicated region
  $region18: #{alexnet_forward.9} parent=0 // pred_check
    %p629 = pneg %p15
  $region19: #{alexnet_forward.9} parent=0 // pred_check_branch
    %631 = sbr.rel (%p629) target = $region21
  $region20: #{alexnet_forward.9} parent=0 // pred_region
    %v632 = vld [vmem:[#allocation2] sm:$0xff]
    %v633 = vld [vmem:[#allocation2 + $0x8] sm:$0xff]
    %v634 = vld [vmem:[#allocation2 + $0x10] sm:$0xff]
    %v635 = vld [vmem:[#allocation2 + $0x18] sm:$0xff]
    %v636 = vld [vmem:[#allocation2 + $0x20] sm:$0xff]
    %v637 = vld [vmem:[#allocation2 + $0x28] sm:$0xff]
    %v638 = vld [vmem:[#allocation2 + $0x30] sm:$0xff]
    %v639 = vld [vmem:[#allocation2 + $0x38] sm:$0xff]
    %v640 = vld [vmem:[#allocation2 + $0x40] sm:$0xff]
    %v641 = vld [vmem:[#allocation2 + $0x48] sm:$0xff]
    %v642 = vld [vmem:[#allocation2 + $0x50] sm:$0xff]
    %v643 = vld [vmem:[#allocation2 + $0x58] sm:$0xff]
    %v644 = vld [vmem:[#allocation2 + $0x60] sm:$0xff]
    %v645 = vld [vmem:[#allocation2 + $0x68] sm:$0xff]
    %v646 = vld [vmem:[#allocation2 + $0x70] sm:$0xff]
    %v647 = vld [vmem:[#allocation2 + $0x78] sm:$0xff]
    %v648 = vld [vmem:[%s2] sm:$0x1]
    %v650 = vlaneseq
    %v651 = vshrl.u32 %v650, 7
    %v652 = vsub.s32 0, %v651
    %v653 = vrot.slane %v648, %v652
    %v655 = vadd.f32 %v632, %v653
    %v656 = vadd.f32 %v633, %v653
    %v657 = vadd.f32 %v634, %v653
    %v658 = vadd.f32 %v635, %v653
    %v659 = vadd.f32 %v636, %v653
    %v660 = vadd.f32 %v637, %v653
    %v661 = vadd.f32 %v638, %v653
    %v662 = vadd.f32 %v639, %v653
    %v663 = vadd.f32 %v640, %v653
    %v664 = vadd.f32 %v641, %v653
    %v665 = vadd.f32 %v642, %v653
    %v666 = vadd.f32 %v643, %v653
    %v667 = vadd.f32 %v644, %v653
    %v668 = vadd.f32 %v645, %v653
    %v669 = vadd.f32 %v646, %v653
    %v670 = vadd.f32 %v647, %v653
    %v671 = vmax.f32 %v655, 0.0
    %v672 = vmax.f32 %v656, 0.0
    %v673 = vmax.f32 %v657, 0.0
    %v674 = vmax.f32 %v658, 0.0
    %v675 = vmax.f32 %v659, 0.0
    %v676 = vmax.f32 %v660, 0.0
    %v677 = vmax.f32 %v661, 0.0
    %v678 = vmax.f32 %v662, 0.0
    %v679 = vmax.f32 %v663, 0.0
    %v680 = vmax.f32 %v664, 0.0
    %v681 = vmax.f32 %v665, 0.0
    %v682 = vmax.f32 %v666, 0.0
    %v683 = vmax.f32 %v667, 0.0
    %v684 = vmax.f32 %v668, 0.0
    %v685 = vmax.f32 %v669, 0.0
    %v686 = vmax.f32 %v670, 0.0
    %v687 = vpack.c.bf16 %v672, %v671
    %v688 = vpack.c.bf16 %v674, %v673
    %v689 = vpack.c.bf16 %v676, %v675
    %v690 = vpack.c.bf16 %v678, %v677
    %v691 = vpack.c.bf16 %v680, %v679
    %v692 = vpack.c.bf16 %v682, %v681
    %v693 = vpack.c.bf16 %v684, %v683
    %v694 = vpack.c.bf16 %v686, %v685
    %v703 = vunpack.c.l.b16 %v687
    %v704 = vunpack.c.h.b16 %v687
    %v705 = vunpack.c.l.b16 %v688
    %v706 = vunpack.c.h.b16 %v688
    %v707 = vunpack.c.l.b16 %v689
    %v708 = vunpack.c.h.b16 %v689
    %v709 = vunpack.c.l.b16 %v690
    %v710 = vunpack.c.h.b16 %v690
    %v711 = vunpack.c.l.b16 %v691
    %v712 = vunpack.c.h.b16 %v691
    %v713 = vunpack.c.l.b16 %v692
    %v714 = vunpack.c.h.b16 %v692
    %v715 = vunpack.c.l.b16 %v693
    %v716 = vunpack.c.h.b16 %v693
    %v717 = vunpack.c.l.b16 %v694
    %v718 = vunpack.c.h.b16 %v694
    %v719 = vpack.c.b16 %v703, %v703
    %v720 = vpack.c.b16 %v704, %v704
    %v721 = vpack.c.b16 %v705, %v705
    %v722 = vpack.c.b16 %v706, %v706
    %v723 = vpack.c.b16 %v707, %v707
    %v724 = vpack.c.b16 %v708, %v708
    %v725 = vpack.c.b16 %v709, %v709
    %v726 = vpack.c.b16 %v710, %v710
    %v727 = vpack.c.b16 %v711, %v711
    %v728 = vpack.c.b16 %v712, %v712
    %v729 = vpack.c.b16 %v713, %v713
    %v730 = vpack.c.b16 %v714, %v714
    %v731 = vpack.c.b16 %v715, %v715
    %v732 = vpack.c.b16 %v716, %v716
    %v733 = vpack.c.b16 %v717, %v717
    %v734 = vpack.c.b16 %v718, %v718
    %751 = vst [vmem:[%s3] sm:$0xf] %v719
    %752 = vst [vmem:[%s3 + $0x4] sm:$0xf] %v720
    %753 = vst [vmem:[%s3 + $0x8] sm:$0xf] %v721
    %754 = vst [vmem:[%s3 + $0xc] sm:$0xf] %v722
    %755 = vst [vmem:[%s3 + $0x10] sm:$0xf] %v723
    %756 = vst [vmem:[%s3 + $0x14] sm:$0xf] %v724
    %757 = vst [vmem:[%s3 + $0x18] sm:$0xf] %v725
    %758 = vst [vmem:[%s3 + $0x1c] sm:$0xf] %v726
    %759 = vst [vmem:[%s3 + $0x20] sm:$0xf] %v727
    %760 = vst [vmem:[%s3 + $0x24] sm:$0xf] %v728
    %761 = vst [vmem:[%s3 + $0x28] sm:$0xf] %v729
    %762 = vst [vmem:[%s3 + $0x2c] sm:$0xf] %v730
    %763 = vst [vmem:[%s3 + $0x30] sm:$0xf] %v731
    %764 = vst [vmem:[%s3 + $0x34] sm:$0xf] %v732
    %765 = vst [vmem:[%s3 + $0x38] sm:$0xf] %v733
    %766 = vst [vmem:[%s3 + $0x3c] sm:$0xf] %v734
  $region21: #{alexnet_forward.9} parent=0 // pred_fallthru
    _
  // Predicated region
  $region22: #{alexnet_forward.9} parent=0 // pred_check
    _
  $region23: #{alexnet_forward.9} parent=0 // pred_check_branch
    %768 = sbr.rel (0) target = $region25
  $region24: #{alexnet_forward.9} parent=0 // pred_region
    _
  $region25: #{alexnet_forward.9} parent=0 // pred_fallthru
    _
  // Predicated region
  $region26: #{alexnet_forward.9} parent=0 // pred_check
    _
  $region27: #{alexnet_forward.9} parent=0 // pred_check_branch
    %770 = sbr.rel (0) target = $region29
  $region28: #{alexnet_forward.9} parent=0 // pred_region
    _
  $region29: #{alexnet_forward.9} parent=0 // pred_fallthru
    _

// kernel: alexnet_forward.11
$region0: #{alexnet_forward.11}
  #allocation0 [shape = 'u32[]', space=smem, size = 0x4, offset = 0x4, fixed_abs, tag = 'smem constant byte address 0x4 - core index']
  #allocation1 [shape = 'u32[144,128]{1,0:T(1,128)}', space=vmem, size = 0x12000, scoped, tag = 'internal scratch']
  #allocation2 [shape = 'f32[32,256]{1,0:T(8,128)}', space=vmem, size = 0x8000, scoped, tag = 'scratch operand']
  %s0 = inlined_call_operand.vmem [shape: bf16[32,3200], index: 0, kind: input, shape index: {}]
  %s1 = inlined_call_operand.vmem [shape: bf16[3200,256], index: 1, kind: input, shape index: {}]
  %s2 = inlined_call_operand.vmem [shape: f32[1,256], index: 2, kind: input, shape index: {}]
  %s3 = inlined_call_operand.vmem [shape: bf16[32,256], index: 3, kind: output, shape index: {}]
  %s4 = sld [smem:[#allocation0]]
  $region94: #{alexnet_forward.11} parent=0
    _
  %s6 = ssub.s32 1, %s4
  %s7 = scalar_select 0, %s6, %s4
  $region1: #{alexnet_forward.11} parent=0
    #allocation3 [shape = 'u8[16384]{0}', space=vmem, size = 0x4000, scoped, tag = 'input window, operand 0']
    loop: start=0, step=1, limit=27
    $region2: #{alexnet_forward.11} parent=1 // loop_pre_header
      _
    $region3: #{alexnet_forward.11} parent=1 // loop_header
      %s9 = sphi 0, %s13
      %p10 = scmp.ge.s32.totalorder %s9, 27
      %s16 = sphi 0, %s35
      %s17 = sphi 0, %s31
      %s18 = sphi 0, %s27
      %s19 = sphi 0, %s16
      %s20 = sphi 0, %s17
      %s21 = sphi 0, %s18
      %s22 = sphi 0, %s19
      %s23 = sphi 0, %s20
      %s24 = sphi 0, %s21
      %s40 = sphi 0, %s42
      %s43 = sphi 0, %s40
      %s44 = sphi 0, %s43
      %s60 = sphi 0, %s44
      %s68 = sphi 0, %s70
      %s71 = sphi 0, %s68
      %s72 = sphi 0, %s71
      %s88 = sphi 0, %s72
      %s94 = sphi 0, %s96
      %s97 = sphi 0, %s94
      %s98 = sphi 0, %s97
      %s114 = sphi 0, %s98
      %s122 = sphi 0, %s124
      %s125 = sphi 0, %s122
      %s126 = sphi 0, %s125
      %s142 = sphi 0, %s126
    $region4: #{alexnet_forward.11} parent=1 // loop_header_branch
      %12 = sbr.rel (%p10) target = $region8
    $region5: #{alexnet_forward.11} parent=1 // loop_body
      %s14 = ssub.s32 %s9, 1
      %s15 = ssub.s32 %s9, 2
      %s25 = sadd.s32 1, %s18
      %p26 = scmp.ge.s32.totalorder %s25, 25
      %s27 = scalar_select %p26, 0, %s25
      %s28 = sadd.s32 1, %s17
      %s29 = scalar_select %p26, %s28, %s17
      %p30 = scmp.ge.s32.totalorder %s29, 1
      %s31 = scalar_select %p30, 0, %s29
      %s32 = sadd.s32 1, %s16
      %s33 = scalar_select %p30, %s32, %s16
      %p34 = scmp.ge.s32.totalorder %s33, 1
      %s35 = scalar_select %p34, 0, %s33
      %s36 = ssub.s32 %s16, %s35
      %s37 = ssub.s32 %s18, %s27
      %s38 = sor.u32 %s36, %s37
      %p39 = scmp.eq.s32.totalorder %s38, 0
      %s41 = sadd.s32 %s40, 1
      %s42 = scalar_select %p39, %s40, %s41
      %p45 = pneg %p39
      %p46 = scmp.eq.s32.totalorder %s9, 24
      %p47 = por %p45, %p46
      %p48 = scmp.ne.s32.totalorder %s40, %s43
      %p49 = scmp.eq.s32.totalorder %s9, 0
      %p50 = por %p48, %p49
      %p51 = scmp.ne.s32.totalorder %s40, %s43
      %p52 = scmp.eq.s32.totalorder %s14, 24
      %p53 = por %p51, %p52
      %p54 = scmp.ne.s32.totalorder %s43, %s44
      %p55 = scmp.eq.s32.totalorder %s14, 0
      %p56 = por %p54, %p55
      %p57 = scmp.ne.s32.totalorder %s43, %s44
      %p58 = scmp.eq.s32.totalorder %s15, 24
      %p59 = por %p57, %p58
      %p61 = scmp.ne.s32.totalorder %s44, %s60
      %p62 = scmp.eq.s32.totalorder %s15, 0
      %p63 = por %p61, %p62
      %s64 = ssub.s32 %s18, %s27
      %s65 = ssub.s32 %s17, %s31
      %s66 = sor.u32 %s64, %s65
      %p67 = scmp.eq.s32.totalorder %s66, 0
      %s69 = sadd.s32 %s68, 1
      %s70 = scalar_select %p67, %s68, %s69
      %p73 = pneg %p67
      %p74 = scmp.eq.s32.totalorder %s9, 24
      %p75 = por %p73, %p74
      %p76 = scmp.ne.s32.totalorder %s68, %s71
      %p77 = scmp.eq.s32.totalorder %s9, 0
      %p78 = por %p76, %p77
      %p79 = scmp.ne.s32.totalorder %s68, %s71
      %p80 = scmp.eq.s32.totalorder %s14, 24
      %p81 = por %p79, %p80
      %p82 = scmp.ne.s32.totalorder %s71, %s72
      %p83 = scmp.eq.s32.totalorder %s14, 0
      %p84 = por %p82, %p83
      %p85 = scmp.ne.s32.totalorder %s71, %s72
      %p86 = scmp.eq.s32.totalorder %s15, 24
      %p87 = por %p85, %p86
      %p89 = scmp.ne.s32.totalorder %s72, %s88
      %p90 = scmp.eq.s32.totalorder %s15, 0
      %p91 = por %p89, %p90
      %s92 = ssub.s32 %s17, %s31
      %p93 = scmp.eq.s32.totalorder %s92, 0
      %s95 = sadd.s32 %s94, 1
      %s96 = scalar_select %p93, %s94, %s95
      %p99 = pneg %p93
      %p100 = scmp.eq.s32.totalorder %s9, 24
      %p101 = por %p99, %p100
      %p102 = scmp.ne.s32.totalorder %s94, %s97
      %p103 = scmp.eq.s32.totalorder %s9, 0
      %p104 = por %p102, %p103
      %p105 = scmp.ne.s32.totalorder %s94, %s97
      %p106 = scmp.eq.s32.totalorder %s14, 24
      %p107 = por %p105, %p106
      %p108 = scmp.ne.s32.totalorder %s97, %s98
      %p109 = scmp.eq.s32.totalorder %s14, 0
      %p110 = por %p108, %p109
      %p111 = scmp.ne.s32.totalorder %s97, %s98
      %p112 = scmp.eq.s32.totalorder %s15, 24
      %p113 = por %p111, %p112
      %p115 = scmp.ne.s32.totalorder %s98, %s114
      %p116 = scmp.eq.s32.totalorder %s15, 0
      %p117 = por %p115, %p116
      %s118 = ssub.s32 %s16, %s35
      %s119 = ssub.s32 %s17, %s31
      %s120 = sor.u32 %s118, %s119
      %p121 = scmp.eq.s32.totalorder %s120, 0
      %s123 = sadd.s32 %s122, 1
      %s124 = scalar_select %p121, %s122, %s123
      %p127 = pneg %p121
      %p128 = scmp.eq.s32.totalorder %s9, 24
      %p129 = por %p127, %p128
      %p130 = scmp.ne.s32.totalorder %s122, %s125
      %p131 = scmp.eq.s32.totalorder %s9, 0
      %p132 = por %p130, %p131
      %p133 = scmp.ne.s32.totalorder %s122, %s125
      %p134 = scmp.eq.s32.totalorder %s14, 24
      %p135 = por %p133, %p134
      %p136 = scmp.ne.s32.totalorder %s125, %s126
      %p137 = scmp.eq.s32.totalorder %s14, 0
      %p138 = por %p136, %p137
      %p139 = scmp.ne.s32.totalorder %s125, %s126
      %p140 = scmp.eq.s32.totalorder %s15, 24
      %p141 = por %p139, %p140
      %p143 = scmp.ne.s32.totalorder %s126, %s142
      %p144 = scmp.eq.s32.totalorder %s15, 0
      %p145 = por %p143, %p144
      %p146 = scmp.le.s32.totalorder 1, %s9
      %p147 = scmp.lt.s32.totalorder %s9, 26
      %p148 = pnand %p146, %p147
      %p149 = pneg %p148
      // Predicated region
      $region9: #{alexnet_forward.11} parent=5 // pred_check
        _
      $region10: #{alexnet_forward.11} parent=5 // pred_check_branch
        %151 = sbr.rel (%p148) target = $region12
      $region11: #{alexnet_forward.11} parent=5 // pred_region
        %s152 = ssub.s32 %s9, 1
        // Predicated region
        $region13: #{alexnet_forward.11} parent=11 // pred_check
          %p153 = pneg %p110
        $region14: #{alexnet_forward.11} parent=11 // pred_check_branch
          %155 = sbr.rel (%p153) target = $region16
        $region15: #{alexnet_forward.11} parent=11 // pred_region
          %s156 = smul.u32 2, %s20
          %p157 = scmp.lt.s32.totalorder %s156, 1
          %s158 = scalar_select %p157, %s156, 1
          %s159 = scalar_lea.vmem %s2, %s158
          %s160 = smul.u32 2, %s20
        $region16: #{alexnet_forward.11} parent=11 // pred_fallthru
          _
      $region12: #{alexnet_forward.11} parent=5 // pred_fallthru
        _
      %p161 = scmp.lt.s32.totalorder %s9, 25
      // Predicated region
      $region17: #{alexnet_forward.11} parent=5 // pred_check
        %p162 = pneg %p161
      $region18: #{alexnet_forward.11} parent=5 // pred_check_branch
        %164 = sbr.rel (%p162) target = $region20
      $region19: #{alexnet_forward.11} parent=5 // pred_region
        // Predicated region
        $region21: #{alexnet_forward.11} parent=19 // pred_check
          %p165 = pneg %p50
        $region22: #{alexnet_forward.11} parent=19 // pred_check_branch
          %167 = sbr.rel (%p165) target = $region24
        $region23: #{alexnet_forward.11} parent=19 // pred_region
          %s168 = sand.u32 %s40, 1
          %s169 = sand.u32 %s40, 1
          %s170 = smul.addr %s169, 16
          %s171 = scalar_lea.vmem [#allocation3], %s170
          %s172 = smul.u32 4, %s16
          %s173 = smul.addr %s172, 25
          %s174 = sadd.s32 %s18, %s173
          %s175 = smul.addr %s174, 4
          %s176 = scalar_lea.vmem %s0, %s175
          // Predicated region
          $region25: #{alexnet_forward.11} parent=23 // pred_check
            _
          $region26: #{alexnet_forward.11} parent=23 // pred_check_branch
            %178 = sbr.rel (0) target = $region28
          $region27: #{alexnet_forward.11} parent=23 // pred_region
            // Predicated region
            $region29: #{alexnet_forward.11} parent=27 // pred_check
              _
            $region30: #{alexnet_forward.11} parent=27 // pred_check_branch
              %180 = sbr.rel target = $region32
            $region31: #{alexnet_forward.11} parent=27 // pred_region
              // Predicated region
              $region44: #{alexnet_forward.11} parent=31 // pred_check
                _
              $region45: #{alexnet_forward.11} parent=31 // pred_check_branch
                %201 = sbr.rel (0) target = $region47
              $region46: #{alexnet_forward.11} parent=31 // pred_region
                loop: start=0, step=1, limit=1
                $region48: #{alexnet_forward.11} parent=46 // loop_pre_header
                  _
                $region49: #{alexnet_forward.11} parent=46 // loop_header
                  %s203 = sphi 0, %s207
                  %p204 = scmp.ge.s32.totalorder %s203, 1
                  %s208 = sphi %s176, %s176
                  %s209 = sphi %s171, %s171
                $region50: #{alexnet_forward.11} parent=46 // loop_header_branch
                  %206 = sbr.rel (%p204) target = $region54
                $region51: #{alexnet_forward.11} parent=46 // loop_body
                  _
                $region52: #{alexnet_forward.11} parent=46 // loop_footer
                  %s207 = sadd.s32 1, %s203
                $region53: #{alexnet_forward.11} parent=46 // loop_footer_branch
                  %202 = sbr.rel target = $region49
                $region54: #{alexnet_forward.11} parent=46 // loop_exit
                  _
                loop: start=0, step=1, limit=1
                $region55: #{alexnet_forward.11} parent=46 // loop_pre_header
                  _
                $region56: #{alexnet_forward.11} parent=46 // loop_header
                  %s212 = sphi 0, %s216
                  %p213 = scmp.ge.s32.totalorder %s212, 1
                  %s217 = sphi %s176, %s176
                  %s218 = sphi %s171, %s171
                $region57: #{alexnet_forward.11} parent=46 // loop_header_branch
                  %215 = sbr.rel (%p213) target = $region61
                $region58: #{alexnet_forward.11} parent=46 // loop_body
                  %v219 = vld [vmem:[%s217] sm:$0xf]
                  %220 = vst [vmem:[%s218] sm:$0xf] %v219
                  %v221 = vld [vmem:[%s217 + $0x64] sm:$0xf]
                  %222 = vst [vmem:[%s218 + $0x4] sm:$0xf] %v221
                  %v223 = vld [vmem:[%s217 + $0xc8] sm:$0xf]
                  %224 = vst [vmem:[%s218 + $0x8] sm:$0xf] %v223
                  %v225 = vld [vmem:[%s217 + $0x12c] sm:$0xf]
                  %226 = vst [vmem:[%s218 + $0xc] sm:$0xf] %v225
                $region59: #{alexnet_forward.11} parent=46 // loop_footer
                  %s216 = sadd.s32 1, %s212
                $region60: #{alexnet_forward.11} parent=46 // loop_footer_branch
                  %211 = sbr.rel target = $region56
                $region61: #{alexnet_forward.11} parent=46 // loop_exit
                  _
              $region47: #{alexnet_forward.11} parent=31 // pred_fallthru
                _
            $region32: #{alexnet_forward.11} parent=27 // pred_fallthru
              _
            // Predicated region
            $region33: #{alexnet_forward.11} parent=27 // pred_check
              _
            $region34: #{alexnet_forward.11} parent=27 // pred_check_branch
              %182 = sbr.rel (0) target = $region36
            $region35: #{alexnet_forward.11} parent=27 // pred_region
              loop: start=0, step=1, limit=1
              $region37: #{alexnet_forward.11} parent=35 // loop_pre_header
                _
              $region38: #{alexnet_forward.11} parent=35 // loop_header
                %s185 = sphi 0, %s189
                %p186 = scmp.ge.s32.totalorder %s185, 1
                %s190 = sphi %s176, %s176
                %s191 = sphi %s171, %s171
              $region39: #{alexnet_forward.11} parent=35 // loop_header_branch
                %188 = sbr.rel (%p186) target = $region43
              $region40: #{alexnet_forward.11} parent=35 // loop_body
                %v192 = vld [vmem:[%s190] sm:$0xf]
                %193 = vst [vmem:[%s191] sm:$0xf] %v192
                %v194 = vld [vmem:[%s190 + $0x64] sm:$0xf]
                %195 = vst [vmem:[%s191 + $0x4] sm:$0xf] %v194
                %v196 = vld [vmem:[%s190 + $0xc8] sm:$0xf]
                %197 = vst [vmem:[%s191 + $0x8] sm:$0xf] %v196
                %v198 = vld [vmem:[%s190 + $0x12c] sm:$0xf]
                %199 = vst [vmem:[%s191 + $0xc] sm:$0xf] %v198
              $region41: #{alexnet_forward.11} parent=35 // loop_footer
                %s189 = sadd.s32 1, %s185
              $region42: #{alexnet_forward.11} parent=35 // loop_footer_branch
                %184 = sbr.rel target = $region38
              $region43: #{alexnet_forward.11} parent=35 // loop_exit
                _
            $region36: #{alexnet_forward.11} parent=27 // pred_fallthru
              _
          $region28: #{alexnet_forward.11} parent=23 // pred_fallthru
            _
          %227 = vnop
        $region24: #{alexnet_forward.11} parent=19 // pred_fallthru
          _
        // Predicated region
        $region62: #{alexnet_forward.11} parent=19 // pred_check
          %p228 = pneg %p78
        $region63: #{alexnet_forward.11} parent=19 // pred_check_branch
          %230 = sbr.rel (%p228) target = $region65
        $region64: #{alexnet_forward.11} parent=19 // pred_region
          %s231 = smul.u32 16, %s18
          %s232 = smul.u32 2, %s17
          %p233 = scmp.lt.s32.totalorder %s231, 399
          %s234 = scalar_select %p233, %s231, 399
          %p235 = scmp.lt.s32.totalorder %s232, 1
          %s236 = scalar_select %p235, %s232, 1
          %s237 = smul.addr %s234, 2
          %s238 = sadd.s32 %s236, %s237
          %s239 = smul.addr %s238, 4
          %s240 = scalar_lea.vmem %s1, %s239
          %s241 = smul.u32 16, %s18
          %s242 = smul.u32 2, %s17
        $region65: #{alexnet_forward.11} parent=19 // pred_fallthru
          _
      $region20: #{alexnet_forward.11} parent=5 // pred_fallthru
        _
      %p243 = scmp.le.s32.totalorder 1, %s9
      %p244 = scmp.lt.s32.totalorder %s9, 26
      %p245 = pnand %p243, %p244
      %p246 = pneg %p245
      // Predicated region
      $region66: #{alexnet_forward.11} parent=5 // pred_check
        _
      $region67: #{alexnet_forward.11} parent=5 // pred_check_branch
        %248 = sbr.rel (%p245) target = $region69
      $region68: #{alexnet_forward.11} parent=5 // pred_region
        %s249 = ssub.s32 %s9, 1
        %s250 = sand.u32 %s43, 1
        %s251 = sand.u32 %s43, 1
        %s252 = smul.addr %s251, 16
        %s253 = scalar_lea.vmem [#allocation3], %s252
        // Predicated region
        $region70: #{alexnet_forward.11} parent=68 // pred_check
          %p254 = pneg %p56
        $region71: #{alexnet_forward.11} parent=68 // pred_check_branch
          %256 = sbr.rel (%p254) target = $region73
        $region72: #{alexnet_forward.11} parent=68 // pred_region
          _
        $region73: #{alexnet_forward.11} parent=68 // pred_fallthru
          _
        %s257 = sand.u32 %s43, 1
        %s258 = sand.u32 %s43, 1
        %s259 = smul.addr %s258, 16
        %s260 = scalar_lea.vmem [#allocation3], %s259
        %p261 = pneg %p56
        %p262 = pneg %p53
        %s263 = smul.u32 16, %s21
        %s264 = smul.u32 2, %s20
        %p265 = scmp.lt.s32.totalorder %s263, 399
        %s266 = scalar_select %p265, %s263, 399
        %p267 = scmp.lt.s32.totalorder %s264, 1
        %s268 = scalar_select %p267, %s264, 1
        %s269 = smul.addr %s266, 2
        %s270 = sadd.s32 %s268, %s269
        %s271 = smul.addr %s270, 4
        %s272 = scalar_lea.vmem %s1, %s271
        %p273 = pneg %p84
        %p274 = pneg %p81
        %s275 = smul.u32 2, %s20
        %p276 = scmp.lt.s32.totalorder %s275, 1
        %s277 = scalar_select %p276, %s275, 1
        %s278 = scalar_lea.vmem %s2, %s277
        %p279 = pneg %p110
        %p280 = pneg %p107
        %p281 = pneg %p138
        %p282 = pneg %p135
        %s283 = smul.u32 4, %s19
        %s284 = smul.u32 2, %s20
        %p285 = scmp.lt.s32.totalorder %s283, 3
        %s286 = scalar_select %p285, %s283, 3
        %p287 = scmp.lt.s32.totalorder %s284, 1
        %s288 = scalar_select %p287, %s284, 1
        %s289 = smul.addr %s286, 2
        %s290 = sadd.s32 %s288, %s289
        %s291 = smul.addr %s290, 4
        %s292 = scalar_lea.vmem %s3, %s291
        %s293 = smul.u32 4, %s19
        %s294 = smul.u32 16, %s21
        %s295 = smul.u32 2, %s20
        %p296 = scmp.lt.s32.totalorder %s294, 399
        %s297 = scalar_select %p296, %s294, 399
        %p298 = scmp.lt.s32.totalorder %s295, 1
        %s299 = scalar_select %p298, %s295, 1
        %s300 = smul.addr %s297, 2
        %s301 = sadd.s32 %s299, %s300
        %s302 = smul.addr %s301, 4
        %s303 = scalar_lea.vmem %s1, %s302
        %s304 = smul.u32 16, %s21
        %s305 = smul.u32 2, %s20
        %s306 = smul.u32 2, %s20
        %p307 = scmp.lt.s32.totalorder %s306, 1
        %s308 = scalar_select %p307, %s306, 1
        %s309 = scalar_lea.vmem %s2, %s308
        %s310 = smul.u32 2, %s20
        %s311 = smul.u32 4, %s19
        %s312 = smul.u32 2, %s20
        %p313 = scmp.lt.s32.totalorder %s311, 3
        %s314 = scalar_select %p313, %s311, 3
        %p315 = scmp.lt.s32.totalorder %s312, 1
        %s316 = scalar_select %p315, %s312, 1
        %s317 = smul.addr %s314, 2
        %s318 = sadd.s32 %s316, %s317
        %s319 = smul.addr %s318, 4
        %s320 = scalar_lea.vmem %s3, %s319
        %s321 = smul.u32 4, %s19
        %s322 = smul.u32 2, %s20
        %p324 = scmp.eq.s32.totalorder %s21, 0
        // Predicated region
        $region74: #{alexnet_forward.11} parent=68 // pred_check
          %p325 = pneg %p324
        $region75: #{alexnet_forward.11} parent=68 // pred_check_branch
          %327 = sbr.rel (%p325) target = $region77
        $region76: #{alexnet_forward.11} parent=68 // pred_region
          %328 = vst [vmem:[#allocation2] sm:$0xff] 0.0
          %329 = vst [vmem:[#allocation2 + $0x8] sm:$0xff] 0.0
          %330 = vst [vmem:[#allocation2 + $0x10] sm:$0xff] 0.0
          %331 = vst [vmem:[#allocation2 + $0x18] sm:$0xff] 0.0
          %332 = vst [vmem:[#allocation2 + $0x20] sm:$0xff] 0.0
          %333 = vst [vmem:[#allocation2 + $0x28] sm:$0xff] 0.0
          %334 = vst [vmem:[#allocation2 + $0x30] sm:$0xff] 0.0
          %335 = vst [vmem:[#allocation2 + $0x38] sm:$0xff] 0.0
        $region77: #{alexnet_forward.11} parent=68 // pred_fallthru
          _
        %v336 = vld [vmem:[#allocation2] sm:$0xff]
        %v337 = vld [vmem:[#allocation2 + $0x8] sm:$0xff]
        %v338 = vld [vmem:[#allocation2 + $0x10] sm:$0xff]
        %v339 = vld [vmem:[#allocation2 + $0x18] sm:$0xff]
        %v340 = vld [vmem:[#allocation2 + $0x20] sm:$0xff]
        %v341 = vld [vmem:[#allocation2 + $0x28] sm:$0xff]
        %v342 = vld [vmem:[#allocation2 + $0x30] sm:$0xff]
        %v343 = vld [vmem:[#allocation2 + $0x38] sm:$0xff]
        %v344 = vld [vmem:[%s253] sm:$0xf]
        %v345 = vld [vmem:[%s253 + $0x4] sm:$0xf]
        %v346 = vld [vmem:[%s253 + $0x8] sm:$0xf]
        %v347 = vld [vmem:[%s253 + $0xc] sm:$0xf]
        %v348 = vld [vmem:[%s303] sm:$0xff]
        %v349 = vld [vmem:[%s303 + $0x8] sm:$0xff]
        %v350 = vld [vmem:[%s303 + $0x10] sm:$0xff]
        %v351 = vld [vmem:[%s303 + $0x18] sm:$0xff]
        %v352 = vld [vmem:[%s303 + $0x20] sm:$0xff]
        %v353 = vld [vmem:[%s303 + $0x28] sm:$0xff]
        %v354 = vld [vmem:[%s303 + $0x30] sm:$0xff]
        %v355 = vld [vmem:[%s303 + $0x38] sm:$0xff]
        %v356 = vld [vmem:[%s303 + $0x40] sm:$0xff]
        %v357 = vld [vmem:[%s303 + $0x48] sm:$0xff]
        %v358 = vld [vmem:[%s303 + $0x50] sm:$0xff]
        %v359 = vld [vmem:[%s303 + $0x58] sm:$0xff]
        %v360 = vld [vmem:[%s303 + $0x60] sm:$0xff]
        %v361 = vld [vmem:[%s303 + $0x68] sm:$0xff]
        %v362 = vld [vmem:[%s303 + $0x70] sm:$0xff]
        %v363 = vld [vmem:[%s303 + $0x78] sm:$0xff]
        %v368 = vunpack.c.l.b16 %v344
        %v369 = vunpack.c.l.b16 %v345
        %v370 = vunpack.c.l.b16 %v346
        %v371 = vunpack.c.l.b16 %v347
        %v372 = vpack.c.b16 %v369, %v368
        %v373 = vpack.c.b16 %v371, %v370
        %v392 = vunpack.c.l.b16 %v348
        %v393 = vunpack.c.h.b16 %v348
        %v394 = vunpack.c.l.b16 %v349
        %v395 = vunpack.c.h.b16 %v349
        %v396 = vunpack.c.l.b16 %v350
        %v397 = vunpack.c.h.b16 %v350
        %v398 = vunpack.c.l.b16 %v351
        %v399 = vunpack.c.h.b16 %v351
        %v400 = vunpack.c.l.b16 %v352
        %v401 = vunpack.c.h.b16 %v352
        %v402 = vunpack.c.l.b16 %v353
        %v403 = vunpack.c.h.b16 %v353
        %v404 = vunpack.c.l.b16 %v354
        %v405 = vunpack.c.h.b16 %v354
        %v406 = vunpack.c.l.b16 %v355
        %v407 = vunpack.c.h.b16 %v355
        %v408 = vunpack.c.l.b16 %v356
        %v409 = vunpack.c.h.b16 %v356
        %v410 = vunpack.c.l.b16 %v357
        %v411 = vunpack.c.h.b16 %v357
        %v412 = vunpack.c.l.b16 %v358
        %v413 = vunpack.c.h.b16 %v358
        %v414 = vunpack.c.l.b16 %v359
        %v415 = vunpack.c.h.b16 %v359
        %v416 = vunpack.c.l.b16 %v360
        %v417 = vunpack.c.h.b16 %v360
        %v418 = vunpack.c.l.b16 %v361
        %v419 = vunpack.c.h.b16 %v361
        %v420 = vunpack.c.l.b16 %v362
        %v421 = vunpack.c.h.b16 %v362
        %v422 = vunpack.c.l.b16 %v363
        %v423 = vunpack.c.h.b16 %v363
        %v424 = vpack.c.b16 %v394, %v392
        %v425 = vpack.c.b16 %v395, %v393
        %v426 = vpack.c.b16 %v398, %v396
        %v427 = vpack.c.b16 %v399, %v397
        %v428 = vpack.c.b16 %v402, %v400
        %v429 = vpack.c.b16 %v403, %v401
        %v430 = vpack.c.b16 %v406, %v404
        %v431 = vpack.c.b16 %v407, %v405
        %v432 = vpack.c.b16 %v410, %v408
        %v433 = vpack.c.b16 %v411, %v409
        %v434 = vpack.c.b16 %v414, %v412
        %v435 = vpack.c.b16 %v415, %v413
        %v436 = vpack.c.b16 %v418, %v416
        %v437 = vpack.c.b16 %v419, %v417
        %v438 = vpack.c.b16 %v422, %v420
        %v439 = vpack.c.b16 %v423, %v421
        %456 = vmatprep.subr.bf16.mxu0 %v425
        %457 = vmatpush1.bf16.msra.mxu0 %v424
        %458 = vmatprep.subr.bf16.mxu0 %v427
        %459 = vmatpush1.bf16.msra.mxu0 %v426
        %460 = vmatprep.subr.bf16.mxu0 %v429
        %461 = vmatpush1.bf16.msra.mxu0 %v428
        %462 = vmatprep.subr.bf16.mxu0 %v431
        %463 = vmatpush1.bf16.msra.mxu0 %v430
        %464 = vmatprep.subr.bf16.mxu0 %v433
        %465 = vmatpush1.bf16.msra.mxu0 %v432
        %466 = vmatprep.subr.bf16.mxu0 %v435
        %467 = vmatpush1.bf16.msra.mxu0 %v434
        %468 = vmatprep.subr.bf16.mxu0 %v437
        %469 = vmatpush1.bf16.msra.mxu0 %v436
        %470 = vmatprep.subr.bf16.mxu0 %v439
        %471 = vmatpush1.bf16.msra.mxu0 %v438
        %472 = vmatprep.subr.bf16.mxu0 0
        %473 = vmatpush1.bf16.msra.mxu0 0
        %474 = vmatprep.subr.bf16.mxu0 0
        %475 = vmatpush1.bf16.msra.mxu0 0
        %476 = vmatprep.subr.bf16.mxu0 0
        %477 = vmatpush1.bf16.msra.mxu0 0
        %478 = vmatprep.subr.bf16.mxu0 0
        %479 = vmatpush1.bf16.msra.mxu0 0
        %480 = vmatprep.subr.bf16.mxu0 0
        %481 = vmatpush1.bf16.msra.mxu0 0
        %482 = vmatprep.subr.bf16.mxu0 0
        %483 = vmatpush1.bf16.msra.mxu0 0
        %484 = vmatprep.subr.bf16.mxu0 0
        %485 = vmatpush1.bf16.msra.mxu0 0
        %486 = vmatprep.subr.bf16.mxu0 0
        %487 = vmatpush1.bf16.msra.mxu0 0
        %488 = vmatprep.mubr.bf16.mxu0 0
        %489 = vmatmul.mubr.bf16.gmra.mrb[0].mxu0 %v372
        %v490 = vpop.f32.mrb[0].mxu0
        %v491 = vadd.f32 0.0, %v490
        %v492 = vpop.f32.mrb[0].mxu0
        %v493 = vadd.f32 0.0, %v492
        %v494 = vpop.f32.mrb[0].mxu0
        %v495 = vadd.f32 0.0, %v494
        %v496 = vpop.f32.mrb[0].mxu0
        %v497 = vadd.f32 0.0, %v496
        %498 = vmatprep.mubr.bf16.mxu0 0
        %499 = vmatmul.mubr.bf16.gmra.mrb[0].mxu0 %v373
        %v500 = vpop.f32.mrb[0].mxu0
        %v501 = vadd.f32 0.0, %v500
        %v502 = vpop.f32.mrb[0].mxu0
        %v503 = vadd.f32 0.0, %v502
        %v504 = vpop.f32.mrb[0].mxu0
        %v505 = vadd.f32 0.0, %v504
        %v506 = vpop.f32.mrb[0].mxu0
        %v507 = vadd.f32 0.0, %v506
        %508 = vdwg.mxu0
        %v509 = vadd.f32 %v336, %v491
        %v510 = vadd.f32 %v337, %v493
        %v511 = vadd.f32 %v338, %v495
        %v512 = vadd.f32 %v339, %v497
        %v513 = vadd.f32 %v340, %v501
        %v514 = vadd.f32 %v341, %v503
        %v515 = vadd.f32 %v342, %v505
        %v516 = vadd.f32 %v343, %v507
        %517 = vst [vmem:[#allocation2] sm:$0xff] %v509
        %518 = vst [vmem:[#allocation2 + $0x8] sm:$0xff] %v510
        %519 = vst [vmem:[#allocation2 + $0x10] sm:$0xff] %v511
        %520 = vst [vmem:[#allocation2 + $0x18] sm:$0xff] %v512
        %521 = vst [vmem:[#allocation2 + $0x20] sm:$0xff] %v513
        %522 = vst [vmem:[#allocation2 + $0x28] sm:$0xff] %v514
        %523 = vst [vmem:[#allocation2 + $0x30] sm:$0xff] %v515
        %524 = vst [vmem:[#allocation2 + $0x38] sm:$0xff] %v516
        %p525 = scmp.eq.s32.totalorder %s21, 24
        // Predicated region
        $region78: #{alexnet_forward.11} parent=68 // pred_check
          %p526 = pneg %p525
        $region79: #{alexnet_forward.11} parent=68 // pred_check_branch
          %528 = sbr.rel (%p526) target = $region81
        $region80: #{alexnet_forward.11} parent=68 // pred_region
          %v529 = vld [vmem:[#allocation2] sm:$0xff]
          %v530 = vld [vmem:[#allocation2 + $0x8] sm:$0xff]
          %v531 = vld [vmem:[#allocation2 + $0x10] sm:$0xff]
          %v532 = vld [vmem:[#allocation2 + $0x18] sm:$0xff]
          %v533 = vld [vmem:[#allocation2 + $0x20] sm:$0xff]
          %v534 = vld [vmem:[#allocation2 + $0x28] sm:$0xff]
          %v535 = vld [vmem:[#allocation2 + $0x30] sm:$0xff]
          %v536 = vld [vmem:[#allocation2 + $0x38] sm:$0xff]
          %v537 = vld [vmem:[%s309] sm:$0x3]
          %v539 = vlaneseq
          %v540 = vshrl.u32 %v539, 7
          %v541 = vsub.s32 0, %v540
          %v542 = vrot.slane %v537, %v541
          %v543 = vlaneseq
          %v544 = vshrl.u32 %v543, 7
          %v545 = vsub.s32 1, %v544
          %v546 = vrot.slane %v537, %v545
          %v549 = vadd.f32 %v529, %v542
          %v550 = vadd.f32 %v530, %v546
          %v551 = vadd.f32 %v531, %v542
          %v552 = vadd.f32 %v532, %v546
          %v553 = vadd.f32 %v533, %v542
          %v554 = vadd.f32 %v534, %v546
          %v555 = vadd.f32 %v535, %v542
          %v556 = vadd.f32 %v536, %v546
          %v557 = vmax.f32 %v549, 0.0
          %v558 = vmax.f32 %v550, 0.0
          %v559 = vmax.f32 %v551, 0.0
          %v560 = vmax.f32 %v552, 0.0
          %v561 = vmax.f32 %v553, 0.0
          %v562 = vmax.f32 %v554, 0.0
          %v563 = vmax.f32 %v555, 0.0
          %v564 = vmax.f32 %v556, 0.0
          %v565 = vpack.c.bf16 %v559, %v557
          %v566 = vpack.c.bf16 %v560, %v558
          %v567 = vpack.c.bf16 %v563, %v561
          %v568 = vpack.c.bf16 %v564, %v562
          %v573 = vunpack.c.l.b16 %v565
          %v574 = vunpack.c.l.b16 %v566
          %v575 = vunpack.c.h.b16 %v565
          %v576 = vunpack.c.h.b16 %v566
          %v577 = vunpack.c.l.b16 %v567
          %v578 = vunpack.c.l.b16 %v568
          %v579 = vunpack.c.h.b16 %v567
          %v580 = vunpack.c.h.b16 %v568
          %v581 = vpack.c.b16 %v574, %v573
          %v582 = vpack.c.b16 %v576, %v575
          %v583 = vpack.c.b16 %v578, %v577
          %v584 = vpack.c.b16 %v580, %v579
          %589 = vst [vmem:[%s320] sm:$0xff] %v581
          %590 = vst [vmem:[%s320 + $0x8] sm:$0xff] %v582
          %591 = vst [vmem:[%s320 + $0x10] sm:$0xff] %v583
          %592 = vst [vmem:[%s320 + $0x18] sm:$0xff] %v584
        $region81: #{alexnet_forward.11} parent=68 // pred_fallthru
          _
        %s593 = smul.u32 4, %s19
        %s594 = smul.u32 2, %s20
        %p595 = scmp.lt.s32.totalorder %s593, 3
        %s596 = scalar_select %p595, %s593, 3
        %p597 = scmp.lt.s32.totalorder %s594, 1
        %s598 = scalar_select %p597, %s594, 1
        %s599 = smul.addr %s596, 2
        %s600 = sadd.s32 %s598, %s599
        %s601 = smul.addr %s600, 4
        %s602 = scalar_lea.vmem %s3, %s601
        // Predicated region
        $region82: #{alexnet_forward.11} parent=68 // pred_check
          %p603 = pneg %p135
        $region83: #{alexnet_forward.11} parent=68 // pred_check_branch
          %605 = sbr.rel (%p603) target = $region85
        $region84: #{alexnet_forward.11} parent=68 // pred_region
          %s606 = smul.u32 4, %s19
          %s607 = smul.u32 2, %s20
        $region85: #{alexnet_forward.11} parent=68 // pred_fallthru
          _
        // Predicated region
        $region86: #{alexnet_forward.11} parent=68 // pred_check
          %p608 = pneg %p135
        $region87: #{alexnet_forward.11} parent=68 // pred_check_branch
          %610 = sbr.rel (%p608) target = $region89
        $region88: #{alexnet_forward.11} parent=68 // pred_region
          %s611 = smul.u32 4, %s19
          %s612 = smul.u32 2, %s20
          %p613 = scmp.lt.s32.totalorder %s611, 3
          %s614 = scalar_select %p613, %s611, 3
          %p615 = scmp.lt.s32.totalorder %s612, 1
          %s616 = scalar_select %p615, %s612, 1
          %s617 = smul.addr %s614, 2
          %s618 = sadd.s32 %s616, %s617
          %s619 = smul.addr %s618, 4
          %s620 = scalar_lea.vmem %s3, %s619
        $region89: #{alexnet_forward.11} parent=68 // pred_fallthru
          _
      $region69: #{alexnet_forward.11} parent=5 // pred_fallthru
        _
      %p621 = scmp.le.s32.totalorder 2, %s9
      // Predicated region
      $region90: #{alexnet_forward.11} parent=5 // pred_check
        %p622 = pneg %p621
      $region91: #{alexnet_forward.11} parent=5 // pred_check_branch
        %624 = sbr.rel (%p622) target = $region93
      $region92: #{alexnet_forward.11} parent=5 // pred_region
        %s625 = ssub.s32 %s9, 2
      $region93: #{alexnet_forward.11} parent=5 // pred_fallthru
        _
    $region6: #{alexnet_forward.11} parent=1 // loop_footer
      %s13 = sadd.s32 1, %s9
    $region7: #{alexnet_forward.11} parent=1 // loop_footer_branch
      %8 = sbr.rel target = $region3
    $region8: #{alexnet_forward.11} parent=1 // loop_exit
      _

// kernel: alexnet_forward.12
$region0: #{alexnet_forward.12}
  #allocation0 [shape = 'u32[]', space=smem, size = 0x4, offset = 0x4, fixed_abs, tag = 'smem constant byte address 0x4 - core index']
  #allocation1 [shape = 'u32[144,128]{1,0:T(1,128)}', space=vmem, size = 0x12000, scoped, tag = 'internal scratch']
  %s0 = inlined_call_operand.vmem [shape: bf16[4,2,2,512], index: 0, kind: input, shape index: {}]
  %s1 = inlined_call_operand.vmem [shape: bf16[4,2,256], index: 1, kind: output, shape index: {}]
  %s2 = sld [smem:[#allocation0]]
  $region14: #{alexnet_forward.12} parent=0
    _
  %s4 = ssub.s32 1, %s2
  %s5 = scalar_select 0, %s4, %s2
  // Predicated region
  $region2: #{alexnet_forward.12} parent=0 // pred_check
    _
  $region3: #{alexnet_forward.12} parent=0 // pred_check_branch
    %7 = sbr.rel (0) target = $region5
  $region4: #{alexnet_forward.12} parent=0 // pred_region
    _
  $region5: #{alexnet_forward.12} parent=0 // pred_fallthru
    _
  %v8 = vld [vmem:[%s0] sm:$0xf]
  %v9 = vld [vmem:[%s0 + $0x4] sm:$0xf]
  %v10 = vld [vmem:[%s0 + $0x8] sm:$0xf]
  %v11 = vld [vmem:[%s0 + $0xc] sm:$0xf]
  %v12 = vld [vmem:[%s0 + $0x10] sm:$0xf]
  %v13 = vld [vmem:[%s0 + $0x14] sm:$0xf]
  %v14 = vld [vmem:[%s0 + $0x18] sm:$0xf]
  %v15 = vld [vmem:[%s0 + $0x1c] sm:$0xf]
  %v20 = vrot.slane %v8, 2
  %v21 = vrot.slane %v10, 2
  %v22 = vrot.slane %v12, 2
  %v23 = vrot.slane %v14, 2
  %v28 = vmax.bf16 %v8, %v20
  %v29 = vmax.bf16 %v10, %v21
  %v30 = vmax.bf16 %v12, %v22
  %v31 = vmax.bf16 %v14, %v23
  %v36 = vrot.slane %v9, 2
  %v37 = vrot.slane %v11, 2
  %v38 = vrot.slane %v13, 2
  %v39 = vrot.slane %v15, 2
  %v44 = vmax.bf16 %v9, %v36
  %v45 = vmax.bf16 %v11, %v37
  %v46 = vmax.bf16 %v13, %v38
  %v47 = vmax.bf16 %v15, %v39
  %v48 = vmax.bf16 %v28, %v44
  %v49 = vmax.bf16 %v29, %v45
  %v50 = vmax.bf16 %v30, %v46
  %v51 = vmax.bf16 %v31, %v47
  %52 = vst [vmem:[%s1] sm:$0x3] %v48
  %53 = vst [vmem:[%s1 + $0x2] sm:$0x3] %v49
  %54 = vst [vmem:[%s1 + $0x4] sm:$0x3] %v50
  %55 = vst [vmem:[%s1 + $0x6] sm:$0x3] %v51
  // Predicated region
  $region6: #{alexnet_forward.12} parent=0 // pred_check
    _
  $region7: #{alexnet_forward.12} parent=0 // pred_check_branch
    %57 = sbr.rel (0) target = $region9
  $region8: #{alexnet_forward.12} parent=0 // pred_region
    _
  $region9: #{alexnet_forward.12} parent=0 // pred_fallthru
    _
  // Predicated region
  $region10: #{alexnet_forward.12} parent=0 // pred_check
    _
  $region11: #{alexnet_forward.12} parent=0 // pred_check_branch
    %59 = sbr.rel (0) target = $region13
  $region12: #{alexnet_forward.12} parent=0 // pred_region
    _
  $region13: #{alexnet_forward.12} parent=0 // pred_fallthru
    _

// kernel: alexnet_forward.13
$region0: #{alexnet_forward.13}
  #allocation0 [shape = 'u32[]', space=smem, size = 0x4, offset = 0x4, fixed_abs, tag = 'smem constant byte address 0x4 - core index']
  #allocation1 [shape = 'u32[144,128]{1,0:T(1,128)}', space=vmem, size = 0x12000, scoped, tag = 'internal scratch']
  #allocation2 [shape = 'f32[8,128]{1,0:T(8,128)}', space=vmem, size = 0x1000, scoped, tag = 'scratch operand']
  %s0 = inlined_call_operand.vmem [shape: bf16[8,2304], index: 0, kind: input, shape index: {}]
  %s1 = inlined_call_operand.vmem [shape: bf16[2304,384], index: 1, kind: input, shape index: {}]
  %s2 = inlined_call_operand.vmem [shape: f32[1,384], index: 2, kind: input, shape index: {}]
  %s3 = inlined_call_operand.vmem [shape: bf16[8,384], index: 3, kind: output, shape index: {}]
  %s4 = sld [smem:[#allocation0]]
  $region94: #{alexnet_forward.13} parent=0
    _
  %s6 = ssub.s32 1, %s4
  %s7 = scalar_select 0, %s6, %s4
  $region1: #{alexnet_forward.13} parent=0
    #allocation3 [shape = 'u8[196608]{0}', space=vmem, size = 0x30000, scoped, tag = 'input window, operand 1']
    loop: start=0, step=1, limit=20
    $region2: #{alexnet_forward.13} parent=1 // loop_pre_header
      _
    $region3: #{alexnet_forward.13} parent=1 // loop_header
      %s9 = sphi 0, %s13
      %p10 = scmp.ge.s32.totalorder %s9, 20
      %s16 = sphi 0, %s35
      %s17 = sphi 0, %s31
      %s18 = sphi 0, %s27
      %s19 = sphi 0, %s16
      %s20 = sphi 0, %s17
      %s21 = sphi 0, %s18
      %s22 = sphi 0, %s19
      %s23 = sphi 0, %s20
      %s24 = sphi 0, %s21
      %s40 = sphi 0, %s42
      %s43 = sphi 0, %s40
      %s44 = sphi 0, %s43
      %s60 = sphi 0, %s44
      %s68 = sphi 0, %s70
      %s71 = sphi 0, %s68
      %s72 = sphi 0, %s71
      %s88 = sphi 0, %s72
      %s94 = sphi 0, %s96
      %s97 = sphi 0, %s94
      %s98 = sphi 0, %s97
      %s114 = sphi 0, %s98
      %s122 = sphi 0, %s124
      %s125 = sphi 0, %s122
      %s126 = sphi 0, %s125
      %s142 = sphi 0, %s126
    $region4: #{alexnet_forward.13} parent=1 // loop_header_branch
      %12 = sbr.rel (%p10) target = $region8
    $region5: #{alexnet_forward.13} parent=1 // loop_body
      %s14 = ssub.s32 %s9, 1
      %s15 = ssub.s32 %s9, 2
      %s25 = sadd.s32 1, %s18
      %p26 = scmp.ge.s32.totalorder %s25, 6
      %s27 = scalar_select %p26, 0, %s25
      %s28 = sadd.s32 1, %s17
      %s29 = scalar_select %p26, %s28, %s17
      %p30 = scmp.ge.s32.totalorder %s29, 3
      %s31 = scalar_select %p30, 0, %s29
      %s32 = sadd.s32 1, %s16
      %s33 = scalar_select %p30, %s32, %s16
      %p34 = scmp.ge.s32.totalorder %s33, 1
      %s35 = scalar_select %p34, 0, %s33
      %s36 = ssub.s32 %s16, %s35
      %s37 = ssub.s32 %s18, %s27
      %s38 = sor.u32 %s36, %s37
      %p39 = scmp.eq.s32.totalorder %s38, 0
      %s41 = sadd.s32 %s40, 1
      %s42 = scalar_select %p39, %s40, %s41
      %p45 = pneg %p39
      %p46 = scmp.eq.s32.totalorder %s9, 17
      %p47 = por %p45, %p46
      %p48 = scmp.ne.s32.totalorder %s40, %s43
      %p49 = scmp.eq.s32.totalorder %s9, 0
      %p50 = por %p48, %p49
      %p51 = scmp.ne.s32.totalorder %s40, %s43
      %p52 = scmp.eq.s32.totalorder %s14, 17
      %p53 = por %p51, %p52
      %p54 = scmp.ne.s32.totalorder %s43, %s44
      %p55 = scmp.eq.s32.totalorder %s14, 0
      %p56 = por %p54, %p55
      %p57 = scmp.ne.s32.totalorder %s43, %s44
      %p58 = scmp.eq.s32.totalorder %s15, 17
      %p59 = por %p57, %p58
      %p61 = scmp.ne.s32.totalorder %s44, %s60
      %p62 = scmp.eq.s32.totalorder %s15, 0
      %p63 = por %p61, %p62
      %s64 = ssub.s32 %s18, %s27
      %s65 = ssub.s32 %s17, %s31
      %s66 = sor.u32 %s64, %s65
      %p67 = scmp.eq.s32.totalorder %s66, 0
      %s69 = sadd.s32 %s68, 1
      %s70 = scalar_select %p67, %s68, %s69
      %p73 = pneg %p67
      %p74 = scmp.eq.s32.totalorder %s9, 17
      %p75 = por %p73, %p74
      %p76 = scmp.ne.s32.totalorder %s68, %s71
      %p77 = scmp.eq.s32.totalorder %s9, 0
      %p78 = por %p76, %p77
      %p79 = scmp.ne.s32.totalorder %s68, %s71
      %p80 = scmp.eq.s32.totalorder %s14, 17
      %p81 = por %p79, %p80
      %p82 = scmp.ne.s32.totalorder %s71, %s72
      %p83 = scmp.eq.s32.totalorder %s14, 0
      %p84 = por %p82, %p83
      %p85 = scmp.ne.s32.totalorder %s71, %s72
      %p86 = scmp.eq.s32.totalorder %s15, 17
      %p87 = por %p85, %p86
      %p89 = scmp.ne.s32.totalorder %s72, %s88
      %p90 = scmp.eq.s32.totalorder %s15, 0
      %p91 = por %p89, %p90
      %s92 = ssub.s32 %s17, %s31
      %p93 = scmp.eq.s32.totalorder %s92, 0
      %s95 = sadd.s32 %s94, 1
      %s96 = scalar_select %p93, %s94, %s95
      %p99 = pneg %p93
      %p100 = scmp.eq.s32.totalorder %s9, 17
      %p101 = por %p99, %p100
      %p102 = scmp.ne.s32.totalorder %s94, %s97
      %p103 = scmp.eq.s32.totalorder %s9, 0
      %p104 = por %p102, %p103
      %p105 = scmp.ne.s32.totalorder %s94, %s97
      %p106 = scmp.eq.s32.totalorder %s14, 17
      %p107 = por %p105, %p106
      %p108 = scmp.ne.s32.totalorder %s97, %s98
      %p109 = scmp.eq.s32.totalorder %s14, 0
      %p110 = por %p108, %p109
      %p111 = scmp.ne.s32.totalorder %s97, %s98
      %p112 = scmp.eq.s32.totalorder %s15, 17
      %p113 = por %p111, %p112
      %p115 = scmp.ne.s32.totalorder %s98, %s114
      %p116 = scmp.eq.s32.totalorder %s15, 0
      %p117 = por %p115, %p116
      %s118 = ssub.s32 %s16, %s35
      %s119 = ssub.s32 %s17, %s31
      %s120 = sor.u32 %s118, %s119
      %p121 = scmp.eq.s32.totalorder %s120, 0
      %s123 = sadd.s32 %s122, 1
      %s124 = scalar_select %p121, %s122, %s123
      %p127 = pneg %p121
      %p128 = scmp.eq.s32.totalorder %s9, 17
      %p129 = por %p127, %p128
      %p130 = scmp.ne.s32.totalorder %s122, %s125
      %p131 = scmp.eq.s32.totalorder %s9, 0
      %p132 = por %p130, %p131
      %p133 = scmp.ne.s32.totalorder %s122, %s125
      %p134 = scmp.eq.s32.totalorder %s14, 17
      %p135 = por %p133, %p134
      %p136 = scmp.ne.s32.totalorder %s125, %s126
      %p137 = scmp.eq.s32.totalorder %s14, 0
      %p138 = por %p136, %p137
      %p139 = scmp.ne.s32.totalorder %s125, %s126
      %p140 = scmp.eq.s32.totalorder %s15, 17
      %p141 = por %p139, %p140
      %p143 = scmp.ne.s32.totalorder %s126, %s142
      %p144 = scmp.eq.s32.totalorder %s15, 0
      %p145 = por %p143, %p144
      %p146 = scmp.le.s32.totalorder 1, %s9
      %p147 = scmp.lt.s32.totalorder %s9, 19
      %p148 = pnand %p146, %p147
      %p149 = pneg %p148
      // Predicated region
      $region9: #{alexnet_forward.13} parent=5 // pred_check
        _
      $region10: #{alexnet_forward.13} parent=5 // pred_check_branch
        %151 = sbr.rel (%p148) target = $region12
      $region11: #{alexnet_forward.13} parent=5 // pred_region
        %s152 = ssub.s32 %s9, 1
      $region12: #{alexnet_forward.13} parent=5 // pred_fallthru
        _
      %p153 = scmp.lt.s32.totalorder %s9, 18
      // Predicated region
      $region13: #{alexnet_forward.13} parent=5 // pred_check
        %p154 = pneg %p153
      $region14: #{alexnet_forward.13} parent=5 // pred_check_branch
        %156 = sbr.rel (%p154) target = $region16
      $region15: #{alexnet_forward.13} parent=5 // pred_region
        // Predicated region
        $region17: #{alexnet_forward.13} parent=15 // pred_check
          %p157 = pneg %p50
        $region18: #{alexnet_forward.13} parent=15 // pred_check_branch
          %159 = sbr.rel (%p157) target = $region20
        $region19: #{alexnet_forward.13} parent=15 // pred_region
          %s160 = smul.u32 3, %s18
          %p161 = scmp.lt.s32.totalorder %s16, 0
          %s162 = scalar_select %p161, %s16, 0
          %p163 = scmp.lt.s32.totalorder %s160, 17
          %s164 = scalar_select %p163, %s160, 17
          %s165 = smul.addr %s162, 18
          %s166 = sadd.s32 %s164, %s165
          %s167 = smul.addr %s166, 4
          %s168 = scalar_lea.vmem %s0, %s167
          %s169 = smul.u32 3, %s18
        $region20: #{alexnet_forward.13} parent=15 // pred_fallthru
          _
        // Predicated region
        $region21: #{alexnet_forward.13} parent=15 // pred_check
          %p170 = pneg %p78
        $region22: #{alexnet_forward.13} parent=15 // pred_check_branch
          %172 = sbr.rel (%p170) target = $region24
        $region23: #{alexnet_forward.13} parent=15 // pred_region
          %s173 = sand.u32 %s68, 1
          %s174 = sand.u32 %s68, 1
          %s175 = smul.addr %s174, 192
          %s176 = scalar_lea.vmem [#allocation3], %s175
          %s177 = smul.u32 48, %s18
          %s178 = smul.addr %s177, 3
          %s179 = sadd.s32 %s17, %s178
          %s180 = smul.addr %s179, 4
          %s181 = scalar_lea.vmem %s1, %s180
          // Predicated region
          $region25: #{alexnet_forward.13} parent=23 // pred_check
            _
          $region26: #{alexnet_forward.13} parent=23 // pred_check_branch
            %183 = sbr.rel (0) target = $region28
          $region27: #{alexnet_forward.13} parent=23 // pred_region
            // Predicated region
            $region29: #{alexnet_forward.13} parent=27 // pred_check
              _
            $region30: #{alexnet_forward.13} parent=27 // pred_check_branch
              %185 = sbr.rel target = $region32
            $region31: #{alexnet_forward.13} parent=27 // pred_region
              // Predicated region
              $region44: #{alexnet_forward.13} parent=31 // pred_check
                _
              $region45: #{alexnet_forward.13} parent=31 // pred_check_branch
                %294 = sbr.rel (0) target = $region47
              $region46: #{alexnet_forward.13} parent=31 // pred_region
                loop: start=0, step=1, limit=1
                $region48: #{alexnet_forward.13} parent=46 // loop_pre_header
                  _
                $region49: #{alexnet_forward.13} parent=46 // loop_header
                  %s296 = sphi 0, %s300
                  %p297 = scmp.ge.s32.totalorder %s296, 1
                  %s301 = sphi %s181, %s181
                  %s302 = sphi %s176, %s176
                $region50: #{alexnet_forward.13} parent=46 // loop_header_branch
                  %299 = sbr.rel (%p297) target = $region54
                $region51: #{alexnet_forward.13} parent=46 // loop_body
                  _
                $region52: #{alexnet_forward.13} parent=46 // loop_footer
                  %s300 = sadd.s32 1, %s296
                $region53: #{alexnet_forward.13} parent=46 // loop_footer_branch
                  %295 = sbr.rel target = $region49
                $region54: #{alexnet_forward.13} parent=46 // loop_exit
                  _
                loop: start=0, step=1, limit=1
                $region55: #{alexnet_forward.13} parent=46 // loop_pre_header
                  _
                $region56: #{alexnet_forward.13} parent=46 // loop_header
                  %s305 = sphi 0, %s309
                  %p306 = scmp.ge.s32.totalorder %s305, 1
                  %s310 = sphi %s181, %s181
                  %s311 = sphi %s176, %s176
                $region57: #{alexnet_forward.13} parent=46 // loop_header_branch
                  %308 = sbr.rel (%p306) target = $region61
                $region58: #{alexnet_forward.13} parent=46 // loop_body
                  %v312 = vld [vmem:[%s310] sm:$0xf]
                  %313 = vst [vmem:[%s311] sm:$0xf] %v312
                  %v314 = vld [vmem:[%s310 + $0xc] sm:$0xf]
                  %315 = vst [vmem:[%s311 + $0x4] sm:$0xf] %v314
                  %v316 = vld [vmem:[%s310 + $0x18] sm:$0xf]
                  %317 = vst [vmem:[%s311 + $0x8] sm:$0xf] %v316
                  %v318 = vld [vmem:[%s310 + $0x24] sm:$0xf]
                  %319 = vst [vmem:[%s311 + $0xc] sm:$0xf] %v318
                  %v320 = vld [vmem:[%s310 + $0x30] sm:$0xf]
                  %321 = vst [vmem:[%s311 + $0x10] sm:$0xf] %v320
                  %v322 = vld [vmem:[%s310 + $0x3c] sm:$0xf]
                  %323 = vst [vmem:[%s311 + $0x14] sm:$0xf] %v322
                  %v324 = vld [vmem:[%s310 + $0x48] sm:$0xf]
                  %325 = vst [vmem:[%s311 + $0x18] sm:$0xf] %v324
                  %v326 = vld [vmem:[%s310 + $0x54] sm:$0xf]
                  %327 = vst [vmem:[%s311 + $0x1c] sm:$0xf] %v326
                  %v328 = vld [vmem:[%s310 + $0x60] sm:$0xf]
                  %329 = vst [vmem:[%s311 + $0x20] sm:$0xf] %v328
                  %v330 = vld [vmem:[%s310 + $0x6c] sm:$0xf]
                  %331 = vst [vmem:[%s311 + $0x24] sm:$0xf] %v330
                  %v332 = vld [vmem:[%s310 + $0x78] sm:$0xf]
                  %333 = vst [vmem:[%s311 + $0x28] sm:$0xf] %v332
                  %v334 = vld [vmem:[%s310 + $0x84] sm:$0xf]
                  %335 = vst [vmem:[%s311 + $0x2c] sm:$0xf] %v334
                  %v336 = vld [vmem:[%s310 + $0x90] sm:$0xf]
                  %337 = vst [vmem:[%s311 + $0x30] sm:$0xf] %v336
                  %v338 = vld [vmem:[%s310 + $0x9c] sm:$0xf]
                  %339 = vst [vmem:[%s311 + $0x34] sm:$0xf] %v338
                  %v340 = vld [vmem:[%s310 + $0xa8] sm:$0xf]
                  %341 = vst [vmem:[%s311 + $0x38] sm:$0xf] %v340
                  %v342 = vld [vmem:[%s310 + $0xb4] sm:$0xf]
                  %343 = vst [vmem:[%s311 + $0x3c] sm:$0xf] %v342
                  %v344 = vld [vmem:[%s310 + $0xc0] sm:$0xf]
                  %345 = vst [vmem:[%s311 + $0x40] sm:$0xf] %v344
                  %v346 = vld [vmem:[%s310 + $0xcc] sm:$0xf]
                  %347 = vst [vmem:[%s311 + $0x44] sm:$0xf] %v346
                  %v348 = vld [vmem:[%s310 + $0xd8] sm:$0xf]
                  %349 = vst [vmem:[%s311 + $0x48] sm:$0xf] %v348
                  %v350 = vld [vmem:[%s310 + $0xe4] sm:$0xf]
                  %351 = vst [vmem:[%s311 + $0x4c] sm:$0xf] %v350
                  %v352 = vld [vmem:[%s310 + $0xf0] sm:$0xf]
                  %353 = vst [vmem:[%s311 + $0x50] sm:$0xf] %v352
                  %v354 = vld [vmem:[%s310 + $0xfc] sm:$0xf]
                  %355 = vst [vmem:[%s311 + $0x54] sm:$0xf] %v354
                  %v356 = vld [vmem:[%s310 + $0x108] sm:$0xf]
                  %357 = vst [vmem:[%s311 + $0x58] sm:$0xf] %v356
                  %v358 = vld [vmem:[%s310 + $0x114] sm:$0xf]
                  %359 = vst [vmem:[%s311 + $0x5c] sm:$0xf] %v358
                  %v360 = vld [vmem:[%s310 + $0x120] sm:$0xf]
                  %361 = vst [vmem:[%s311 + $0x60] sm:$0xf] %v360
                  %v362 = vld [vmem:[%s310 + $0x12c] sm:$0xf]
                  %363 = vst [vmem:[%s311 + $0x64] sm:$0xf] %v362
                  %v364 = vld [vmem:[%s310 + $0x138] sm:$0xf]
                  %365 = vst [vmem:[%s311 + $0x68] sm:$0xf] %v364
                  %v366 = vld [vmem:[%s310 + $0x144] sm:$0xf]
                  %367 = vst [vmem:[%s311 + $0x6c] sm:$0xf] %v366
                  %v368 = vld [vmem:[%s310 + $0x150] sm:$0xf]
                  %369 = vst [vmem:[%s311 + $0x70] sm:$0xf] %v368
                  %v370 = vld [vmem:[%s310 + $0x15c] sm:$0xf]
                  %371 = vst [vmem:[%s311 + $0x74] sm:$0xf] %v370
                  %v372 = vld [vmem:[%s310 + $0x168] sm:$0xf]
                  %373 = vst [vmem:[%s311 + $0x78] sm:$0xf] %v372
                  %v374 = vld [vmem:[%s310 + $0x174] sm:$0xf]
                  %375 = vst [vmem:[%s311 + $0x7c] sm:$0xf] %v374
                  %v376 = vld [vmem:[%s310 + $0x180] sm:$0xf]
                  %377 = vst [vmem:[%s311 + $0x80] sm:$0xf] %v376
                  %v378 = vld [vmem:[%s310 + $0x18c] sm:$0xf]
                  %379 = vst [vmem:[%s311 + $0x84] sm:$0xf] %v378
                  %v380 = vld [vmem:[%s310 + $0x198] sm:$0xf]
                  %381 = vst [vmem:[%s311 + $0x88] sm:$0xf] %v380
                  %v382 = vld [vmem:[%s310 + $0x1a4] sm:$0xf]
                  %383 = vst [vmem:[%s311 + $0x8c] sm:$0xf] %v382
                  %v384 = vld [vmem:[%s310 + $0x1b0] sm:$0xf]
                  %385 = vst [vmem:[%s311 + $0x90] sm:$0xf] %v384
                  %v386 = vld [vmem:[%s310 + $0x1bc] sm:$0xf]
                  %387 = vst [vmem:[%s311 + $0x94] sm:$0xf] %v386
                  %v388 = vld [vmem:[%s310 + $0x1c8] sm:$0xf]
                  %389 = vst [vmem:[%s311 + $0x98] sm:$0xf] %v388
                  %v390 = vld [vmem:[%s310 + $0x1d4] sm:$0xf]
                  %391 = vst [vmem:[%s311 + $0x9c] sm:$0xf] %v390
                  %v392 = vld [vmem:[%s310 + $0x1e0] sm:$0xf]
                  %393 = vst [vmem:[%s311 + $0xa0] sm:$0xf] %v392
                  %v394 = vld [vmem:[%s310 + $0x1ec] sm:$0xf]
                  %395 = vst [vmem:[%s311 + $0xa4] sm:$0xf] %v394
                  %v396 = vld [vmem:[%s310 + $0x1f8] sm:$0xf]
                  %397 = vst [vmem:[%s311 + $0xa8] sm:$0xf] %v396
                  %v398 = vld [vmem:[%s310 + $0x204] sm:$0xf]
                  %399 = vst [vmem:[%s311 + $0xac] sm:$0xf] %v398
                  %v400 = vld [vmem:[%s310 + $0x210] sm:$0xf]
                  %401 = vst [vmem:[%s311 + $0xb0] sm:$0xf] %v400
                  %v402 = vld [vmem:[%s310 + $0x21c] sm:$0xf]
                  %403 = vst [vmem:[%s311 + $0xb4] sm:$0xf] %v402
                  %v404 = vld [vmem:[%s310 + $0x228] sm:$0xf]
                  %405 = vst [vmem:[%s311 + $0xb8] sm:$0xf] %v404
                  %v406 = vld [vmem:[%s310 + $0x234] sm:$0xf]
                  %407 = vst [vmem:[%s311 + $0xbc] sm:$0xf] %v406
                $region59: #{alexnet_forward.13} parent=46 // loop_footer
                  %s309 = sadd.s32 1, %s305
                $region60: #{alexnet_forward.13} parent=46 // loop_footer_branch
                  %304 = sbr.rel target = $region56
                $region61: #{alexnet_forward.13} parent=46 // loop_exit
                  _
              $region47: #{alexnet_forward.13} parent=31 // pred_fallthru
                _
            $region32: #{alexnet_forward.13} parent=27 // pred_fallthru
              _
            // Predicated region
            $region33: #{alexnet_forward.13} parent=27 // pred_check
              _
            $region34: #{alexnet_forward.13} parent=27 // pred_check_branch
              %187 = sbr.rel (0) target = $region36
            $region35: #{alexnet_forward.13} parent=27 // pred_region
              loop: start=0, step=1, limit=1
              $region37: #{alexnet_forward.13} parent=35 // loop_pre_header
                _
              $region38: #{alexnet_forward.13} parent=35 // loop_header
                %s190 = sphi 0, %s194
                %p191 = scmp.ge.s32.totalorder %s190, 1
                %s195 = sphi %s181, %s181
                %s196 = sphi %s176, %s176
              $region39: #{alexnet_forward.13} parent=35 // loop_header_branch
                %193 = sbr.rel (%p191) target = $region43
              $region40: #{alexnet_forward.13} parent=35 // loop_body
                %v197 = vld [vmem:[%s195] sm:$0xf]
                %198 = vst [vmem:[%s196] sm:$0xf] %v197
                %v199 = vld [vmem:[%s195 + $0xc] sm:$0xf]
                %200 = vst [vmem:[%s196 + $0x4] sm:$0xf] %v199
                %v201 = vld [vmem:[%s195 + $0x18] sm:$0xf]
                %202 = vst [vmem:[%s196 + $0x8] sm:$0xf] %v201
                %v203 = vld [vmem:[%s195 + $0x24] sm:$0xf]
                %204 = vst [vmem:[%s196 + $0xc] sm:$0xf] %v203
                %v205 = vld [vmem:[%s195 + $0x30] sm:$0xf]
                %206 = vst [vmem:[%s196 + $0x10] sm:$0xf] %v205
                %v207 = vld [vmem:[%s195 + $0x3c] sm:$0xf]
                %208 = vst [vmem:[%s196 + $0x14] sm:$0xf] %v207
                %v209 = vld [vmem:[%s195 + $0x48] sm:$0xf]
                %210 = vst [vmem:[%s196 + $0x18] sm:$0xf] %v209
                %v211 = vld [vmem:[%s195 + $0x54] sm:$0xf]
                %212 = vst [vmem:[%s196 + $0x1c] sm:$0xf] %v211
                %v213 = vld [vmem:[%s195 + $0x60] sm:$0xf]
                %214 = vst [vmem:[%s196 + $0x20] sm:$0xf] %v213
                %v215 = vld [vmem:[%s195 + $0x6c] sm:$0xf]
                %216 = vst [vmem:[%s196 + $0x24] sm:$0xf] %v215
                %v217 = vld [vmem:[%s195 + $0x78] sm:$0xf]
                %218 = vst [vmem:[%s196 + $0x28] sm:$0xf] %v217
                %v219 = vld [vmem:[%s195 + $0x84] sm:$0xf]
                %220 = vst [vmem:[%s196 + $0x2c] sm:$0xf] %v219
                %v221 = vld [vmem:[%s195 + $0x90] sm:$0xf]
                %222 = vst [vmem:[%s196 + $0x30] sm:$0xf] %v221
                %v223 = vld [vmem:[%s195 + $0x9c] sm:$0xf]
                %224 = vst [vmem:[%s196 + $0x34] sm:$0xf] %v223
                %v225 = vld [vmem:[%s195 + $0xa8] sm:$0xf]
                %226 = vst [vmem:[%s196 + $0x38] sm:$0xf] %v225
                %v227 = vld [vmem:[%s195 + $0xb4] sm:$0xf]
                %228 = vst [vmem:[%s196 + $0x3c] sm:$0xf] %v227
                %v229 = vld [vmem:[%s195 + $0xc0] sm:$0xf]
                %230 = vst [vmem:[%s196 + $0x40] sm:$0xf] %v229
                %v231 = vld [vmem:[%s195 + $0xcc] sm:$0xf]
                %232 = vst [vmem:[%s196 + $0x44] sm:$0xf] %v231
                %v233 = vld [vmem:[%s195 + $0xd8] sm:$0xf]
                %234 = vst [vmem:[%s196 + $0x48] sm:$0xf] %v233
                %v235 = vld [vmem:[%s195 + $0xe4] sm:$0xf]
                %236 = vst [vmem:[%s196 + $0x4c] sm:$0xf] %v235
                %v237 = vld [vmem:[%s195 + $0xf0] sm:$0xf]
                %238 = vst [vmem:[%s196 + $0x50] sm:$0xf] %v237
                %v239 = vld [vmem:[%s195 + $0xfc] sm:$0xf]
                %240 = vst [vmem:[%s196 + $0x54] sm:$0xf] %v239
                %v241 = vld [vmem:[%s195 + $0x108] sm:$0xf]
                %242 = vst [vmem:[%s196 + $0x58] sm:$0xf] %v241
                %v243 = vld [vmem:[%s195 + $0x114] sm:$0xf]
                %244 = vst [vmem:[%s196 + $0x5c] sm:$0xf] %v243
                %v245 = vld [vmem:[%s195 + $0x120] sm:$0xf]
                %246 = vst [vmem:[%s196 + $0x60] sm:$0xf] %v245
                %v247 = vld [vmem:[%s195 + $0x12c] sm:$0xf]
                %248 = vst [vmem:[%s196 + $0x64] sm:$0xf] %v247
                %v249 = vld [vmem:[%s195 + $0x138] sm:$0xf]
                %250 = vst [vmem:[%s196 + $0x68] sm:$0xf] %v249
                %v251 = vld [vmem:[%s195 + $0x144] sm:$0xf]
                %252 = vst [vmem:[%s196 + $0x6c] sm:$0xf] %v251
                %v253 = vld [vmem:[%s195 + $0x150] sm:$0xf]
                %254 = vst [vmem:[%s196 + $0x70] sm:$0xf] %v253
                %v255 = vld [vmem:[%s195 + $0x15c] sm:$0xf]
                %256 = vst [vmem:[%s196 + $0x74] sm:$0xf] %v255
                %v257 = vld [vmem:[%s195 + $0x168] sm:$0xf]
                %258 = vst [vmem:[%s196 + $0x78] sm:$0xf] %v257
                %v259 = vld [vmem:[%s195 + $0x174] sm:$0xf]
                %260 = vst [vmem:[%s196 + $0x7c] sm:$0xf] %v259
                %v261 = vld [vmem:[%s195 + $0x180] sm:$0xf]
                %262 = vst [vmem:[%s196 + $0x80] sm:$0xf] %v261
                %v263 = vld [vmem:[%s195 + $0x18c] sm:$0xf]
                %264 = vst [vmem:[%s196 + $0x84] sm:$0xf] %v263
                %v265 = vld [vmem:[%s195 + $0x198] sm:$0xf]
                %266 = vst [vmem:[%s196 + $0x88] sm:$0xf] %v265
                %v267 = vld [vmem:[%s195 + $0x1a4] sm:$0xf]
                %268 = vst [vmem:[%s196 + $0x8c] sm:$0xf] %v267
                %v269 = vld [vmem:[%s195 + $0x1b0] sm:$0xf]
                %270 = vst [vmem:[%s196 + $0x90] sm:$0xf] %v269
                %v271 = vld [vmem:[%s195 + $0x1bc] sm:$0xf]
                %272 = vst [vmem:[%s196 + $0x94] sm:$0xf] %v271
                %v273 = vld [vmem:[%s195 + $0x1c8] sm:$0xf]
                %274 = vst [vmem:[%s196 + $0x98] sm:$0xf] %v273
                %v275 = vld [vmem:[%s195 + $0x1d4] sm:$0xf]
                %276 = vst [vmem:[%s196 + $0x9c] sm:$0xf] %v275
                %v277 = vld [vmem:[%s195 + $0x1e0] sm:$0xf]
                %278 = vst [vmem:[%s196 + $0xa0] sm:$0xf] %v277
                %v279 = vld [vmem:[%s195 + $0x1ec] sm:$0xf]
                %280 = vst [vmem:[%s196 + $0xa4] sm:$0xf] %v279
                %v281 = vld [vmem:[%s195 + $0x1f8] sm:$0xf]
                %282 = vst [vmem:[%s196 + $0xa8] sm:$0xf] %v281
                %v283 = vld [vmem:[%s195 + $0x204] sm:$0xf]
                %284 = vst [vmem:[%s196 + $0xac] sm:$0xf] %v283
                %v285 = vld [vmem:[%s195 + $0x210] sm:$0xf]
                %286 = vst [vmem:[%s196 + $0xb0] sm:$0xf] %v285
                %v287 = vld [vmem:[%s195 + $0x21c] sm:$0xf]
                %288 = vst [vmem:[%s196 + $0xb4] sm:$0xf] %v287
                %v289 = vld [vmem:[%s195 + $0x228] sm:$0xf]
                %290 = vst [vmem:[%s196 + $0xb8] sm:$0xf] %v289
                %v291 = vld [vmem:[%s195 + $0x234] sm:$0xf]
                %292 = vst [vmem:[%s196 + $0xbc] sm:$0xf] %v291
              $region41: #{alexnet_forward.13} parent=35 // loop_footer
                %s194 = sadd.s32 1, %s190
              $region42: #{alexnet_forward.13} parent=35 // loop_footer_branch
                %189 = sbr.rel target = $region38
              $region43: #{alexnet_forward.13} parent=35 // loop_exit
                _
            $region36: #{alexnet_forward.13} parent=27 // pred_fallthru
              _
          $region28: #{alexnet_forward.13} parent=23 // pred_fallthru
            _
          %408 = vnop
        $region24: #{alexnet_forward.13} parent=15 // pred_fallthru
          _
        // Predicated region
        $region62: #{alexnet_forward.13} parent=15 // pred_check
          %p409 = pneg %p104
        $region63: #{alexnet_forward.13} parent=15 // pred_check_branch
          %411 = sbr.rel (%p409) target = $region65
        $region64: #{alexnet_forward.13} parent=15 // pred_region
          %p412 = scmp.lt.s32.totalorder %s17, 2
          %s413 = scalar_select %p412, %s17, 2
          %s414 = scalar_lea.vmem %s2, %s413
        $region65: #{alexnet_forward.13} parent=15 // pred_fallthru
          _
      $region16: #{alexnet_forward.13} parent=5 // pred_fallthru
        _
      %p415 = scmp.le.s32.totalorder 1, %s9
      %p416 = scmp.lt.s32.totalorder %s9, 19
      %p417 = pnand %p415, %p416
      %p418 = pneg %p417
      // Predicated region
      $region66: #{alexnet_forward.13} parent=5 // pred_check
        _
      $region67: #{alexnet_forward.13} parent=5 // pred_check_branch
        %420 = sbr.rel (%p417) target = $region69
      $region68: #{alexnet_forward.13} parent=5 // pred_region
        %s421 = ssub.s32 %s9, 1
        %s422 = sand.u32 %s71, 1
        %s423 = sand.u32 %s71, 1
        %s424 = smul.addr %s423, 192
        %s425 = scalar_lea.vmem [#allocation3], %s424
        // Predicated region
        $region70: #{alexnet_forward.13} parent=68 // pred_check
          %p426 = pneg %p84
        $region71: #{alexnet_forward.13} parent=68 // pred_check_branch
          %428 = sbr.rel (%p426) target = $region73
        $region72: #{alexnet_forward.13} parent=68 // pred_region
          _
        $region73: #{alexnet_forward.13} parent=68 // pred_fallthru
          _
        %s429 = smul.u32 3, %s21
        %p430 = scmp.lt.s32.totalorder %s19, 0
        %s431 = scalar_select %p430, %s19, 0
        %p432 = scmp.lt.s32.totalorder %s429, 17
        %s433 = scalar_select %p432, %s429, 17
        %s434 = smul.addr %s431, 18
        %s435 = sadd.s32 %s433, %s434
        %s436 = smul.addr %s435, 4
        %s437 = scalar_lea.vmem %s0, %s436
        %p438 = pneg %p56
        %p439 = pneg %p53
        %s440 = sand.u32 %s71, 1
        %s441 = sand.u32 %s71, 1
        %s442 = smul.addr %s441, 192
        %s443 = scalar_lea.vmem [#allocation3], %s442
        %p444 = pneg %p84
        %p445 = pneg %p81
        %p446 = scmp.lt.s32.totalorder %s20, 2
        %s447 = scalar_select %p446, %s20, 2
        %s448 = scalar_lea.vmem %s2, %s447
        %p449 = pneg %p110
        %p450 = pneg %p107
        %p451 = pneg %p138
        %p452 = pneg %p135
        %p453 = scmp.lt.s32.totalorder %s19, 0
        %s454 = scalar_select %p453, %s19, 0
        %p455 = scmp.lt.s32.totalorder %s20, 2
        %s456 = scalar_select %p455, %s20, 2
        %s457 = smul.addr %s454, 3
        %s458 = sadd.s32 %s456, %s457
        %s459 = smul.addr %s458, 4
        %s460 = scalar_lea.vmem %s3, %s459
        %s461 = smul.u32 3, %s21
        %p462 = scmp.lt.s32.totalorder %s19, 0
        %s463 = scalar_select %p462, %s19, 0
        %p464 = scmp.lt.s32.totalorder %s461, 17
        %s465 = scalar_select %p464, %s461, 17
        %s466 = smul.addr %s463, 18
        %s467 = sadd.s32 %s465, %s466
        %s468 = smul.addr %s467, 4
        %s469 = scalar_lea.vmem %s0, %s468
        %s470 = smul.u32 3, %s21
        %s471 = smul.u32 48, %s21
        %p472 = scmp.lt.s32.totalorder %s20, 2
        %s473 = scalar_select %p472, %s20, 2
        %s474 = scalar_lea.vmem %s2, %s473
        %p475 = scmp.lt.s32.totalorder %s19, 0
        %s476 = scalar_select %p475, %s19, 0
        %p477 = scmp.lt.s32.totalorder %s20, 2
        %s478 = scalar_select %p477, %s20, 2
        %s479 = smul.addr %s476, 3
        %s480 = sadd.s32 %s478, %s479
        %s481 = smul.addr %s480, 4
        %s482 = scalar_lea.vmem %s3, %s481
        %p484 = scmp.eq.s32.totalorder %s21, 0
        // Predicated region
        $region74: #{alexnet_forward.13} parent=68 // pred_check
          %p485 = pneg %p484
        $region75: #{alexnet_forward.13} parent=68 // pred_check_branch
          %487 = sbr.rel (%p485) target = $region77
        $region76: #{alexnet_forward.13} parent=68 // pred_region
          %488 = vst [vmem:[#allocation2] sm:$0xff] 0.0
        $region77: #{alexnet_forward.13} parent=68 // pred_fallthru
          _
        %v489 = vld [vmem:[#allocation2] sm:$0xff]
        %v490 = vld [vmem:[%s469] sm:$0xff]
        %v491 = vld [vmem:[%s469 + $0x8] sm:$0xf]
        %v492 = vld [vmem:[%s425] sm:$0xf]
        %v493 = vld [vmem:[%s425 + $0x4] sm:$0xf]
        %v494 = vld [vmem:[%s425 + $0x8] sm:$0xf]
        %v495 = vld [vmem:[%s425 + $0xc] sm:$0xf]
        %v496 = vld [vmem:[%s425 + $0x10] sm:$0xf]
        %v497 = vld [vmem:[%s425 + $0x14] sm:$0xf]
        %v498 = vld [vmem:[%s425 + $0x18] sm:$0xf]
        %v499 = vld [vmem:[%s425 + $0x1c] sm:$0xf]
        %v500 = vld [vmem:[%s425 + $0x20] sm:$0xf]
        %v501 = vld [vmem:[%s425 + $0x24] sm:$0xf]
        %v502 = vld [vmem:[%s425 + $0x28] sm:$0xf]
        %v503 = vld [vmem:[%s425 + $0x2c] sm:$0xf]
        %v504 = vld [vmem:[%s425 + $0x30] sm:$0xf]
        %v505 = vld [vmem:[%s425 + $0x34] sm:$0xf]
        %v506 = vld [vmem:[%s425 + $0x38] sm:$0xf]
        %v507 = vld [vmem:[%s425 + $0x3c] sm:$0xf]
        %v508 = vld [vmem:[%s425 + $0x40] sm:$0xf]
        %v509 = vld [vmem:[%s425 + $0x44] sm:$0xf]
        %v510 = vld [vmem:[%s425 + $0x48] sm:$0xf]
        %v511 = vld [vmem:[%s425 + $0x4c] sm:$0xf]
        %v512 = vld [vmem:[%s425 + $0x50] sm:$0xf]
        %v513 = vld [vmem:[%s425 + $0x54] sm:$0xf]
        %v514 = vld [vmem:[%s425 + $0x58] sm:$0xf]
        %v515 = vld [vmem:[%s425 + $0x5c] sm:$0xf]
        %v516 = vld [vmem:[%s425 + $0x60] sm:$0xf]
        %v517 = vld [vmem:[%s425 + $0x64] sm:$0xf]
        %v518 = vld [vmem:[%s425 + $0x68] sm:$0xf]
        %v519 = vld [vmem:[%s425 + $0x6c] sm:$0xf]
        %v520 = vld [vmem:[%s425 + $0x70] sm:$0xf]
        %v521 = vld [vmem:[%s425 + $0x74] sm:$0xf]
        %v522 = vld [vmem:[%s425 + $0x78] sm:$0xf]
        %v523 = vld [vmem:[%s425 + $0x7c] sm:$0xf]
        %v524 = vld [vmem:[%s425 + $0x80] sm:$0xf]
        %v525 = vld [vmem:[%s425 + $0x84] sm:$0xf]
        %v526 = vld [vmem:[%s425 + $0x88] sm:$0xf]
        %v527 = vld [vmem:[%s425 + $0x8c] sm:$0xf]
        %v528 = vld [vmem:[%s425 + $0x90] sm:$0xf]
        %v529 = vld [vmem:[%s425 + $0x94] sm:$0xf]
        %v530 = vld [vmem:[%s425 + $0x98] sm:$0xf]
        %v531 = vld [vmem:[%s425 + $0x9c] sm:$0xf]
        %v532 = vld [vmem:[%s425 + $0xa0] sm:$0xf]
        %v533 = vld [vmem:[%s425 + $0xa4] sm:$0xf]
        %v534 = vld [vmem:[%s425 + $0xa8] sm:$0xf]
        %v535 = vld [vmem:[%s425 + $0xac] sm:$0xf]
        %v536 = vld [vmem:[%s425 + $0xb0] sm:$0xf]
        %v537 = vld [vmem:[%s425 + $0xb4] sm:$0xf]
        %v538 = vld [vmem:[%s425 + $0xb8] sm:$0xf]
        %v539 = vld [vmem:[%s425 + $0xbc] sm:$0xf]
        %v542 = vunpack.c.l.b16 %v490
        %v543 = vunpack.c.h.b16 %v490
        %v544 = vunpack.c.l.b16 %v491
        %v545 = vpack.c.b16 %v542, %v542
        %v546 = vpack.c.b16 %v543, %v543
        %v547 = vpack.c.b16 %v544, %v544
        %v599 = vunpack.c.l.b16 %v492
        %v600 = vunpack.c.l.b16 %v493
        %v601 = vunpack.c.l.b16 %v494
        %v602 = vunpack.c.l.b16 %v495
        %v603 = vunpack.c.l.b16 %v496
        %v604 = vunpack.c.l.b16 %v497
        %v605 = vunpack.c.l.b16 %v498
        %v606 = vunpack.c.l.b16 %v499
        %v607 = vunpack.c.l.b16 %v500
        %v608 = vunpack.c.l.b16 %v501
        %v609 = vunpack.c.l.b16 %v502
        %v610 = vunpack.c.l.b16 %v503
        %v611 = vunpack.c.l.b16 %v504
        %v612 = vunpack.c.l.b16 %v505
        %v613 = vunpack.c.l.b16 %v506
        %v614 = vunpack.c.l.b16 %v507
        %v615 = vunpack.c.l.b16 %v508
        %v616 = vunpack.c.l.b16 %v509
        %v617 = vunpack.c.l.b16 %v510
        %v618 = vunpack.c.l.b16 %v511
        %v619 = vunpack.c.l.b16 %v512
        %v620 = vunpack.c.l.b16 %v513
        %v621 = vunpack.c.l.b16 %v514
        %v622 = vunpack.c.l.b16 %v515
        %v623 = vunpack.c.l.b16 %v516
        %v624 = vunpack.c.l.b16 %v517
        %v625 = vunpack.c.l.b16 %v518
        %v626 = vunpack.c.l.b16 %v519
        %v627 = vunpack.c.l.b16 %v520
        %v628 = vunpack.c.l.b16 %v521
        %v629 = vunpack.c.l.b16 %v522
        %v630 = vunpack.c.l.b16 %v523
        %v631 = vunpack.c.l.b16 %v524
        %v632 = vunpack.c.l.b16 %v525
        %v633 = vunpack.c.l.b16 %v526
        %v634 = vunpack.c.l.b16 %v527
        %v635 = vunpack.c.l.b16 %v528
        %v636 = vunpack.c.l.b16 %v529
        %v637 = vunpack.c.l.b16 %v530
        %v638 = vunpack.c.l.b16 %v531
        %v639 = vunpack.c.l.b16 %v532
        %v640 = vunpack.c.l.b16 %v533
        %v641 = vunpack.c.l.b16 %v534
        %v642 = vunpack.c.l.b16 %v535
        %v643 = vunpack.c.l.b16 %v536
        %v644 = vunpack.c.l.b16 %v537
        %v645 = vunpack.c.l.b16 %v538
        %v646 = vunpack.c.l.b16 %v539
        %v647 = vpack.c.b16 %v600, %v599
        %v648 = vpack.c.b16 %v602, %v601
        %v649 = vpack.c.b16 %v604, %v603
        %v650 = vpack.c.b16 %v606, %v605
        %v651 = vpack.c.b16 %v608, %v607
        %v652 = vpack.c.b16 %v610, %v609
        %v653 = vpack.c.b16 %v612, %v611
        %v654 = vpack.c.b16 %v614, %v613
        %v655 = vpack.c.b16 %v616, %v615
        %v656 = vpack.c.b16 %v618, %v617
        %v657 = vpack.c.b16 %v620, %v619
        %v658 = vpack.c.b16 %v622, %v621
        %v659 = vpack.c.b16 %v624, %v623
        %v660 = vpack.c.b16 %v626, %v625
        %v661 = vpack.c.b16 %v628, %v627
        %v662 = vpack.c.b16 %v630, %v629
        %v663 = vpack.c.b16 %v632, %v631
        %v664 = vpack.c.b16 %v634, %v633
        %v665 = vpack.c.b16 %v636, %v635
        %v666 = vpack.c.b16 %v638, %v637
        %v667 = vpack.c.b16 %v640, %v639
        %v668 = vpack.c.b16 %v642, %v641
        %v669 = vpack.c.b16 %v644, %v643
        %v670 = vpack.c.b16 %v646, %v645
        %695 = vmatprep.subr.bf16.mxu0 0
        %696 = vmatpush1.bf16.msra.mxu0 %v647
        %697 = vmatprep.subr.bf16.mxu0 0
        %698 = vmatpush1.bf16.msra.mxu0 %v648
        %699 = vmatprep.subr.bf16.mxu0 0
        %700 = vmatpush1.bf16.msra.mxu0 %v649
        %701 = vmatprep.subr.bf16.mxu0 0
        %702 = vmatpush1.bf16.msra.mxu0 %v650
        %703 = vmatprep.subr.bf16.mxu0 0
        %704 = vmatpush1.bf16.msra.mxu0 %v651
        %705 = vmatprep.subr.bf16.mxu0 0
        %706 = vmatpush1.bf16.msra.mxu0 %v652
        %707 = vmatprep.subr.bf16.mxu0 0
        %708 = vmatpush1.bf16.msra.mxu0 %v653
        %709 = vmatprep.subr.bf16.mxu0 0
        %710 = vmatpush1.bf16.msra.mxu0 %v654
        %711 = vmatprep.subr.bf16.mxu0 0
        %712 = vmatpush1.bf16.msra.mxu0 %v655
        %713 = vmatprep.subr.bf16.mxu0 0
        %714 = vmatpush1.bf16.msra.mxu0 %v656
        %715 = vmatprep.subr.bf16.mxu0 0
        %716 = vmatpush1.bf16.msra.mxu0 %v657
        %717 = vmatprep.subr.bf16.mxu0 0
        %718 = vmatpush1.bf16.msra.mxu0 %v658
        %719 = vmatprep.subr.bf16.mxu0 0
        %720 = vmatpush1.bf16.msra.mxu0 %v659
        %721 = vmatprep.subr.bf16.mxu0 0
        %722 = vmatpush1.bf16.msra.mxu0 %v660
        %723 = vmatprep.subr.bf16.mxu0 0
        %724 = vmatpush1.bf16.msra.mxu0 %v661
        %725 = vmatprep.subr.bf16.mxu0 0
        %726 = vmatpush1.bf16.msra.mxu0 %v662
        %727 = vmatprep.mubr.bf16.mxu0 %v546
        %728 = vmatmul.mubr.bf16.gmra.mrb[0].mxu0 %v545
        %v729 = vpop.f32.mrb[0].mxu0
        %v730 = vadd.f32 0.0, %v729
        %v731 = vpop.f32.mrb[0].mxu0
        %v732 = vpop.f32.mrb[0].mxu0
        %v733 = vpop.f32.mrb[0].mxu0
        %734 = vdwg.mxu0
        %735 = vmatprep.subr.bf16.mxu0 0
        %736 = vmatpush1.bf16.msra.mxu0 %v663
        %737 = vmatprep.subr.bf16.mxu0 0
        %738 = vmatpush1.bf16.msra.mxu0 %v664
        %739 = vmatprep.subr.bf16.mxu0 0
        %740 = vmatpush1.bf16.msra.mxu0 %v665
        %741 = vmatprep.subr.bf16.mxu0 0
        %742 = vmatpush1.bf16.msra.mxu0 %v666
        %743 = vmatprep.subr.bf16.mxu0 0
        %744 = vmatpush1.bf16.msra.mxu0 %v667
        %745 = vmatprep.subr.bf16.mxu0 0
        %746 = vmatpush1.bf16.msra.mxu0 %v668
        %747 = vmatprep.subr.bf16.mxu0 0
        %748 = vmatpush1.bf16.msra.mxu0 %v669
        %749 = vmatprep.subr.bf16.mxu0 0
        %750 = vmatpush1.bf16.msra.mxu0 %v670
        %751 = vmatprep.subr.bf16.mxu0 0
        %752 = vmatpush1.bf16.msra.mxu0 0
        %753 = vmatprep.subr.bf16.mxu0 0
        %754 = vmatpush1.bf16.msra.mxu0 0
        %755 = vmatprep.subr.bf16.mxu0 0
        %756 = vmatpush1.bf16.msra.mxu0 0
        %757 = vmatprep.subr.bf16.mxu0 0
        %758 = vmatpush1.bf16.msra.mxu0 0
        %759 = vmatprep.subr.bf16.mxu0 0
        %760 = vmatpush1.bf16.msra.mxu0 0
        %761 = vmatprep.subr.bf16.mxu0 0
        %762 = vmatpush1.bf16.msra.mxu0 0
        %763 = vmatprep.subr.bf16.mxu0 0
        %764 = vmatpush1.bf16.msra.mxu0 0
        %765 = vmatprep.subr.bf16.mxu0 0
        %766 = vmatpush1.bf16.msra.mxu0 0
        %767 = vmatprep.mubr.bf16.mxu0 0
        %768 = vmatmul.mubr.bf16.gmra.mrb[0].mxu0 %v547
        %v769 = vpop.f32.mrb[0].mxu0
        %v770 = vadd.f32 %v730, %v769
        %v771 = vpop.f32.mrb[0].mxu0
        %v772 = vpop.f32.mrb[0].mxu0
        %v773 = vpop.f32.mrb[0].mxu0
        %774 = vdwg.mxu0
        %v775 = vadd.f32 %v489, %v770
        %776 = vst [vmem:[#allocation2] sm:$0xff] %v775
        %p777 = scmp.eq.s32.totalorder %s21, 5
        // Predicated region
        $region78: #{alexnet_forward.13} parent=68 // pred_check
          %p778 = pneg %p777
        $region79: #{alexnet_forward.13} parent=68 // pred_check_branch
          %780 = sbr.rel (%p778) target = $region81
        $region80: #{alexnet_forward.13} parent=68 // pred_region
          %v781 = vld [vmem:[#allocation2] sm:$0xff]
          %v782 = vld [vmem:[%s474] sm:$0x1]
          %v784 = vlaneseq
          %v785 = vshrl.u32 %v784, 7
          %v786 = vsub.s32 0, %v785
          %v787 = vrot.slane %v782, %v786
          %v789 = vadd.f32 %v781, %v787
          %v790 = vmax.f32 %v789, 0.0
          %v791 = vpack.c.bf16 %v790, %v790
          %792 = vst [vmem:[%s482] sm:$0xf] %v791
        $region81: #{alexnet_forward.13} parent=68 // pred_fallthru
          _
        %p793 = scmp.lt.s32.totalorder %s19, 0
        %s794 = scalar_select %p793, %s19, 0
        %p795 = scmp.lt.s32.totalorder %s20, 2
        %s796 = scalar_select %p795, %s20, 2
        %s797 = smul.addr %s794, 3
        %s798 = sadd.s32 %s796, %s797
        %s799 = smul.addr %s798, 4
        %s800 = scalar_lea.vmem %s3, %s799
        // Predicated region
        $region82: #{alexnet_forward.13} parent=68 // pred_check
          %p801 = pneg %p135
        $region83: #{alexnet_forward.13} parent=68 // pred_check_branch
          %803 = sbr.rel (%p801) target = $region85
        $region84: #{alexnet_forward.13} parent=68 // pred_region
          _
        $region85: #{alexnet_forward.13} parent=68 // pred_fallthru
          _
      $region69: #{alexnet_forward.13} parent=5 // pred_fallthru
        _
      %p804 = scmp.le.s32.totalorder 2, %s9
      // Predicated region
      $region86: #{alexnet_forward.13} parent=5 // pred_check
        %p805 = pneg %p804
      $region87: #{alexnet_forward.13} parent=5 // pred_check_branch
        %807 = sbr.rel (%p805) target = $region89
      $region88: #{alexnet_forward.13} parent=5 // pred_region
        %s808 = ssub.s32 %s9, 2
        // Predicated region
        $region90: #{alexnet_forward.13} parent=88 // pred_check
          %p809 = pneg %p141
        $region91: #{alexnet_forward.13} parent=88 // pred_check_branch
          %811 = sbr.rel (%p809) target = $region93
        $region92: #{alexnet_forward.13} parent=88 // pred_region
          %p812 = scmp.lt.s32.totalorder %s22, 0
          %s813 = scalar_select %p812, %s22, 0
          %p814 = scmp.lt.s32.totalorder %s23, 2
          %s815 = scalar_select %p814, %s23, 2
          %s816 = smul.addr %s813, 3
          %s817 = sadd.s32 %s815, %s816
          %s818 = smul.addr %s817, 4
          %s819 = scalar_lea.vmem %s3, %s818
        $region93: #{alexnet_forward.13} parent=88 // pred_fallthru
          _
      $region89: #{alexnet_forward.13} parent=5 // pred_fallthru
        _
    $region6: #{alexnet_forward.13} parent=1 // loop_footer
      %s13 = sadd.s32 1, %s9
    $region7: #{alexnet_forward.13} parent=1 // loop_footer_branch
      %8 = sbr.rel target = $region3
    $region8: #{alexnet_forward.13} parent=1 // loop_exit
      _

// kernel: alexnet_forward.14
$region0: #{alexnet_forward.14}
  #allocation0 [shape = 'u32[]', space=smem, size = 0x4, offset = 0x4, fixed_abs, tag = 'smem constant byte address 0x4 - core index']
  #allocation1 [shape = 'u32[144,128]{1,0:T(1,128)}', space=vmem, size = 0x12000, scoped, tag = 'internal scratch']
  #allocation2 [shape = 'f32[8,256]{1,0:T(8,128)}', space=vmem, size = 0x2000, scoped, tag = 'scratch operand']
  %s0 = inlined_call_operand.vmem [shape: bf16[8,3456], index: 0, kind: input, shape index: {}]
  %s1 = inlined_call_operand.vmem [shape: bf16[3456,256], index: 1, kind: input, shape index: {}]
  %s2 = inlined_call_operand.vmem [shape: f32[1,256], index: 2, kind: input, shape index: {}]
  %s3 = inlined_call_operand.vmem [shape: bf16[8,256], index: 3, kind: output, shape index: {}]
  %s4 = sld [smem:[#allocation0]]
  $region53: #{alexnet_forward.14} parent=0
    _
  %s6 = ssub.s32 1, %s4
  %s7 = scalar_select 0, %s6, %s4
  loop: start=0, step=1, limit=11
  $region2: #{alexnet_forward.14} parent=0 // loop_pre_header
    _
  $region3: #{alexnet_forward.14} parent=0 // loop_header
    %s9 = sphi 0, %s13
    %p10 = scmp.ge.s32.totalorder %s9, 11
    %s16 = sphi 0, %s35
    %s17 = sphi 0, %s31
    %s18 = sphi 0, %s27
    %s19 = sphi 0, %s16
    %s20 = sphi 0, %s17
    %s21 = sphi 0, %s18
    %s22 = sphi 0, %s19
    %s23 = sphi 0, %s20
    %s24 = sphi 0, %s21
    %s40 = sphi 0, %s42
    %s43 = sphi 0, %s40
    %s44 = sphi 0, %s43
    %s60 = sphi 0, %s44
    %s68 = sphi 0, %s70
    %s71 = sphi 0, %s68
    %s72 = sphi 0, %s71
    %s88 = sphi 0, %s72
    %s94 = sphi 0, %s96
    %s97 = sphi 0, %s94
    %s98 = sphi 0, %s97
    %s114 = sphi 0, %s98
    %s122 = sphi 0, %s124
    %s125 = sphi 0, %s122
    %s126 = sphi 0, %s125
    %s142 = sphi 0, %s126
  $region4: #{alexnet_forward.14} parent=0 // loop_header_branch
    %12 = sbr.rel (%p10) target = $region8
  $region5: #{alexnet_forward.14} parent=0 // loop_body
    %s14 = ssub.s32 %s9, 1
    %s15 = ssub.s32 %s9, 2
    %s25 = sadd.s32 1, %s18
    %p26 = scmp.ge.s32.totalorder %s25, 9
    %s27 = scalar_select %p26, 0, %s25
    %s28 = sadd.s32 1, %s17
    %s29 = scalar_select %p26, %s28, %s17
    %p30 = scmp.ge.s32.totalorder %s29, 1
    %s31 = scalar_select %p30, 0, %s29
    %s32 = sadd.s32 1, %s16
    %s33 = scalar_select %p30, %s32, %s16
    %p34 = scmp.ge.s32.totalorder %s33, 1
    %s35 = scalar_select %p34, 0, %s33
    %s36 = ssub.s32 %s16, %s35
    %s37 = ssub.s32 %s18, %s27
    %s38 = sor.u32 %s36, %s37
    %p39 = scmp.eq.s32.totalorder %s38, 0
    %s41 = sadd.s32 %s40, 1
    %s42 = scalar_select %p39, %s40, %s41
    %p45 = pneg %p39
    %p46 = scmp.eq.s32.totalorder %s9, 8
    %p47 = por %p45, %p46
    %p48 = scmp.ne.s32.totalorder %s40, %s43
    %p49 = scmp.eq.s32.totalorder %s9, 0
    %p50 = por %p48, %p49
    %p51 = scmp.ne.s32.totalorder %s40, %s43
    %p52 = scmp.eq.s32.totalorder %s14, 8
    %p53 = por %p51, %p52
    %p54 = scmp.ne.s32.totalorder %s43, %s44
    %p55 = scmp.eq.s32.totalorder %s14, 0
    %p56 = por %p54, %p55
    %p57 = scmp.ne.s32.totalorder %s43, %s44
    %p58 = scmp.eq.s32.totalorder %s15, 8
    %p59 = por %p57, %p58
    %p61 = scmp.ne.s32.totalorder %s44, %s60
    %p62 = scmp.eq.s32.totalorder %s15, 0
    %p63 = por %p61, %p62
    %s64 = ssub.s32 %s18, %s27
    %s65 = ssub.s32 %s17, %s31
    %s66 = sor.u32 %s64, %s65
    %p67 = scmp.eq.s32.totalorder %s66, 0
    %s69 = sadd.s32 %s68, 1
    %s70 = scalar_select %p67, %s68, %s69
    %p73 = pneg %p67
    %p74 = scmp.eq.s32.totalorder %s9, 8
    %p75 = por %p73, %p74
    %p76 = scmp.ne.s32.totalorder %s68, %s71
    %p77 = scmp.eq.s32.totalorder %s9, 0
    %p78 = por %p76, %p77
    %p79 = scmp.ne.s32.totalorder %s68, %s71
    %p80 = scmp.eq.s32.totalorder %s14, 8
    %p81 = por %p79, %p80
    %p82 = scmp.ne.s32.totalorder %s71, %s72
    %p83 = scmp.eq.s32.totalorder %s14, 0
    %p84 = por %p82, %p83
    %p85 = scmp.ne.s32.totalorder %s71, %s72
    %p86 = scmp.eq.s32.totalorder %s15, 8
    %p87 = por %p85, %p86
    %p89 = scmp.ne.s32.totalorder %s72, %s88
    %p90 = scmp.eq.s32.totalorder %s15, 0
    %p91 = por %p89, %p90
    %s92 = ssub.s32 %s17, %s31
    %p93 = scmp.eq.s32.totalorder %s92, 0
    %s95 = sadd.s32 %s94, 1
    %s96 = scalar_select %p93, %s94, %s95
    %p99 = pneg %p93
    %p100 = scmp.eq.s32.totalorder %s9, 8
    %p101 = por %p99, %p100
    %p102 = scmp.ne.s32.totalorder %s94, %s97
    %p103 = scmp.eq.s32.totalorder %s9, 0
    %p104 = por %p102, %p103
    %p105 = scmp.ne.s32.totalorder %s94, %s97
    %p106 = scmp.eq.s32.totalorder %s14, 8
    %p107 = por %p105, %p106
    %p108 = scmp.ne.s32.totalorder %s97, %s98
    %p109 = scmp.eq.s32.totalorder %s14, 0
    %p110 = por %p108, %p109
    %p111 = scmp.ne.s32.totalorder %s97, %s98
    %p112 = scmp.eq.s32.totalorder %s15, 8
    %p113 = por %p111, %p112
    %p115 = scmp.ne.s32.totalorder %s98, %s114
    %p116 = scmp.eq.s32.totalorder %s15, 0
    %p117 = por %p115, %p116
    %s118 = ssub.s32 %s16, %s35
    %s119 = ssub.s32 %s17, %s31
    %s120 = sor.u32 %s118, %s119
    %p121 = scmp.eq.s32.totalorder %s120, 0
    %s123 = sadd.s32 %s122, 1
    %s124 = scalar_select %p121, %s122, %s123
    %p127 = pneg %p121
    %p128 = scmp.eq.s32.totalorder %s9, 8
    %p129 = por %p127, %p128
    %p130 = scmp.ne.s32.totalorder %s122, %s125
    %p131 = scmp.eq.s32.totalorder %s9, 0
    %p132 = por %p130, %p131
    %p133 = scmp.ne.s32.totalorder %s122, %s125
    %p134 = scmp.eq.s32.totalorder %s14, 8
    %p135 = por %p133, %p134
    %p136 = scmp.ne.s32.totalorder %s125, %s126
    %p137 = scmp.eq.s32.totalorder %s14, 0
    %p138 = por %p136, %p137
    %p139 = scmp.ne.s32.totalorder %s125, %s126
    %p140 = scmp.eq.s32.totalorder %s15, 8
    %p141 = por %p139, %p140
    %p143 = scmp.ne.s32.totalorder %s126, %s142
    %p144 = scmp.eq.s32.totalorder %s15, 0
    %p145 = por %p143, %p144
    %p146 = scmp.le.s32.totalorder 1, %s9
    %p147 = scmp.lt.s32.totalorder %s9, 10
    %p148 = pnand %p146, %p147
    %p149 = pneg %p148
    // Predicated region
    $region9: #{alexnet_forward.14} parent=5 // pred_check
      _
    $region10: #{alexnet_forward.14} parent=5 // pred_check_branch
      %151 = sbr.rel (%p148) target = $region12
    $region11: #{alexnet_forward.14} parent=5 // pred_region
      %s152 = ssub.s32 %s9, 1
      // Predicated region
      $region13: #{alexnet_forward.14} parent=11 // pred_check
        %p153 = pneg %p110
      $region14: #{alexnet_forward.14} parent=11 // pred_check_branch
        %155 = sbr.rel (%p153) target = $region16
      $region15: #{alexnet_forward.14} parent=11 // pred_region
        %s156 = smul.u32 2, %s20
        %p157 = scmp.lt.s32.totalorder %s156, 1
        %s158 = scalar_select %p157, %s156, 1
        %s159 = scalar_lea.vmem %s2, %s158
        %s160 = smul.u32 2, %s20
      $region16: #{alexnet_forward.14} parent=11 // pred_fallthru
        _
    $region12: #{alexnet_forward.14} parent=5 // pred_fallthru
      _
    %p161 = scmp.lt.s32.totalorder %s9, 9
    // Predicated region
    $region17: #{alexnet_forward.14} parent=5 // pred_check
      %p162 = pneg %p161
    $region18: #{alexnet_forward.14} parent=5 // pred_check_branch
      %164 = sbr.rel (%p162) target = $region20
    $region19: #{alexnet_forward.14} parent=5 // pred_region
      // Predicated region
      $region21: #{alexnet_forward.14} parent=19 // pred_check
        %p165 = pneg %p50
      $region22: #{alexnet_forward.14} parent=19 // pred_check_branch
        %167 = sbr.rel (%p165) target = $region24
      $region23: #{alexnet_forward.14} parent=19 // pred_region
        %s168 = smul.u32 3, %s18
        %p169 = scmp.lt.s32.totalorder %s16, 0
        %s170 = scalar_select %p169, %s16, 0
        %p171 = scmp.lt.s32.totalorder %s168, 26
        %s172 = scalar_select %p171, %s168, 26
        %s173 = smul.addr %s170, 27
        %s174 = sadd.s32 %s172, %s173
        %s175 = smul.addr %s174, 4
        %s176 = scalar_lea.vmem %s0, %s175
        %s177 = smul.u32 3, %s18
      $region24: #{alexnet_forward.14} parent=19 // pred_fallthru
        _
      // Predicated region
      $region25: #{alexnet_forward.14} parent=19 // pred_check
        %p178 = pneg %p78
      $region26: #{alexnet_forward.14} parent=19 // pred_check_branch
        %180 = sbr.rel (%p178) target = $region28
      $region27: #{alexnet_forward.14} parent=19 // pred_region
        %s181 = smul.u32 48, %s18
        %s182 = smul.u32 2, %s17
        %p183 = scmp.lt.s32.totalorder %s181, 431
        %s184 = scalar_select %p183, %s181, 431
        %p185 = scmp.lt.s32.totalorder %s182, 1
        %s186 = scalar_select %p185, %s182, 1
        %s187 = smul.addr %s184, 2
        %s188 = sadd.s32 %s186, %s187
        %s189 = smul.addr %s188, 4
        %s190 = scalar_lea.vmem %s1, %s189
        %s191 = smul.u32 48, %s18
        %s192 = smul.u32 2, %s17
      $region28: #{alexnet_forward.14} parent=19 // pred_fallthru
        _
    $region20: #{alexnet_forward.14} parent=5 // pred_fallthru
      _
    %p193 = scmp.le.s32.totalorder 1, %s9
    %p194 = scmp.lt.s32.totalorder %s9, 10
    %p195 = pnand %p193, %p194
    %p196 = pneg %p195
    // Predicated region
    $region29: #{alexnet_forward.14} parent=5 // pred_check
      _
    $region30: #{alexnet_forward.14} parent=5 // pred_check_branch
      %198 = sbr.rel (%p195) target = $region32
    $region31: #{alexnet_forward.14} parent=5 // pred_region
      %s199 = ssub.s32 %s9, 1
      %s200 = smul.u32 3, %s21
      %p201 = scmp.lt.s32.totalorder %s19, 0
      %s202 = scalar_select %p201, %s19, 0
      %p203 = scmp.lt.s32.totalorder %s200, 26
      %s204 = scalar_select %p203, %s200, 26
      %s205 = smul.addr %s202, 27
      %s206 = sadd.s32 %s204, %s205
      %s207 = smul.addr %s206, 4
      %s208 = scalar_lea.vmem %s0, %s207
      %p209 = pneg %p56
      %p210 = pneg %p53
      %s211 = smul.u32 48, %s21
      %s212 = smul.u32 2, %s20
      %p213 = scmp.lt.s32.totalorder %s211, 431
      %s214 = scalar_select %p213, %s211, 431
      %p215 = scmp.lt.s32.totalorder %s212, 1
      %s216 = scalar_select %p215, %s212, 1
      %s217 = smul.addr %s214, 2
      %s218 = sadd.s32 %s216, %s217
      %s219 = smul.addr %s218, 4
      %s220 = scalar_lea.vmem %s1, %s219
      %p221 = pneg %p84
      %p222 = pneg %p81
      %s223 = smul.u32 2, %s20
      %p224 = scmp.lt.s32.totalorder %s223, 1
      %s225 = scalar_select %p224, %s223, 1
      %s226 = scalar_lea.vmem %s2, %s225
      %p227 = pneg %p110
      %p228 = pneg %p107
      %p229 = pneg %p138
      %p230 = pneg %p135
      %s231 = smul.u32 2, %s20
      %p232 = scmp.lt.s32.totalorder %s19, 0
      %s233 = scalar_select %p232, %s19, 0
      %p234 = scmp.lt.s32.totalorder %s231, 1
      %s235 = scalar_select %p234, %s231, 1
      %s236 = smul.addr %s233, 2
      %s237 = sadd.s32 %s235, %s236
      %s238 = smul.addr %s237, 4
      %s239 = scalar_lea.vmem %s3, %s238
      %s240 = smul.u32 3, %s21
      %p241 = scmp.lt.s32.totalorder %s19, 0
      %s242 = scalar_select %p241, %s19, 0
      %p243 = scmp.lt.s32.totalorder %s240, 26
      %s244 = scalar_select %p243, %s240, 26
      %s245 = smul.addr %s242, 27
      %s246 = sadd.s32 %s244, %s245
      %s247 = smul.addr %s246, 4
      %s248 = scalar_lea.vmem %s0, %s247
      %s249 = smul.u32 3, %s21
      %s250 = smul.u32 48, %s21
      %s251 = smul.u32 2, %s20
      %p252 = scmp.lt.s32.totalorder %s250, 431
      %s253 = scalar_select %p252, %s250, 431
      %p254 = scmp.lt.s32.totalorder %s251, 1
      %s255 = scalar_select %p254, %s251, 1
      %s256 = smul.addr %s253, 2
      %s257 = sadd.s32 %s255, %s256
      %s258 = smul.addr %s257, 4
      %s259 = scalar_lea.vmem %s1, %s258
      %s260 = smul.u32 48, %s21
      %s261 = smul.u32 2, %s20
      %s262 = smul.u32 2, %s20
      %p263 = scmp.lt.s32.totalorder %s262, 1
      %s264 = scalar_select %p263, %s262, 1
      %s265 = scalar_lea.vmem %s2, %s264
      %s266 = smul.u32 2, %s20
      %s267 = smul.u32 2, %s20
      %p268 = scmp.lt.s32.totalorder %s19, 0
      %s269 = scalar_select %p268, %s19, 0
      %p270 = scmp.lt.s32.totalorder %s267, 1
      %s271 = scalar_select %p270, %s267, 1
      %s272 = smul.addr %s269, 2
      %s273 = sadd.s32 %s271, %s272
      %s274 = smul.addr %s273, 4
      %s275 = scalar_lea.vmem %s3, %s274
      %s276 = smul.u32 2, %s20
      %p278 = scmp.eq.s32.totalorder %s21, 0
      // Predicated region
      $region33: #{alexnet_forward.14} parent=31 // pred_check
        %p279 = pneg %p278
      $region34: #{alexnet_forward.14} parent=31 // pred_check_branch
        %281 = sbr.rel (%p279) target = $region36
      $region35: #{alexnet_forward.14} parent=31 // pred_region
        %282 = vst [vmem:[#allocation2] sm:$0xff] 0.0
        %283 = vst [vmem:[#allocation2 + $0x8] sm:$0xff] 0.0
      $region36: #{alexnet_forward.14} parent=31 // pred_fallthru
        _
      %v284 = vld [vmem:[#allocation2] sm:$0xff]
      %v285 = vld [vmem:[#allocation2 + $0x8] sm:$0xff]
      %v286 = vld [vmem:[%s248] sm:$0xff]
      %v287 = vld [vmem:[%s248 + $0x8] sm:$0xf]
      %v288 = vld [vmem:[%s259] sm:$0xff]
      %v289 = vld [vmem:[%s259 + $0x8] sm:$0xff]
      %v290 = vld [vmem:[%s259 + $0x10] sm:$0xff]
      %v291 = vld [vmem:[%s259 + $0x18] sm:$0xff]
      %v292 = vld [vmem:[%s259 + $0x20] sm:$0xff]
      %v293 = vld [vmem:[%s259 + $0x28] sm:$0xff]
      %v294 = vld [vmem:[%s259 + $0x30] sm:$0xff]
      %v295 = vld [vmem:[%s259 + $0x38] sm:$0xff]
      %v296 = vld [vmem:[%s259 + $0x40] sm:$0xff]
      %v297 = vld [vmem:[%s259 + $0x48] sm:$0xff]
      %v298 = vld [vmem:[%s259 + $0x50] sm:$0xff]
      %v299 = vld [vmem:[%s259 + $0x58] sm:$0xff]
      %v300 = vld [vmem:[%s259 + $0x60] sm:$0xff]
      %v301 = vld [vmem:[%s259 + $0x68] sm:$0xff]
      %v302 = vld [vmem:[%s259 + $0x70] sm:$0xff]
      %v303 = vld [vmem:[%s259 + $0x78] sm:$0xff]
      %v304 = vld [vmem:[%s259 + $0x80] sm:$0xff]
      %v305 = vld [vmem:[%s259 + $0x88] sm:$0xff]
      %v306 = vld [vmem:[%s259 + $0x90] sm:$0xff]
      %v307 = vld [vmem:[%s259 + $0x98] sm:$0xff]
      %v308 = vld [vmem:[%s259 + $0xa0] sm:$0xff]
      %v309 = vld [vmem:[%s259 + $0xa8] sm:$0xff]
      %v310 = vld [vmem:[%s259 + $0xb0] sm:$0xff]
      %v311 = vld [vmem:[%s259 + $0xb8] sm:$0xff]
      %v312 = vld [vmem:[%s259 + $0xc0] sm:$0xff]
      %v313 = vld [vmem:[%s259 + $0xc8] sm:$0xff]
      %v314 = vld [vmem:[%s259 + $0xd0] sm:$0xff]
      %v315 = vld [vmem:[%s259 + $0xd8] sm:$0xff]
      %v316 = vld [vmem:[%s259 + $0xe0] sm:$0xff]
      %v317 = vld [vmem:[%s259 + $0xe8] sm:$0xff]
      %v318 = vld [vmem:[%s259 + $0xf0] sm:$0xff]
      %v319 = vld [vmem:[%s259 + $0xf8] sm:$0xff]
      %v320 = vld [vmem:[%s259 + $0x100] sm:$0xff]
      %v321 = vld [vmem:[%s259 + $0x108] sm:$0xff]
      %v322 = vld [vmem:[%s259 + $0x110] sm:$0xff]
      %v323 = vld [vmem:[%s259 + $0x118] sm:$0xff]
      %v324 = vld [vmem:[%s259 + $0x120] sm:$0xff]
      %v325 = vld [vmem:[%s259 + $0x128] sm:$0xff]
      %v326 = vld [vmem:[%s259 + $0x130] sm:$0xff]
      %v327 = vld [vmem:[%s259 + $0x138] sm:$0xff]
      %v328 = vld [vmem:[%s259 + $0x140] sm:$0xff]
      %v329 = vld [vmem:[%s259 + $0x148] sm:$0xff]
      %v330 = vld [vmem:[%s259 + $0x150] sm:$0xff]
      %v331 = vld [vmem:[%s259 + $0x158] sm:$0xff]
      %v332 = vld [vmem:[%s259 + $0x160] sm:$0xff]
      %v333 = vld [vmem:[%s259 + $0x168] sm:$0xff]
      %v334 = vld [vmem:[%s259 + $0x170] sm:$0xff]
      %v335 = vld [vmem:[%s259 + $0x178] sm:$0xff]
      %v338 = vunpack.c.l.b16 %v286
      %v339 = vunpack.c.h.b16 %v286
      %v340 = vunpack.c.l.b16 %v287
      %v341 = vpack.c.b16 %v338, %v338
      %v342 = vpack.c.b16 %v339, %v339
      %v343 = vpack.c.b16 %v340, %v340
      %v395 = vunpack.c.l.b16 %v288
      %v396 = vunpack.c.h.b16 %v288
      %v397 = vunpack.c.l.b16 %v289
      %v398 = vunpack.c.h.b16 %v289
      %v399 = vunpack.c.l.b16 %v290
      %v400 = vunpack.c.h.b16 %v290
      %v401 = vunpack.c.l.b16 %v291
      %v402 = vunpack.c.h.b16 %v291
      %v403 = vunpack.c.l.b16 %v292
      %v404 = vunpack.c.h.b16 %v292
      %v405 = vunpack.c.l.b16 %v293
      %v406 = vunpack.c.h.b16 %v293
      %v407 = vunpack.c.l.b16 %v294
      %v408 = vunpack.c.h.b16 %v294
      %v409 = vunpack.c.l.b16 %v295
      %v410 = vunpack.c.h.b16 %v295
      %v411 = vunpack.c.l.b16 %v296
      %v412 = vunpack.c.h.b16 %v296
      %v413 = vunpack.c.l.b16 %v297
      %v414 = vunpack.c.h.b16 %v297
      %v415 = vunpack.c.l.b16 %v298
      %v416 = vunpack.c.h.b16 %v298
      %v417 = vunpack.c.l.b16 %v299
      %v418 = vunpack.c.h.b16 %v299
      %v419 = vunpack.c.l.b16 %v300
      %v420 = vunpack.c.h.b16 %v300
      %v421 = vunpack.c.l.b16 %v301
      %v422 = vunpack.c.h.b16 %v301
      %v423 = vunpack.c.l.b16 %v302
      %v424 = vunpack.c.h.b16 %v302
      %v425 = vunpack.c.l.b16 %v303
      %v426 = vunpack.c.h.b16 %v303
      %v427 = vunpack.c.l.b16 %v304
      %v428 = vunpack.c.h.b16 %v304
      %v429 = vunpack.c.l.b16 %v305
      %v430 = vunpack.c.h.b16 %v305
      %v431 = vunpack.c.l.b16 %v306
      %v432 = vunpack.c.h.b16 %v306
      %v433 = vunpack.c.l.b16 %v307
      %v434 = vunpack.c.h.b16 %v307
      %v435 = vunpack.c.l.b16 %v308
      %v436 = vunpack.c.h.b16 %v308
      %v437 = vunpack.c.l.b16 %v309
      %v438 = vunpack.c.h.b16 %v309
      %v439 = vunpack.c.l.b16 %v310
      %v440 = vunpack.c.h.b16 %v310
      %v441 = vunpack.c.l.b16 %v311
      %v442 = vunpack.c.h.b16 %v311
      %v443 = vunpack.c.l.b16 %v312
      %v444 = vunpack.c.h.b16 %v312
      %v445 = vunpack.c.l.b16 %v313
      %v446 = vunpack.c.h.b16 %v313
      %v447 = vunpack.c.l.b16 %v314
      %v448 = vunpack.c.h.b16 %v314
      %v449 = vunpack.c.l.b16 %v315
      %v450 = vunpack.c.h.b16 %v315
      %v451 = vunpack.c.l.b16 %v316
      %v452 = vunpack.c.h.b16 %v316
      %v453 = vunpack.c.l.b16 %v317
      %v454 = vunpack.c.h.b16 %v317
      %v455 = vunpack.c.l.b16 %v318
      %v456 = vunpack.c.h.b16 %v318
      %v457 = vunpack.c.l.b16 %v319
      %v458 = vunpack.c.h.b16 %v319
      %v459 = vunpack.c.l.b16 %v320
      %v460 = vunpack.c.h.b16 %v320
      %v461 = vunpack.c.l.b16 %v321
      %v462 = vunpack.c.h.b16 %v321
      %v463 = vunpack.c.l.b16 %v322
      %v464 = vunpack.c.h.b16 %v322
      %v465 = vunpack.c.l.b16 %v323
      %v466 = vunpack.c.h.b16 %v323
      %v467 = vunpack.c.l.b16 %v324
      %v468 = vunpack.c.h.b16 %v324
      %v469 = vunpack.c.l.b16 %v325
      %v470 = vunpack.c.h.b16 %v325
      %v471 = vunpack.c.l.b16 %v326
      %v472 = vunpack.c.h.b16 %v326
      %v473 = vunpack.c.l.b16 %v327
      %v474 = vunpack.c.h.b16 %v327
      %v475 = vunpack.c.l.b16 %v328
      %v476 = vunpack.c.h.b16 %v328
      %v477 = vunpack.c.l.b16 %v329
      %v478 = vunpack.c.h.b16 %v329
      %v479 = vunpack.c.l.b16 %v330
      %v480 = vunpack.c.h.b16 %v330
      %v481 = vunpack.c.l.b16 %v331
      %v482 = vunpack.c.h.b16 %v331
      %v483 = vunpack.c.l.b16 %v332
      %v484 = vunpack.c.h.b16 %v332
      %v485 = vunpack.c.l.b16 %v333
      %v486 = vunpack.c.h.b16 %v333
      %v487 = vunpack.c.l.b16 %v334
      %v488 = vunpack.c.h.b16 %v334
      %v489 = vunpack.c.l.b16 %v335
      %v490 = vunpack.c.h.b16 %v335
      %v491 = vpack.c.b16 %v397, %v395
      %v492 = vpack.c.b16 %v398, %v396
      %v493 = vpack.c.b16 %v401, %v399
      %v494 = vpack.c.b16 %v402, %v400
      %v495 = vpack.c.b16 %v405, %v403
      %v496 = vpack.c.b16 %v406, %v404
      %v497 = vpack.c.b16 %v409, %v407
      %v498 = vpack.c.b16 %v410, %v408
      %v499 = vpack.c.b16 %v413, %v411
      %v500 = vpack.c.b16 %v414, %v412
      %v501 = vpack.c.b16 %v417, %v415
      %v502 = vpack.c.b16 %v418, %v416
      %v503 = vpack.c.b16 %v421, %v419
      %v504 = vpack.c.b16 %v422, %v420
      %v505 = vpack.c.b16 %v425, %v423
      %v506 = vpack.c.b16 %v426, %v424
      %v507 = vpack.c.b16 %v429, %v427
      %v508 = vpack.c.b16 %v430, %v428
      %v509 = vpack.c.b16 %v433, %v431
      %v510 = vpack.c.b16 %v434, %v432
      %v511 = vpack.c.b16 %v437, %v435
      %v512 = vpack.c.b16 %v438, %v436
      %v513 = vpack.c.b16 %v441, %v439
      %v514 = vpack.c.b16 %v442, %v440
      %v515 = vpack.c.b16 %v445, %v443
      %v516 = vpack.c.b16 %v446, %v444
      %v517 = vpack.c.b16 %v449, %v447
      %v518 = vpack.c.b16 %v450, %v448
      %v519 = vpack.c.b16 %v453, %v451
      %v520 = vpack.c.b16 %v454, %v452
      %v521 = vpack.c.b16 %v457, %v455
      %v522 = vpack.c.b16 %v458, %v456
      %v523 = vpack.c.b16 %v461, %v459
      %v524 = vpack.c.b16 %v462, %v460
      %v525 = vpack.c.b16 %v465, %v463
      %v526 = vpack.c.b16 %v466, %v464
      %v527 = vpack.c.b16 %v469, %v467
      %v528 = vpack.c.b16 %v470, %v468
      %v529 = vpack.c.b16 %v473, %v471
      %v530 = vpack.c.b16 %v474, %v472
      %v531 = vpack.c.b16 %v477, %v475
      %v532 = vpack.c.b16 %v478, %v476
      %v533 = vpack.c.b16 %v481, %v479
      %v534 = vpack.c.b16 %v482, %v480
      %v535 = vpack.c.b16 %v485, %v483
      %v536 = vpack.c.b16 %v486, %v484
      %v537 = vpack.c.b16 %v489, %v487
      %v538 = vpack.c.b16 %v490, %v488
      %587 = vmatprep.subr.bf16.mxu0 %v492
      %588 = vmatpush1.bf16.msra.mxu0 %v491
      %589 = vmatprep.subr.bf16.mxu0 %v494
      %590 = vmatpush1.bf16.msra.mxu0 %v493
      %591 = vmatprep.subr.bf16.mxu0 %v496
      %592 = vmatpush1.bf16.msra.mxu0 %v495
      %593 = vmatprep.subr.bf16.mxu0 %v498
      %594 = vmatpush1.bf16.msra.mxu0 %v497
      %595 = vmatprep.subr.bf16.mxu0 %v500
      %596 = vmatpush1.bf16.msra.mxu0 %v499
      %597 = vmatprep.subr.bf16.mxu0 %v502
      %598 = vmatpush1.bf16.msra.mxu0 %v501
      %599 = vmatprep.subr.bf16.mxu0 %v504
      %600 = vmatpush1.bf16.msra.mxu0 %v503
      %601 = vmatprep.subr.bf16.mxu0 %v506
      %602 = vmatpush1.bf16.msra.mxu0 %v505
      %603 = vmatprep.subr.bf16.mxu0 %v508
      %604 = vmatpush1.bf16.msra.mxu0 %v507
      %605 = vmatprep.subr.bf16.mxu0 %v510
      %606 = vmatpush1.bf16.msra.mxu0 %v509
      %607 = vmatprep.subr.bf16.mxu0 %v512
      %608 = vmatpush1.bf16.msra.mxu0 %v511
      %609 = vmatprep.subr.bf16.mxu0 %v514
      %610 = vmatpush1.bf16.msra.mxu0 %v513
      %611 = vmatprep.subr.bf16.mxu0 %v516
      %612 = vmatpush1.bf16.msra.mxu0 %v515
      %613 = vmatprep.subr.bf16.mxu0 %v518
      %614 = vmatpush1.bf16.msra.mxu0 %v517
      %615 = vmatprep.subr.bf16.mxu0 %v520
      %616 = vmatpush1.bf16.msra.mxu0 %v519
      %617 = vmatprep.subr.bf16.mxu0 %v522
      %618 = vmatpush1.bf16.msra.mxu0 %v521
      %619 = vmatprep.mubr.bf16.mxu0 %v342
      %620 = vmatmul.mubr.bf16.gmra.mrb[0].mxu0 %v341
      %v621 = vpop.f32.mrb[0].mxu0
      %v622 = vadd.f32 0.0, %v621
      %v623 = vpop.f32.mrb[0].mxu0
      %v624 = vadd.f32 0.0, %v623
      %v625 = vpop.f32.mrb[0].mxu0
      %v626 = vpop.f32.mrb[0].mxu0
      %627 = vdwg.mxu0
      %628 = vmatprep.subr.bf16.mxu0 %v524
      %629 = vmatpush1.bf16.msra.mxu0 %v523
      %630 = vmatprep.subr.bf16.mxu0 %v526
      %631 = vmatpush1.bf16.msra.mxu0 %v525
      %632 = vmatprep.subr.bf16.mxu0 %v528
      %633 = vmatpush1.bf16.msra.mxu0 %v527
      %634 = vmatprep.subr.bf16.mxu0 %v530
      %635 = vmatpush1.bf16.msra.mxu0 %v529
      %636 = vmatprep.subr.bf16.mxu0 %v532
      %637 = vmatpush1.bf16.msra.mxu0 %v531
      %638 = vmatprep.subr.bf16.mxu0 %v534
      %639 = vmatpush1.bf16.msra.mxu0 %v533
      %640 = vmatprep.subr.bf16.mxu0 %v536
      %641 = vmatpush1.bf16.msra.mxu0 %v535
      %642 = vmatprep.subr.bf16.mxu0 %v538
      %643 = vmatpush1.bf16.msra.mxu0 %v537
      %644 = vmatprep.subr.bf16.mxu0 0
      %645 = vmatpush1.bf16.msra.mxu0 0
      %646 = vmatprep.subr.bf16.mxu0 0
      %647 = vmatpush1.bf16.msra.mxu0 0
      %648 = vmatprep.subr.bf16.mxu0 0
      %649 = vmatpush1.bf16.msra.mxu0 0
      %650 = vmatprep.subr.bf16.mxu0 0
      %651 = vmatpush1.bf16.msra.mxu0 0
      %652 = vmatprep.subr.bf16.mxu0 0
      %653 = vmatpush1.bf16.msra.mxu0 0
      %654 = vmatprep.subr.bf16.mxu0 0
      %655 = vmatpush1.bf16.msra.mxu0 0
      %656 = vmatprep.subr.bf16.mxu0 0
      %657 = vmatpush1.bf16.msra.mxu0 0
      %658 = vmatprep.subr.bf16.mxu0 0
      %659 = vmatpush1.bf16.msra.mxu0 0
      %660 = vmatprep.mubr.bf16.mxu0 0
      %661 = vmatmul.mubr.bf16.gmra.mrb[0].mxu0 %v343
      %v662 = vpop.f32.mrb[0].mxu0
      %v663 = vadd.f32 %v622, %v662
      %v664 = vpop.f32.mrb[0].mxu0
      %v665 = vadd.f32 %v624, %v664
      %v666 = vpop.f32.mrb[0].mxu0
      %v667 = vpop.f32.mrb[0].mxu0
      %668 = vdwg.mxu0
      %v669 = vadd.f32 %v284, %v663
      %v670 = vadd.f32 %v285, %v665
      %671 = vst [vmem:[#allocation2] sm:$0xff] %v669
      %672 = vst [vmem:[#allocation2 + $0x8] sm:$0xff] %v670
      %p673 = scmp.eq.s32.totalorder %s21, 8
      // Predicated region
      $region37: #{alexnet_forward.14} parent=31 // pred_check
        %p674 = pneg %p673
      $region38: #{alexnet_forward.14} parent=31 // pred_check_branch
        %676 = sbr.rel (%p674) target = $region40
      $region39: #{alexnet_forward.14} parent=31 // pred_region
        %v677 = vld [vmem:[#allocation2] sm:$0xff]
        %v678 = vld [vmem:[#allocation2 + $0x8] sm:$0xff]
        %v679 = vld [vmem:[%s265] sm:$0x3]
        %v681 = vlaneseq
        %v682 = vshrl.u32 %v681, 7
        %v683 = vsub.s32 0, %v682
        %v684 = vrot.slane %v679, %v683
        %v685 = vlaneseq
        %v686 = vshrl.u32 %v685, 7
        %v687 = vsub.s32 1, %v686
        %v688 = vrot.slane %v679, %v687
        %v691 = vadd.f32 %v677, %v684
        %v692 = vadd.f32 %v678, %v688
        %v693 = vmax.f32 %v691, 0.0
        %v694 = vmax.f32 %v692, 0.0
        %v695 = vpack.c.bf16 %v693, %v693
        %v696 = vpack.c.bf16 %v694, %v694
        %v699 = vunpack.c.l.b16 %v695
        %v700 = vunpack.c.l.b16 %v696
        %v701 = vpack.c.b16 %v700, %v699
        %703 = vst [vmem:[%s275] sm:$0xff] %v701
      $region40: #{alexnet_forward.14} parent=31 // pred_fallthru
        _
      %s704 = smul.u32 2, %s20
      %p705 = scmp.lt.s32.totalorder %s19, 0
      %s706 = scalar_select %p705, %s19, 0
      %p707 = scmp.lt.s32.totalorder %s704, 1
      %s708 = scalar_select %p707, %s704, 1
      %s709 = smul.addr %s706, 2
      %s710 = sadd.s32 %s708, %s709
      %s711 = smul.addr %s710, 4
      %s712 = scalar_lea.vmem %s3, %s711
      // Predicated region
      $region41: #{alexnet_forward.14} parent=31 // pred_check
        %p713 = pneg %p135
      $region42: #{alexnet_forward.14} parent=31 // pred_check_branch
        %715 = sbr.rel (%p713) target = $region44
      $region43: #{alexnet_forward.14} parent=31 // pred_region
        %s716 = smul.u32 2, %s20
      $region44: #{alexnet_forward.14} parent=31 // pred_fallthru
        _
      // Predicated region
      $region45: #{alexnet_forward.14} parent=31 // pred_check
        %p717 = pneg %p135
      $region46: #{alexnet_forward.14} parent=31 // pred_check_branch
        %719 = sbr.rel (%p717) target = $region48
      $region47: #{alexnet_forward.14} parent=31 // pred_region
        %s720 = smul.u32 2, %s20
        %p721 = scmp.lt.s32.totalorder %s19, 0
        %s722 = scalar_select %p721, %s19, 0
        %p723 = scmp.lt.s32.totalorder %s720, 1
        %s724 = scalar_select %p723, %s720, 1
        %s725 = smul.addr %s722, 2
        %s726 = sadd.s32 %s724, %s725
        %s727 = smul.addr %s726, 4
        %s728 = scalar_lea.vmem %s3, %s727
      $region48: #{alexnet_forward.14} parent=31 // pred_fallthru
        _
    $region32: #{alexnet_forward.14} parent=5 // pred_fallthru
      _
    %p729 = scmp.le.s32.totalorder 2, %s9
    // Predicated region
    $region49: #{alexnet_forward.14} parent=5 // pred_check
      %p730 = pneg %p729
    $region50: #{alexnet_forward.14} parent=5 // pred_check_branch
      %732 = sbr.rel (%p730) target = $region52
    $region51: #{alexnet_forward.14} parent=5 // pred_region
      %s733 = ssub.s32 %s9, 2
    $region52: #{alexnet_forward.14} parent=5 // pred_fallthru
      _
  $region6: #{alexnet_forward.14} parent=0 // loop_footer
    %s13 = sadd.s32 1, %s9
  $region7: #{alexnet_forward.14} parent=0 // loop_footer_branch
    %8 = sbr.rel target = $region3
  $region8: #{alexnet_forward.14} parent=0 // loop_exit
    _

// kernel: alexnet_forward.16
$region0: #{alexnet_forward.16}
  #allocation0 [shape = 'u32[]', space=smem, size = 0x4, offset = 0x4, fixed_abs, tag = 'smem constant byte address 0x4 - core index']
  #allocation1 [shape = 'u32[144,128]{1,0:T(1,128)}', space=vmem, size = 0x12000, scoped, tag = 'internal scratch']
  %s0 = inlined_call_operand.vmem [shape: bf16[2,2,1,512], index: 0, kind: input, shape index: {}]
  %s1 = inlined_call_operand.vmem [shape: bf16[2,1,256], index: 1, kind: output, shape index: {}]
  %s2 = sld [smem:[#allocation0]]
  $region14: #{alexnet_forward.16} parent=0
    _
  %s4 = ssub.s32 1, %s2
  %s5 = scalar_select 0, %s4, %s2
  // Predicated region
  $region2: #{alexnet_forward.16} parent=0 // pred_check
    _
  $region3: #{alexnet_forward.16} parent=0 // pred_check_branch
    %7 = sbr.rel (0) target = $region5
  $region4: #{alexnet_forward.16} parent=0 // pred_region
    _
  $region5: #{alexnet_forward.16} parent=0 // pred_fallthru
    _
  %v8 = vld [vmem:[%s0] sm:$0xf]
  %v9 = vld [vmem:[%s0 + $0x4] sm:$0xf]
  %v10 = vld [vmem:[%s0 + $0x8] sm:$0xf]
  %v11 = vld [vmem:[%s0 + $0xc] sm:$0xf]
  %v14 = vrot.slane %v8, 2
  %v15 = vrot.slane %v10, 2
  %v18 = vmax.bf16 %v8, %v14
  %v19 = vmax.bf16 %v10, %v15
  %v22 = vrot.slane %v9, 2
  %v23 = vrot.slane %v11, 2
  %v26 = vmax.bf16 %v9, %v22
  %v27 = vmax.bf16 %v11, %v23
  %v28 = vmax.bf16 %v18, %v26
  %v29 = vmax.bf16 %v19, %v27
  %vm30 = vcmask 1040384
  %vm31 = vsmask.f32 256
  %vm32 = vmand %vm30, %vm31
  %vm33 = vcmask 1041409
  %vm34 = vsmask.f32 1280
  %vm35 = vmand %vm33, %vm34
  %vm36 = vmor %vm35, %vm32
  %v37 = vld [vmem:[%s1] sm:$0x3]
  %v38 = vsel %vm36, %v28, %v37
  %39 = vst [vmem:[%s1] sm:$0x3] %v38
  %v40 = vld [vmem:[%s1 + $0x2] sm:$0x3]
  %v41 = vsel %vm36, %v29, %v40
  %42 = vst [vmem:[%s1 + $0x2] sm:$0x3] %v41
  // Predicated region
  $region6: #{alexnet_forward.16} parent=0 // pred_check
    _
  $region7: #{alexnet_forward.16} parent=0 // pred_check_branch
    %44 = sbr.rel (0) target = $region9
  $region8: #{alexnet_forward.16} parent=0 // pred_region
    _
  $region9: #{alexnet_forward.16} parent=0 // pred_fallthru
    _
  // Predicated region
  $region10: #{alexnet_forward.16} parent=0 // pred_check
    _
  $region11: #{alexnet_forward.16} parent=0 // pred_check_branch
    %46 = sbr.rel (0) target = $region13
  $region12: #{alexnet_forward.16} parent=0 // pred_region
    _
  $region13: #{alexnet_forward.16} parent=0 // pred_fallthru
    _

// kernel: alexnet_forward.15
$region0: #{alexnet_forward.15}
  #allocation0 [shape = 'u32[]', space=smem, size = 0x4, offset = 0x4, fixed_abs, tag = 'smem constant byte address 0x4 - core index']
  #allocation1 [shape = 'u32[144,128]{1,0:T(1,128)}', space=vmem, size = 0x12000, scoped, tag = 'internal scratch']
  #allocation2 [shape = 'f32[8,256]{1,0:T(8,128)}', space=vmem, size = 0x2000, scoped, tag = 'scratch operand']
  %s0 = inlined_call_operand.vmem [shape: bf16[8,2304], index: 0, kind: input, shape index: {}]
  %s1 = inlined_call_operand.vmem [shape: bf16[2304,256], index: 1, kind: input, shape index: {}]
  %s2 = inlined_call_operand.vmem [shape: f32[1,256], index: 2, kind: input, shape index: {}]
  %s3 = inlined_call_operand.vmem [shape: bf16[8,256], index: 3, kind: output, shape index: {}]
  %s4 = sld [smem:[#allocation0]]
  $region53: #{alexnet_forward.15} parent=0
    _
  %s6 = ssub.s32 1, %s4
  %s7 = scalar_select 0, %s6, %s4
  loop: start=0, step=1, limit=8
  $region2: #{alexnet_forward.15} parent=0 // loop_pre_header
    _
  $region3: #{alexnet_forward.15} parent=0 // loop_header
    %s9 = sphi 0, %s13
    %p10 = scmp.ge.s32.totalorder %s9, 8
    %s16 = sphi 0, %s35
    %s17 = sphi 0, %s31
    %s18 = sphi 0, %s27
    %s19 = sphi 0, %s16
    %s20 = sphi 0, %s17
    %s21 = sphi 0, %s18
    %s22 = sphi 0, %s19
    %s23 = sphi 0, %s20
    %s24 = sphi 0, %s21
    %s40 = sphi 0, %s42
    %s43 = sphi 0, %s40
    %s44 = sphi 0, %s43
    %s60 = sphi 0, %s44
    %s68 = sphi 0, %s70
    %s71 = sphi 0, %s68
    %s72 = sphi 0, %s71
    %s88 = sphi 0, %s72
    %s94 = sphi 0, %s96
    %s97 = sphi 0, %s94
    %s98 = sphi 0, %s97
    %s114 = sphi 0, %s98
    %s122 = sphi 0, %s124
    %s125 = sphi 0, %s122
    %s126 = sphi 0, %s125
    %s142 = sphi 0, %s126
  $region4: #{alexnet_forward.15} parent=0 // loop_header_branch
    %12 = sbr.rel (%p10) target = $region8
  $region5: #{alexnet_forward.15} parent=0 // loop_body
    %s14 = ssub.s32 %s9, 1
    %s15 = ssub.s32 %s9, 2
    %s25 = sadd.s32 1, %s18
    %p26 = scmp.ge.s32.totalorder %s25, 6
    %s27 = scalar_select %p26, 0, %s25
    %s28 = sadd.s32 1, %s17
    %s29 = scalar_select %p26, %s28, %s17
    %p30 = scmp.ge.s32.totalorder %s29, 1
    %s31 = scalar_select %p30, 0, %s29
    %s32 = sadd.s32 1, %s16
    %s33 = scalar_select %p30, %s32, %s16
    %p34 = scmp.ge.s32.totalorder %s33, 1
    %s35 = scalar_select %p34, 0, %s33
    %s36 = ssub.s32 %s16, %s35
    %s37 = ssub.s32 %s18, %s27
    %s38 = sor.u32 %s36, %s37
    %p39 = scmp.eq.s32.totalorder %s38, 0
    %s41 = sadd.s32 %s40, 1
    %s42 = scalar_select %p39, %s40, %s41
    %p45 = pneg %p39
    %p46 = scmp.eq.s32.totalorder %s9, 5
    %p47 = por %p45, %p46
    %p48 = scmp.ne.s32.totalorder %s40, %s43
    %p49 = scmp.eq.s32.totalorder %s9, 0
    %p50 = por %p48, %p49
    %p51 = scmp.ne.s32.totalorder %s40, %s43
    %p52 = scmp.eq.s32.totalorder %s14, 5
    %p53 = por %p51, %p52
    %p54 = scmp.ne.s32.totalorder %s43, %s44
    %p55 = scmp.eq.s32.totalorder %s14, 0
    %p56 = por %p54, %p55
    %p57 = scmp.ne.s32.totalorder %s43, %s44
    %p58 = scmp.eq.s32.totalorder %s15, 5
    %p59 = por %p57, %p58
    %p61 = scmp.ne.s32.totalorder %s44, %s60
    %p62 = scmp.eq.s32.totalorder %s15, 0
    %p63 = por %p61, %p62
    %s64 = ssub.s32 %s18, %s27
    %s65 = ssub.s32 %s17, %s31
    %s66 = sor.u32 %s64, %s65
    %p67 = scmp.eq.s32.totalorder %s66, 0
    %s69 = sadd.s32 %s68, 1
    %s70 = scalar_select %p67, %s68, %s69
    %p73 = pneg %p67
    %p74 = scmp.eq.s32.totalorder %s9, 5
    %p75 = por %p73, %p74
    %p76 = scmp.ne.s32.totalorder %s68, %s71
    %p77 = scmp.eq.s32.totalorder %s9, 0
    %p78 = por %p76, %p77
    %p79 = scmp.ne.s32.totalorder %s68, %s71
    %p80 = scmp.eq.s32.totalorder %s14, 5
    %p81 = por %p79, %p80
    %p82 = scmp.ne.s32.totalorder %s71, %s72
    %p83 = scmp.eq.s32.totalorder %s14, 0
    %p84 = por %p82, %p83
    %p85 = scmp.ne.s32.totalorder %s71, %s72
    %p86 = scmp.eq.s32.totalorder %s15, 5
    %p87 = por %p85, %p86
    %p89 = scmp.ne.s32.totalorder %s72, %s88
    %p90 = scmp.eq.s32.totalorder %s15, 0
    %p91 = por %p89, %p90
    %s92 = ssub.s32 %s17, %s31
    %p93 = scmp.eq.s32.totalorder %s92, 0
    %s95 = sadd.s32 %s94, 1
    %s96 = scalar_select %p93, %s94, %s95
    %p99 = pneg %p93
    %p100 = scmp.eq.s32.totalorder %s9, 5
    %p101 = por %p99, %p100
    %p102 = scmp.ne.s32.totalorder %s94, %s97
    %p103 = scmp.eq.s32.totalorder %s9, 0
    %p104 = por %p102, %p103
    %p105 = scmp.ne.s32.totalorder %s94, %s97
    %p106 = scmp.eq.s32.totalorder %s14, 5
    %p107 = por %p105, %p106
    %p108 = scmp.ne.s32.totalorder %s97, %s98
    %p109 = scmp.eq.s32.totalorder %s14, 0
    %p110 = por %p108, %p109
    %p111 = scmp.ne.s32.totalorder %s97, %s98
    %p112 = scmp.eq.s32.totalorder %s15, 5
    %p113 = por %p111, %p112
    %p115 = scmp.ne.s32.totalorder %s98, %s114
    %p116 = scmp.eq.s32.totalorder %s15, 0
    %p117 = por %p115, %p116
    %s118 = ssub.s32 %s16, %s35
    %s119 = ssub.s32 %s17, %s31
    %s120 = sor.u32 %s118, %s119
    %p121 = scmp.eq.s32.totalorder %s120, 0
    %s123 = sadd.s32 %s122, 1
    %s124 = scalar_select %p121, %s122, %s123
    %p127 = pneg %p121
    %p128 = scmp.eq.s32.totalorder %s9, 5
    %p129 = por %p127, %p128
    %p130 = scmp.ne.s32.totalorder %s122, %s125
    %p131 = scmp.eq.s32.totalorder %s9, 0
    %p132 = por %p130, %p131
    %p133 = scmp.ne.s32.totalorder %s122, %s125
    %p134 = scmp.eq.s32.totalorder %s14, 5
    %p135 = por %p133, %p134
    %p136 = scmp.ne.s32.totalorder %s125, %s126
    %p137 = scmp.eq.s32.totalorder %s14, 0
    %p138 = por %p136, %p137
    %p139 = scmp.ne.s32.totalorder %s125, %s126
    %p140 = scmp.eq.s32.totalorder %s15, 5
    %p141 = por %p139, %p140
    %p143 = scmp.ne.s32.totalorder %s126, %s142
    %p144 = scmp.eq.s32.totalorder %s15, 0
    %p145 = por %p143, %p144
    %p146 = scmp.le.s32.totalorder 1, %s9
    %p147 = scmp.lt.s32.totalorder %s9, 7
    %p148 = pnand %p146, %p147
    %p149 = pneg %p148
    // Predicated region
    $region9: #{alexnet_forward.15} parent=5 // pred_check
      _
    $region10: #{alexnet_forward.15} parent=5 // pred_check_branch
      %151 = sbr.rel (%p148) target = $region12
    $region11: #{alexnet_forward.15} parent=5 // pred_region
      %s152 = ssub.s32 %s9, 1
      // Predicated region
      $region13: #{alexnet_forward.15} parent=11 // pred_check
        %p153 = pneg %p110
      $region14: #{alexnet_forward.15} parent=11 // pred_check_branch
        %155 = sbr.rel (%p153) target = $region16
      $region15: #{alexnet_forward.15} parent=11 // pred_region
        %s156 = smul.u32 2, %s20
        %p157 = scmp.lt.s32.totalorder %s156, 1
        %s158 = scalar_select %p157, %s156, 1
        %s159 = scalar_lea.vmem %s2, %s158
        %s160 = smul.u32 2, %s20
      $region16: #{alexnet_forward.15} parent=11 // pred_fallthru
        _
    $region12: #{alexnet_forward.15} parent=5 // pred_fallthru
      _
    %p161 = scmp.lt.s32.totalorder %s9, 6
    // Predicated region
    $region17: #{alexnet_forward.15} parent=5 // pred_check
      %p162 = pneg %p161
    $region18: #{alexnet_forward.15} parent=5 // pred_check_branch
      %164 = sbr.rel (%p162) target = $region20
    $region19: #{alexnet_forward.15} parent=5 // pred_region
      // Predicated region
      $region21: #{alexnet_forward.15} parent=19 // pred_check
        %p165 = pneg %p50
      $region22: #{alexnet_forward.15} parent=19 // pred_check_branch
        %167 = sbr.rel (%p165) target = $region24
      $region23: #{alexnet_forward.15} parent=19 // pred_region
        %s168 = smul.u32 3, %s18
        %p169 = scmp.lt.s32.totalorder %s16, 0
        %s170 = scalar_select %p169, %s16, 0
        %p171 = scmp.lt.s32.totalorder %s168, 17
        %s172 = scalar_select %p171, %s168, 17
        %s173 = smul.addr %s170, 18
        %s174 = sadd.s32 %s172, %s173
        %s175 = smul.addr %s174, 4
        %s176 = scalar_lea.vmem %s0, %s175
        %s177 = smul.u32 3, %s18
      $region24: #{alexnet_forward.15} parent=19 // pred_fallthru
        _
      // Predicated region
      $region25: #{alexnet_forward.15} parent=19 // pred_check
        %p178 = pneg %p78
      $region26: #{alexnet_forward.15} parent=19 // pred_check_branch
        %180 = sbr.rel (%p178) target = $region28
      $region27: #{alexnet_forward.15} parent=19 // pred_region
        %s181 = smul.u32 48, %s18
        %s182 = smul.u32 2, %s17
        %p183 = scmp.lt.s32.totalorder %s181, 287
        %s184 = scalar_select %p183, %s181, 287
        %p185 = scmp.lt.s32.totalorder %s182, 1
        %s186 = scalar_select %p185, %s182, 1
        %s187 = smul.addr %s184, 2
        %s188 = sadd.s32 %s186, %s187
        %s189 = smul.addr %s188, 4
        %s190 = scalar_lea.vmem %s1, %s189
        %s191 = smul.u32 48, %s18
        %s192 = smul.u32 2, %s17
      $region28: #{alexnet_forward.15} parent=19 // pred_fallthru
        _
    $region20: #{alexnet_forward.15} parent=5 // pred_fallthru
      _
    %p193 = scmp.le.s32.totalorder 1, %s9
    %p194 = scmp.lt.s32.totalorder %s9, 7
    %p195 = pnand %p193, %p194
    %p196 = pneg %p195
    // Predicated region
    $region29: #{alexnet_forward.15} parent=5 // pred_check
      _
    $region30: #{alexnet_forward.15} parent=5 // pred_check_branch
      %198 = sbr.rel (%p195) target = $region32
    $region31: #{alexnet_forward.15} parent=5 // pred_region
      %s199 = ssub.s32 %s9, 1
      %s200 = smul.u32 3, %s21
      %p201 = scmp.lt.s32.totalorder %s19, 0
      %s202 = scalar_select %p201, %s19, 0
      %p203 = scmp.lt.s32.totalorder %s200, 17
      %s204 = scalar_select %p203, %s200, 17
      %s205 = smul.addr %s202, 18
      %s206 = sadd.s32 %s204, %s205
      %s207 = smul.addr %s206, 4
      %s208 = scalar_lea.vmem %s0, %s207
      %p209 = pneg %p56
      %p210 = pneg %p53
      %s211 = smul.u32 48, %s21
      %s212 = smul.u32 2, %s20
      %p213 = scmp.lt.s32.totalorder %s211, 287
      %s214 = scalar_select %p213, %s211, 287
      %p215 = scmp.lt.s32.totalorder %s212, 1
      %s216 = scalar_select %p215, %s212, 1
      %s217 = smul.addr %s214, 2
      %s218 = sadd.s32 %s216, %s217
      %s219 = smul.addr %s218, 4
      %s220 = scalar_lea.vmem %s1, %s219
      %p221 = pneg %p84
      %p222 = pneg %p81
      %s223 = smul.u32 2, %s20
      %p224 = scmp.lt.s32.totalorder %s223, 1
      %s225 = scalar_select %p224, %s223, 1
      %s226 = scalar_lea.vmem %s2, %s225
      %p227 = pneg %p110
      %p228 = pneg %p107
      %p229 = pneg %p138
      %p230 = pneg %p135
      %s231 = smul.u32 2, %s20
      %p232 = scmp.lt.s32.totalorder %s19, 0
      %s233 = scalar_select %p232, %s19, 0
      %p234 = scmp.lt.s32.totalorder %s231, 1
      %s235 = scalar_select %p234, %s231, 1
      %s236 = smul.addr %s233, 2
      %s237 = sadd.s32 %s235, %s236
      %s238 = smul.addr %s237, 4
      %s239 = scalar_lea.vmem %s3, %s238
      %s240 = smul.u32 3, %s21
      %p241 = scmp.lt.s32.totalorder %s19, 0
      %s242 = scalar_select %p241, %s19, 0
      %p243 = scmp.lt.s32.totalorder %s240, 17
      %s244 = scalar_select %p243, %s240, 17
      %s245 = smul.addr %s242, 18
      %s246 = sadd.s32 %s244, %s245
      %s247 = smul.addr %s246, 4
      %s248 = scalar_lea.vmem %s0, %s247
      %s249 = smul.u32 3, %s21
      %s250 = smul.u32 48, %s21
      %s251 = smul.u32 2, %s20
      %p252 = scmp.lt.s32.totalorder %s250, 287
      %s253 = scalar_select %p252, %s250, 287
      %p254 = scmp.lt.s32.totalorder %s251, 1
      %s255 = scalar_select %p254, %s251, 1
      %s256 = smul.addr %s253, 2
      %s257 = sadd.s32 %s255, %s256
      %s258 = smul.addr %s257, 4
      %s259 = scalar_lea.vmem %s1, %s258
      %s260 = smul.u32 48, %s21
      %s261 = smul.u32 2, %s20
      %s262 = smul.u32 2, %s20
      %p263 = scmp.lt.s32.totalorder %s262, 1
      %s264 = scalar_select %p263, %s262, 1
      %s265 = scalar_lea.vmem %s2, %s264
      %s266 = smul.u32 2, %s20
      %s267 = smul.u32 2, %s20
      %p268 = scmp.lt.s32.totalorder %s19, 0
      %s269 = scalar_select %p268, %s19, 0
      %p270 = scmp.lt.s32.totalorder %s267, 1
      %s271 = scalar_select %p270, %s267, 1
      %s272 = smul.addr %s269, 2
      %s273 = sadd.s32 %s271, %s272
      %s274 = smul.addr %s273, 4
      %s275 = scalar_lea.vmem %s3, %s274
      %s276 = smul.u32 2, %s20
      %p278 = scmp.eq.s32.totalorder %s21, 0
      // Predicated region
      $region33: #{alexnet_forward.15} parent=31 // pred_check
        %p279 = pneg %p278
      $region34: #{alexnet_forward.15} parent=31 // pred_check_branch
        %281 = sbr.rel (%p279) target = $region36
      $region35: #{alexnet_forward.15} parent=31 // pred_region
        %282 = vst [vmem:[#allocation2] sm:$0xff] 0.0
        %283 = vst [vmem:[#allocation2 + $0x8] sm:$0xff] 0.0
      $region36: #{alexnet_forward.15} parent=31 // pred_fallthru
        _
      %v284 = vld [vmem:[#allocation2] sm:$0xff]
      %v285 = vld [vmem:[#allocation2 + $0x8] sm:$0xff]
      %v286 = vld [vmem:[%s248] sm:$0xff]
      %v287 = vld [vmem:[%s248 + $0x8] sm:$0xf]
      %v288 = vld [vmem:[%s259] sm:$0xff]
      %v289 = vld [vmem:[%s259 + $0x8] sm:$0xff]
      %v290 = vld [vmem:[%s259 + $0x10] sm:$0xff]
      %v291 = vld [vmem:[%s259 + $0x18] sm:$0xff]
      %v292 = vld [vmem:[%s259 + $0x20] sm:$0xff]
      %v293 = vld [vmem:[%s259 + $0x28] sm:$0xff]
      %v294 = vld [vmem:[%s259 + $0x30] sm:$0xff]
      %v295 = vld [vmem:[%s259 + $0x38] sm:$0xff]
      %v296 = vld [vmem:[%s259 + $0x40] sm:$0xff]
      %v297 = vld [vmem:[%s259 + $0x48] sm:$0xff]
      %v298 = vld [vmem:[%s259 + $0x50] sm:$0xff]
      %v299 = vld [vmem:[%s259 + $0x58] sm:$0xff]
      %v300 = vld [vmem:[%s259 + $0x60] sm:$0xff]
      %v301 = vld [vmem:[%s259 + $0x68] sm:$0xff]
      %v302 = vld [vmem:[%s259 + $0x70] sm:$0xff]
      %v303 = vld [vmem:[%s259 + $0x78] sm:$0xff]
      %v304 = vld [vmem:[%s259 + $0x80] sm:$0xff]
      %v305 = vld [vmem:[%s259 + $0x88] sm:$0xff]
      %v306 = vld [vmem:[%s259 + $0x90] sm:$0xff]
      %v307 = vld [vmem:[%s259 + $0x98] sm:$0xff]
      %v308 = vld [vmem:[%s259 + $0xa0] sm:$0xff]
      %v309 = vld [vmem:[%s259 + $0xa8] sm:$0xff]
      %v310 = vld [vmem:[%s259 + $0xb0] sm:$0xff]
      %v311 = vld [vmem:[%s259 + $0xb8] sm:$0xff]
      %v312 = vld [vmem:[%s259 + $0xc0] sm:$0xff]
      %v313 = vld [vmem:[%s259 + $0xc8] sm:$0xff]
      %v314 = vld [vmem:[%s259 + $0xd0] sm:$0xff]
      %v315 = vld [vmem:[%s259 + $0xd8] sm:$0xff]
      %v316 = vld [vmem:[%s259 + $0xe0] sm:$0xff]
      %v317 = vld [vmem:[%s259 + $0xe8] sm:$0xff]
      %v318 = vld [vmem:[%s259 + $0xf0] sm:$0xff]
      %v319 = vld [vmem:[%s259 + $0xf8] sm:$0xff]
      %v320 = vld [vmem:[%s259 + $0x100] sm:$0xff]
      %v321 = vld [vmem:[%s259 + $0x108] sm:$0xff]
      %v322 = vld [vmem:[%s259 + $0x110] sm:$0xff]
      %v323 = vld [vmem:[%s259 + $0x118] sm:$0xff]
      %v324 = vld [vmem:[%s259 + $0x120] sm:$0xff]
      %v325 = vld [vmem:[%s259 + $0x128] sm:$0xff]
      %v326 = vld [vmem:[%s259 + $0x130] sm:$0xff]
      %v327 = vld [vmem:[%s259 + $0x138] sm:$0xff]
      %v328 = vld [vmem:[%s259 + $0x140] sm:$0xff]
      %v329 = vld [vmem:[%s259 + $0x148] sm:$0xff]
      %v330 = vld [vmem:[%s259 + $0x150] sm:$0xff]
      %v331 = vld [vmem:[%s259 + $0x158] sm:$0xff]
      %v332 = vld [vmem:[%s259 + $0x160] sm:$0xff]
      %v333 = vld [vmem:[%s259 + $0x168] sm:$0xff]
      %v334 = vld [vmem:[%s259 + $0x170] sm:$0xff]
      %v335 = vld [vmem:[%s259 + $0x178] sm:$0xff]
      %v338 = vunpack.c.l.b16 %v286
      %v339 = vunpack.c.h.b16 %v286
      %v340 = vunpack.c.l.b16 %v287
      %v341 = vpack.c.b16 %v338, %v338
      %v342 = vpack.c.b16 %v339, %v339
      %v343 = vpack.c.b16 %v340, %v340
      %v395 = vunpack.c.l.b16 %v288
      %v396 = vunpack.c.h.b16 %v288
      %v397 = vunpack.c.l.b16 %v289
      %v398 = vunpack.c.h.b16 %v289
      %v399 = vunpack.c.l.b16 %v290
      %v400 = vunpack.c.h.b16 %v290
      %v401 = vunpack.c.l.b16 %v291
      %v402 = vunpack.c.h.b16 %v291
      %v403 = vunpack.c.l.b16 %v292
      %v404 = vunpack.c.h.b16 %v292
      %v405 = vunpack.c.l.b16 %v293
      %v406 = vunpack.c.h.b16 %v293
      %v407 = vunpack.c.l.b16 %v294
      %v408 = vunpack.c.h.b16 %v294
      %v409 = vunpack.c.l.b16 %v295
      %v410 = vunpack.c.h.b16 %v295
      %v411 = vunpack.c.l.b16 %v296
      %v412 = vunpack.c.h.b16 %v296
      %v413 = vunpack.c.l.b16 %v297
      %v414 = vunpack.c.h.b16 %v297
      %v415 = vunpack.c.l.b16 %v298
      %v416 = vunpack.c.h.b16 %v298
      %v417 = vunpack.c.l.b16 %v299
      %v418 = vunpack.c.h.b16 %v299
      %v419 = vunpack.c.l.b16 %v300
      %v420 = vunpack.c.h.b16 %v300
      %v421 = vunpack.c.l.b16 %v301
      %v422 = vunpack.c.h.b16 %v301
      %v423 = vunpack.c.l.b16 %v302
      %v424 = vunpack.c.h.b16 %v302
      %v425 = vunpack.c.l.b16 %v303
      %v426 = vunpack.c.h.b16 %v303
      %v427 = vunpack.c.l.b16 %v304
      %v428 = vunpack.c.h.b16 %v304
      %v429 = vunpack.c.l.b16 %v305
      %v430 = vunpack.c.h.b16 %v305
      %v431 = vunpack.c.l.b16 %v306
      %v432 = vunpack.c.h.b16 %v306
      %v433 = vunpack.c.l.b16 %v307
      %v434 = vunpack.c.h.b16 %v307
      %v435 = vunpack.c.l.b16 %v308
      %v436 = vunpack.c.h.b16 %v308
      %v437 = vunpack.c.l.b16 %v309
      %v438 = vunpack.c.h.b16 %v309
      %v439 = vunpack.c.l.b16 %v310
      %v440 = vunpack.c.h.b16 %v310
      %v441 = vunpack.c.l.b16 %v311
      %v442 = vunpack.c.h.b16 %v311
      %v443 = vunpack.c.l.b16 %v312
      %v444 = vunpack.c.h.b16 %v312
      %v445 = vunpack.c.l.b16 %v313
      %v446 = vunpack.c.h.b16 %v313
      %v447 = vunpack.c.l.b16 %v314
      %v448 = vunpack.c.h.b16 %v314
      %v449 = vunpack.c.l.b16 %v315
      %v450 = vunpack.c.h.b16 %v315
      %v451 = vunpack.c.l.b16 %v316
      %v452 = vunpack.c.h.b16 %v316
      %v453 = vunpack.c.l.b16 %v317
      %v454 = vunpack.c.h.b16 %v317
      %v455 = vunpack.c.l.b16 %v318
      %v456 = vunpack.c.h.b16 %v318
      %v457 = vunpack.c.l.b16 %v319
      %v458 = vunpack.c.h.b16 %v319
      %v459 = vunpack.c.l.b16 %v320
      %v460 = vunpack.c.h.b16 %v320
      %v461 = vunpack.c.l.b16 %v321
      %v462 = vunpack.c.h.b16 %v321
      %v463 = vunpack.c.l.b16 %v322
      %v464 = vunpack.c.h.b16 %v322
      %v465 = vunpack.c.l.b16 %v323
      %v466 = vunpack.c.h.b16 %v323
      %v467 = vunpack.c.l.b16 %v324
      %v468 = vunpack.c.h.b16 %v324
      %v469 = vunpack.c.l.b16 %v325
      %v470 = vunpack.c.h.b16 %v325
      %v471 = vunpack.c.l.b16 %v326
      %v472 = vunpack.c.h.b16 %v326
      %v473 = vunpack.c.l.b16 %v327
      %v474 = vunpack.c.h.b16 %v327
      %v475 = vunpack.c.l.b16 %v328
      %v476 = vunpack.c.h.b16 %v328
      %v477 = vunpack.c.l.b16 %v329
      %v478 = vunpack.c.h.b16 %v329
      %v479 = vunpack.c.l.b16 %v330
      %v480 = vunpack.c.h.b16 %v330
      %v481 = vunpack.c.l.b16 %v331
      %v482 = vunpack.c.h.b16 %v331
      %v483 = vunpack.c.l.b16 %v332
      %v484 = vunpack.c.h.b16 %v332
      %v485 = vunpack.c.l.b16 %v333
      %v486 = vunpack.c.h.b16 %v333
      %v487 = vunpack.c.l.b16 %v334
      %v488 = vunpack.c.h.b16 %v334
      %v489 = vunpack.c.l.b16 %v335
      %v490 = vunpack.c.h.b16 %v335
      %v491 = vpack.c.b16 %v397, %v395
      %v492 = vpack.c.b16 %v398, %v396
      %v493 = vpack.c.b16 %v401, %v399
      %v494 = vpack.c.b16 %v402, %v400
      %v495 = vpack.c.b16 %v405, %v403
      %v496 = vpack.c.b16 %v406, %v404
      %v497 = vpack.c.b16 %v409, %v407
      %v498 = vpack.c.b16 %v410, %v408
      %v499 = vpack.c.b16 %v413, %v411
      %v500 = vpack.c.b16 %v414, %v412
      %v501 = vpack.c.b16 %v417, %v415
      %v502 = vpack.c.b16 %v418, %v416
      %v503 = vpack.c.b16 %v421, %v419
      %v504 = vpack.c.b16 %v422, %v420
      %v505 = vpack.c.b16 %v425, %v423
      %v506 = vpack.c.b16 %v426, %v424
      %v507 = vpack.c.b16 %v429, %v427
      %v508 = vpack.c.b16 %v430, %v428
      %v509 = vpack.c.b16 %v433, %v431
      %v510 = vpack.c.b16 %v434, %v432
      %v511 = vpack.c.b16 %v437, %v435
      %v512 = vpack.c.b16 %v438, %v436
      %v513 = vpack.c.b16 %v441, %v439
      %v514 = vpack.c.b16 %v442, %v440
      %v515 = vpack.c.b16 %v445, %v443
      %v516 = vpack.c.b16 %v446, %v444
      %v517 = vpack.c.b16 %v449, %v447
      %v518 = vpack.c.b16 %v450, %v448
      %v519 = vpack.c.b16 %v453, %v451
      %v520 = vpack.c.b16 %v454, %v452
      %v521 = vpack.c.b16 %v457, %v455
      %v522 = vpack.c.b16 %v458, %v456
      %v523 = vpack.c.b16 %v461, %v459
      %v524 = vpack.c.b16 %v462, %v460
      %v525 = vpack.c.b16 %v465, %v463
      %v526 = vpack.c.b16 %v466, %v464
      %v527 = vpack.c.b16 %v469, %v467
      %v528 = vpack.c.b16 %v470, %v468
      %v529 = vpack.c.b16 %v473, %v471
      %v530 = vpack.c.b16 %v474, %v472
      %v531 = vpack.c.b16 %v477, %v475
      %v532 = vpack.c.b16 %v478, %v476
      %v533 = vpack.c.b16 %v481, %v479
      %v534 = vpack.c.b16 %v482, %v480
      %v535 = vpack.c.b16 %v485, %v483
      %v536 = vpack.c.b16 %v486, %v484
      %v537 = vpack.c.b16 %v489, %v487
      %v538 = vpack.c.b16 %v490, %v488
      %587 = vmatprep.subr.bf16.mxu0 %v492
      %588 = vmatpush1.bf16.msra.mxu0 %v491
      %589 = vmatprep.subr.bf16.mxu0 %v494
      %590 = vmatpush1.bf16.msra.mxu0 %v493
      %591 = vmatprep.subr.bf16.mxu0 %v496
      %592 = vmatpush1.bf16.msra.mxu0 %v495
      %593 = vmatprep.subr.bf16.mxu0 %v498
      %594 = vmatpush1.bf16.msra.mxu0 %v497
      %595 = vmatprep.subr.bf16.mxu0 %v500
      %596 = vmatpush1.bf16.msra.mxu0 %v499
      %597 = vmatprep.subr.bf16.mxu0 %v502
      %598 = vmatpush1.bf16.msra.mxu0 %v501
      %599 = vmatprep.subr.bf16.mxu0 %v504
      %600 = vmatpush1.bf16.msra.mxu0 %v503
      %601 = vmatprep.subr.bf16.mxu0 %v506
      %602 = vmatpush1.bf16.msra.mxu0 %v505
      %603 = vmatprep.subr.bf16.mxu0 %v508
      %604 = vmatpush1.bf16.msra.mxu0 %v507
      %605 = vmatprep.subr.bf16.mxu0 %v510
      %606 = vmatpush1.bf16.msra.mxu0 %v509
      %607 = vmatprep.subr.bf16.mxu0 %v512
      %608 = vmatpush1.bf16.msra.mxu0 %v511
      %609 = vmatprep.subr.bf16.mxu0 %v514
      %610 = vmatpush1.bf16.msra.mxu0 %v513
      %611 = vmatprep.subr.bf16.mxu0 %v516
      %612 = vmatpush1.bf16.msra.mxu0 %v515
      %613 = vmatprep.subr.bf16.mxu0 %v518
      %614 = vmatpush1.bf16.msra.mxu0 %v517
      %615 = vmatprep.subr.bf16.mxu0 %v520
      %616 = vmatpush1.bf16.msra.mxu0 %v519
      %617 = vmatprep.subr.bf16.mxu0 %v522
      %618 = vmatpush1.bf16.msra.mxu0 %v521
      %619 = vmatprep.mubr.bf16.mxu0 %v342
      %620 = vmatmul.mubr.bf16.gmra.mrb[0].mxu0 %v341
      %v621 = vpop.f32.mrb[0].mxu0
      %v622 = vadd.f32 0.0, %v621
      %v623 = vpop.f32.mrb[0].mxu0
      %v624 = vadd.f32 0.0, %v623
      %v625 = vpop.f32.mrb[0].mxu0
      %v626 = vpop.f32.mrb[0].mxu0
      %627 = vdwg.mxu0
      %628 = vmatprep.subr.bf16.mxu0 %v524
      %629 = vmatpush1.bf16.msra.mxu0 %v523
      %630 = vmatprep.subr.bf16.mxu0 %v526
      %631 = vmatpush1.bf16.msra.mxu0 %v525
      %632 = vmatprep.subr.bf16.mxu0 %v528
      %633 = vmatpush1.bf16.msra.mxu0 %v527
      %634 = vmatprep.subr.bf16.mxu0 %v530
      %635 = vmatpush1.bf16.msra.mxu0 %v529
      %636 = vmatprep.subr.bf16.mxu0 %v532
      %637 = vmatpush1.bf16.msra.mxu0 %v531
      %638 = vmatprep.subr.bf16.mxu0 %v534
      %639 = vmatpush1.bf16.msra.mxu0 %v533
      %640 = vmatprep.subr.bf16.mxu0 %v536
      %641 = vmatpush1.bf16.msra.mxu0 %v535
      %642 = vmatprep.subr.bf16.mxu0 %v538
      %643 = vmatpush1.bf16.msra.mxu0 %v537
      %644 = vmatprep.subr.bf16.mxu0 0
      %645 = vmatpush1.bf16.msra.mxu0 0
      %646 = vmatprep.subr.bf16.mxu0 0
      %647 = vmatpush1.bf16.msra.mxu0 0
      %648 = vmatprep.subr.bf16.mxu0 0
      %649 = vmatpush1.bf16.msra.mxu0 0
      %650 = vmatprep.subr.bf16.mxu0 0
      %651 = vmatpush1.bf16.msra.mxu0 0
      %652 = vmatprep.subr.bf16.mxu0 0
      %653 = vmatpush1.bf16.msra.mxu0 0
      %654 = vmatprep.subr.bf16.mxu0 0
      %655 = vmatpush1.bf16.msra.mxu0 0
      %656 = vmatprep.subr.bf16.mxu0 0
      %657 = vmatpush1.bf16.msra.mxu0 0
      %658 = vmatprep.subr.bf16.mxu0 0
      %659 = vmatpush1.bf16.msra.mxu0 0
      %660 = vmatprep.mubr.bf16.mxu0 0
      %661 = vmatmul.mubr.bf16.gmra.mrb[0].mxu0 %v343
      %v662 = vpop.f32.mrb[0].mxu0
      %v663 = vadd.f32 %v622, %v662
      %v664 = vpop.f32.mrb[0].mxu0
      %v665 = vadd.f32 %v624, %v664
      %v666 = vpop.f32.mrb[0].mxu0
      %v667 = vpop.f32.mrb[0].mxu0
      %668 = vdwg.mxu0
      %v669 = vadd.f32 %v284, %v663
      %v670 = vadd.f32 %v285, %v665
      %671 = vst [vmem:[#allocation2] sm:$0xff] %v669
      %672 = vst [vmem:[#allocation2 + $0x8] sm:$0xff] %v670
      %p673 = scmp.eq.s32.totalorder %s21, 5
      // Predicated region
      $region37: #{alexnet_forward.15} parent=31 // pred_check
        %p674 = pneg %p673
      $region38: #{alexnet_forward.15} parent=31 // pred_check_branch
        %676 = sbr.rel (%p674) target = $region40
      $region39: #{alexnet_forward.15} parent=31 // pred_region
        %v677 = vld [vmem:[#allocation2] sm:$0xff]
        %v678 = vld [vmem:[#allocation2 + $0x8] sm:$0xff]
        %v679 = vld [vmem:[%s265] sm:$0x3]
        %v681 = vlaneseq
        %v682 = vshrl.u32 %v681, 7
        %v683 = vsub.s32 0, %v682
        %v684 = vrot.slane %v679, %v683
        %v685 = vlaneseq
        %v686 = vshrl.u32 %v685, 7
        %v687 = vsub.s32 1, %v686
        %v688 = vrot.slane %v679, %v687
        %v691 = vadd.f32 %v677, %v684
        %v692 = vadd.f32 %v678, %v688
        %v693 = vmax.f32 %v691, 0.0
        %v694 = vmax.f32 %v692, 0.0
        %v695 = vpack.c.bf16 %v693, %v693
        %v696 = vpack.c.bf16 %v694, %v694
        %v699 = vunpack.c.l.b16 %v695
        %v700 = vunpack.c.l.b16 %v696
        %v701 = vpack.c.b16 %v700, %v699
        %703 = vst [vmem:[%s275] sm:$0xff] %v701
      $region40: #{alexnet_forward.15} parent=31 // pred_fallthru
        _
      %s704 = smul.u32 2, %s20
      %p705 = scmp.lt.s32.totalorder %s19, 0
      %s706 = scalar_select %p705, %s19, 0
      %p707 = scmp.lt.s32.totalorder %s704, 1
      %s708 = scalar_select %p707, %s704, 1
      %s709 = smul.addr %s706, 2
      %s710 = sadd.s32 %s708, %s709
      %s711 = smul.addr %s710, 4
      %s712 = scalar_lea.vmem %s3, %s711
      // Predicated region
      $region41: #{alexnet_forward.15} parent=31 // pred_check
        %p713 = pneg %p135
      $region42: #{alexnet_forward.15} parent=31 // pred_check_branch
        %715 = sbr.rel (%p713) target = $region44
      $region43: #{alexnet_forward.15} parent=31 // pred_region
        %s716 = smul.u32 2, %s20
      $region44: #{alexnet_forward.15} parent=31 // pred_fallthru
        _
      // Predicated region
      $region45: #{alexnet_forward.15} parent=31 // pred_check
        %p717 = pneg %p135
      $region46: #{alexnet_forward.15} parent=31 // pred_check_branch
        %719 = sbr.rel (%p717) target = $region48
      $region47: #{alexnet_forward.15} parent=31 // pred_region
        %s720 = smul.u32 2, %s20
        %p721 = scmp.lt.s32.totalorder %s19, 0
        %s722 = scalar_select %p721, %s19, 0
        %p723 = scmp.lt.s32.totalorder %s720, 1
        %s724 = scalar_select %p723, %s720, 1
        %s725 = smul.addr %s722, 2
        %s726 = sadd.s32 %s724, %s725
        %s727 = smul.addr %s726, 4
        %s728 = scalar_lea.vmem %s3, %s727
      $region48: #{alexnet_forward.15} parent=31 // pred_fallthru
        _
    $region32: #{alexnet_forward.15} parent=5 // pred_fallthru
      _
    %p729 = scmp.le.s32.totalorder 2, %s9
    // Predicated region
    $region49: #{alexnet_forward.15} parent=5 // pred_check
      %p730 = pneg %p729
    $region50: #{alexnet_forward.15} parent=5 // pred_check_branch
      %732 = sbr.rel (%p730) target = $region52
    $region51: #{alexnet_forward.15} parent=5 // pred_region
      %s733 = ssub.s32 %s9, 2
    $region52: #{alexnet_forward.15} parent=5 // pred_fallthru
      _
  $region6: #{alexnet_forward.15} parent=0 // loop_footer
    %s13 = sadd.s32 1, %s9
  $region7: #{alexnet_forward.15} parent=0 // loop_footer_branch
    %8 = sbr.rel target = $region3
  $region8: #{alexnet_forward.15} parent=0 // loop_exit
    _

// kernel: alexnet_forward.17
$region0: #{alexnet_forward.17}
  #allocation0 [shape = 'u32[]', space=smem, size = 0x4, offset = 0x4, fixed_abs, tag = 'smem constant byte address 0x4 - core index']
  #allocation1 [shape = 'u32[144,128]{1,0:T(1,128)}', space=vmem, size = 0x12000, scoped, tag = 'internal scratch']
  #allocation2 [shape = 'f32[8,128]{1,0:T(8,128)}', space=vmem, size = 0x1000, scoped, tag = 'scratch operand']
  %s0 = inlined_call_operand.vmem [shape: bf16[8,256], index: 0, kind: input, shape index: {}]
  %s1 = inlined_call_operand.vmem [shape: bf16[256,128], index: 1, kind: input, shape index: {}]
  %s2 = inlined_call_operand.vmem [shape: f32[1,128], index: 2, kind: input, shape index: {}]
  %s3 = inlined_call_operand.vmem [shape: f32[8,128], index: 3, kind: output, shape index: {}]
  %s4 = sld [smem:[#allocation0]]
  $region30: #{alexnet_forward.17} parent=0
    _
  %s6 = ssub.s32 1, %s4
  %s7 = scalar_select 0, %s6, %s4
  // Predicated region
  $region2: #{alexnet_forward.17} parent=0 // pred_check
    _
  $region3: #{alexnet_forward.17} parent=0 // pred_check_branch
    %9 = sbr.rel (0) target = $region5
  $region4: #{alexnet_forward.17} parent=0 // pred_region
    _
  $region5: #{alexnet_forward.17} parent=0 // pred_fallthru
    _
  // Predicated region
  $region6: #{alexnet_forward.17} parent=0 // pred_check
    _
  $region7: #{alexnet_forward.17} parent=0 // pred_check_branch
    %11 = sbr.rel (0) target = $region9
  $region8: #{alexnet_forward.17} parent=0 // pred_region
    _
  $region9: #{alexnet_forward.17} parent=0 // pred_fallthru
    _
  // Predicated region
  $region10: #{alexnet_forward.17} parent=0 // pred_check
    _
  $region11: #{alexnet_forward.17} parent=0 // pred_check_branch
    %13 = sbr.rel (0) target = $region13
  $region12: #{alexnet_forward.17} parent=0 // pred_region
    _
  $region13: #{alexnet_forward.17} parent=0 // pred_fallthru
    _
  %p15 = scmp.eq.s32.totalorder 0, 0
  // Predicated region
  $region14: #{alexnet_forward.17} parent=0 // pred_check
    %p16 = pneg %p15
  $region15: #{alexnet_forward.17} parent=0 // pred_check_branch
    %18 = sbr.rel (%p16) target = $region17
  $region16: #{alexnet_forward.17} parent=0 // pred_region
    %19 = vst [vmem:[#allocation2] sm:$0xff] 0.0
  $region17: #{alexnet_forward.17} parent=0 // pred_fallthru
    _
  %v20 = vld [vmem:[#allocation2] sm:$0xff]
  %v21 = vld [vmem:[%s0] sm:$0xff]
  %v22 = vld [vmem:[%s1] sm:$0xf]
  %v23 = vld [vmem:[%s1 + $0x4] sm:$0xf]
  %v24 = vld [vmem:[%s1 + $0x8] sm:$0xf]
  %v25 = vld [vmem:[%s1 + $0xc] sm:$0xf]
  %v26 = vld [vmem:[%s1 + $0x10] sm:$0xf]
  %v27 = vld [vmem:[%s1 + $0x14] sm:$0xf]
  %v28 = vld [vmem:[%s1 + $0x18] sm:$0xf]
  %v29 = vld [vmem:[%s1 + $0x1c] sm:$0xf]
  %v30 = vld [vmem:[%s1 + $0x20] sm:$0xf]
  %v31 = vld [vmem:[%s1 + $0x24] sm:$0xf]
  %v32 = vld [vmem:[%s1 + $0x28] sm:$0xf]
  %v33 = vld [vmem:[%s1 + $0x2c] sm:$0xf]
  %v34 = vld [vmem:[%s1 + $0x30] sm:$0xf]
  %v35 = vld [vmem:[%s1 + $0x34] sm:$0xf]
  %v36 = vld [vmem:[%s1 + $0x38] sm:$0xf]
  %v37 = vld [vmem:[%s1 + $0x3c] sm:$0xf]
  %v38 = vld [vmem:[%s1 + $0x40] sm:$0xf]
  %v39 = vld [vmem:[%s1 + $0x44] sm:$0xf]
  %v40 = vld [vmem:[%s1 + $0x48] sm:$0xf]
  %v41 = vld [vmem:[%s1 + $0x4c] sm:$0xf]
  %v42 = vld [vmem:[%s1 + $0x50] sm:$0xf]
  %v43 = vld [vmem:[%s1 + $0x54] sm:$0xf]
  %v44 = vld [vmem:[%s1 + $0x58] sm:$0xf]
  %v45 = vld [vmem:[%s1 + $0x5c] sm:$0xf]
  %v46 = vld [vmem:[%s1 + $0x60] sm:$0xf]
  %v47 = vld [vmem:[%s1 + $0x64] sm:$0xf]
  %v48 = vld [vmem:[%s1 + $0x68] sm:$0xf]
  %v49 = vld [vmem:[%s1 + $0x6c] sm:$0xf]
  %v50 = vld [vmem:[%s1 + $0x70] sm:$0xf]
  %v51 = vld [vmem:[%s1 + $0x74] sm:$0xf]
  %v52 = vld [vmem:[%s1 + $0x78] sm:$0xf]
  %v53 = vld [vmem:[%s1 + $0x7c] sm:$0xf]
  %v55 = vunpack.c.l.b16 %v21
  %v56 = vunpack.c.h.b16 %v21
  %v57 = vpack.c.b16 %v55, %v55
  %v58 = vpack.c.b16 %v56, %v56
  %v93 = vunpack.c.l.b16 %v22
  %v94 = vunpack.c.l.b16 %v23
  %v95 = vunpack.c.l.b16 %v24
  %v96 = vunpack.c.l.b16 %v25
  %v97 = vunpack.c.l.b16 %v26
  %v98 = vunpack.c.l.b16 %v27
  %v99 = vunpack.c.l.b16 %v28
  %v100 = vunpack.c.l.b16 %v29
  %v101 = vunpack.c.l.b16 %v30
  %v102 = vunpack.c.l.b16 %v31
  %v103 = vunpack.c.l.b16 %v32
  %v104 = vunpack.c.l.b16 %v33
  %v105 = vunpack.c.l.b16 %v34
  %v106 = vunpack.c.l.b16 %v35
  %v107 = vunpack.c.l.b16 %v36
  %v108 = vunpack.c.l.b16 %v37
  %v109 = vunpack.c.l.b16 %v38
  %v110 = vunpack.c.l.b16 %v39
  %v111 = vunpack.c.l.b16 %v40
  %v112 = vunpack.c.l.b16 %v41
  %v113 = vunpack.c.l.b16 %v42
  %v114 = vunpack.c.l.b16 %v43
  %v115 = vunpack.c.l.b16 %v44
  %v116 = vunpack.c.l.b16 %v45
  %v117 = vunpack.c.l.b16 %v46
  %v118 = vunpack.c.l.b16 %v47
  %v119 = vunpack.c.l.b16 %v48
  %v120 = vunpack.c.l.b16 %v49
  %v121 = vunpack.c.l.b16 %v50
  %v122 = vunpack.c.l.b16 %v51
  %v123 = vunpack.c.l.b16 %v52
  %v124 = vunpack.c.l.b16 %v53
  %v125 = vpack.c.b16 %v94, %v93
  %v126 = vpack.c.b16 %v96, %v95
  %v127 = vpack.c.b16 %v98, %v97
  %v128 = vpack.c.b16 %v100, %v99
  %v129 = vpack.c.b16 %v102, %v101
  %v130 = vpack.c.b16 %v104, %v103
  %v131 = vpack.c.b16 %v106, %v105
  %v132 = vpack.c.b16 %v108, %v107
  %v133 = vpack.c.b16 %v110, %v109
  %v134 = vpack.c.b16 %v112, %v111
  %v135 = vpack.c.b16 %v114, %v113
  %v136 = vpack.c.b16 %v116, %v115
  %v137 = vpack.c.b16 %v118, %v117
  %v138 = vpack.c.b16 %v120, %v119
  %v139 = vpack.c.b16 %v122, %v121
  %v140 = vpack.c.b16 %v124, %v123
  %157 = vmatprep.subr.bf16.mxu0 0
  %158 = vmatpush1.bf16.msra.mxu0 %v125
  %159 = vmatprep.subr.bf16.mxu0 0
  %160 = vmatpush1.bf16.msra.mxu0 %v126
  %161 = vmatprep.subr.bf16.mxu0 0
  %162 = vmatpush1.bf16.msra.mxu0 %v127
  %163 = vmatprep.subr.bf16.mxu0 0
  %164 = vmatpush1.bf16.msra.mxu0 %v128
  %165 = vmatprep.subr.bf16.mxu0 0
  %166 = vmatpush1.bf16.msra.mxu0 %v129
  %167 = vmatprep.subr.bf16.mxu0 0
  %168 = vmatpush1.bf16.msra.mxu0 %v130
  %169 = vmatprep.subr.bf16.mxu0 0
  %170 = vmatpush1.bf16.msra.mxu0 %v131
  %171 = vmatprep.subr.bf16.mxu0 0
  %172 = vmatpush1.bf16.msra.mxu0 %v132
  %173 = vmatprep.subr.bf16.mxu0 0
  %174 = vmatpush1.bf16.msra.mxu0 %v133
  %175 = vmatprep.subr.bf16.mxu0 0
  %176 = vmatpush1.bf16.msra.mxu0 %v134
  %177 = vmatprep.subr.bf16.mxu0 0
  %178 = vmatpush1.bf16.msra.mxu0 %v135
  %179 = vmatprep.subr.bf16.mxu0 0
  %180 = vmatpush1.bf16.msra.mxu0 %v136
  %181 = vmatprep.subr.bf16.mxu0 0
  %182 = vmatpush1.bf16.msra.mxu0 %v137
  %183 = vmatprep.subr.bf16.mxu0 0
  %184 = vmatpush1.bf16.msra.mxu0 %v138
  %185 = vmatprep.subr.bf16.mxu0 0
  %186 = vmatpush1.bf16.msra.mxu0 %v139
  %187 = vmatprep.subr.bf16.mxu0 0
  %188 = vmatpush1.bf16.msra.mxu0 %v140
  %189 = vmatprep.mubr.bf16.mxu0 %v58
  %190 = vmatmul.mubr.bf16.gmra.mrb[0].mxu0 %v57
  %v191 = vpop.f32.mrb[0].mxu0
  %v192 = vadd.f32 0.0, %v191
  %v193 = vpop.f32.mrb[0].mxu0
  %v194 = vpop.f32.mrb[0].mxu0
  %v195 = vpop.f32.mrb[0].mxu0
  %196 = vdwg.mxu0
  %v197 = vadd.f32 %v20, %v192
  %198 = vst [vmem:[#allocation2] sm:$0xff] %v197
  // Predicated region
  $region18: #{alexnet_forward.17} parent=0 // pred_check
    %p199 = pneg %p15
  $region19: #{alexnet_forward.17} parent=0 // pred_check_branch
    %201 = sbr.rel (%p199) target = $region21
  $region20: #{alexnet_forward.17} parent=0 // pred_region
    %v202 = vld [vmem:[#allocation2] sm:$0xff]
    %v203 = vld [vmem:[%s2] sm:$0x1]
    %v205 = vlaneseq
    %v206 = vshrl.u32 %v205, 7
    %v207 = vsub.s32 0, %v206
    %v208 = vrot.slane %v203, %v207
    %v210 = vadd.f32 %v202, %v208
    %211 = vst [vmem:[%s3] sm:$0xff] %v210
  $region21: #{alexnet_forward.17} parent=0 // pred_fallthru
    _
  // Predicated region
  $region22: #{alexnet_forward.17} parent=0 // pred_check
    _
  $region23: #{alexnet_forward.17} parent=0 // pred_check_branch
    %213 = sbr.rel (0) target = $region25
  $region24: #{alexnet_forward.17} parent=0 // pred_region
    _
  $region25: #{alexnet_forward.17} parent=0 // pred_fallthru
    _
  // Predicated region
  $region26: #{alexnet_forward.17} parent=0 // pred_check
    _
  $region27: #{alexnet_forward.17} parent=0 // pred_check_branch
    %215 = sbr.rel (0) target = $region29
  $region28: #{alexnet_forward.17} parent=0 // pred_region
    _
  $region29: #{alexnet_forward.17} parent=0 // pred_fallthru
    _

</llo_original>
